<compile_context>
chip_gen: v5e
topology: v5e:2x2
jax: 0.10.0
libtpu: 0.0.40
codegen_flags: <defaults>
</compile_context>

<pallas_src>
import functools

import jax
import jax.numpy as jnp
from jax.experimental import pallas as pl
from jax.experimental.pallas import tpu as pltpu


_V_PAD = 128  # lane-dense padded width for the answer logits / kernel output
_VMEM = pl.BlockSpec(memory_space=pltpu.MemorySpace.VMEM)


# ----------------------------- in-kernel helpers -----------------------------

def _gru_step(gi, h, whh, bhh, H):
    """One GRU step given precomputed input projection gi = x @ Wih + bih (f32).

    h is f32 state, whh bf16 (cast h at the matmul only), bhh f32.  PyTorch
    semantics: n = tanh(gi_n + r*(h@Whn + bhn)); r/z sigmoids fused into one
    EUP dispatch.
    """
    gh = jnp.dot(h.astype(whh.dtype), whh, preferred_element_type=jnp.float32) + bhh
    rz = jax.nn.sigmoid(gi[:, :2 * H] + gh[:, :2 * H])
    r = rz[:, :H]
    z = rz[:, H:]
    n = jnp.tanh(gi[:, 2 * H:] + r * gh[:, 2 * H:])
    return (1.0 - z) * n + z * h


def _gru_last_hidden(gi_slab, lens, whh, bhh, steps, N, H):
    """Unrolled GRU over `steps` timesteps whose input projections live in
    gi_slab (rows t*N .. t*N+N-1 for step t).  Returns, per row, the hidden
    state after `lens` real tokens (PyTorch mask-based last-hidden)."""
    h = jnp.zeros((N, H), jnp.float32)
    out = jnp.zeros((N, H), jnp.float32)
    for t in range(steps):
        h = _gru_step(gi_slab[t * N:(t + 1) * N, :], h, whh, bhh, H)
        sel = jnp.broadcast_to(lens == (t + 1), (N, H))
        out = jnp.where(sel, h, out)
    return out


# ------------------------------- fused kernel --------------------------------

def dmn_kernel(x_ref, lens_ref, w3h_ref, b3h_ref, gw1_ref, gmisc_ref, fc_ref,
               out_ref, *, B, T_C, T_I, T_Q, H, num_decode, episodes):
    BT = B * T_C
    n_f, n_q = T_I * BT, T_Q * B

    x = x_ref[...]                       # bf16 (n_f + n_q + B, H) packed inputs
    lens = lens_ref[...]                 # i32  (BT + B, 1)
    b3h = b3h_ref[...]                   # f32  (10, 3H) packed GRU biases

    # ---------------- input module (facts): one slab projection -------------
    gi_f = (jnp.dot(x[0:n_f, :], w3h_ref[pl.ds(0 * H, H), :],
                    preferred_element_type=jnp.float32) + b3h[0:1, :])
    enc_facts = _gru_last_hidden(gi_f, lens[0:BT, :],
                                 w3h_ref[pl.ds(1 * H, H), :], b3h[1:2, :],
                                 T_I, BT, H)             # rows: t_c*B + b

    # ---------------- question module: one slab projection ------------------
    gi_q = (jnp.dot(x[n_f:n_f + n_q, :], w3h_ref[pl.ds(2 * H, H), :],
                    preferred_element_type=jnp.float32) + b3h[2:3, :])
    enc_q = _gru_last_hidden(gi_q, lens[BT:BT + B, :],
                             w3h_ref[pl.ds(3 * H, H), :], b3h[3:4, :],
                             T_Q, B, H)

    # ---------------- episodic memory module --------------------------------
    a_wih = w3h_ref[pl.ds(4 * H, H), :]
    a_whh = w3h_ref[pl.ds(5 * H, H), :]
    a_bih, a_bhh = b3h[4:5, :], b3h[5:6, :]
    m_wih = w3h_ref[pl.ds(6 * H, H), :]
    m_whh = w3h_ref[pl.ds(7 * H, H), :]
    m_bih, m_bhh = b3h[6:7, :], b3h[7:8, :]

    gw1 = gw1_ref[...]                   # bf16 (4H, H): [W_fq; W_fm; W_afq; W_afm]
    gmisc = gmisc_ref[...]               # f32  (3, H): rows gb1 / gw2 / [gb2,0..]
    gb1, gw2, gb2 = gmisc[0:1, :], gmisc[1:2, :], gmisc[2:3, 0:1]

    enc_facts_bf = enc_facts.astype(jnp.bfloat16)
    q_tiled = jnp.concatenate([enc_q] * T_C, axis=0)     # (BT, H): row t*B+b -> q[b]

    # Episode-invariant work hoisted off the episode loop: the question-only
    # half of the gate pre-activation and all attn-GRU input projections.
    fq_all = enc_facts * q_tiled
    afq_all = jnp.abs(enc_facts - q_tiled)
    gate_base = (
        jnp.dot(fq_all.astype(jnp.bfloat16), gw1[0:H, :],
                preferred_element_type=jnp.float32)
        + jnp.dot(afq_all.astype(jnp.bfloat16), gw1[2 * H:3 * H, :],
                  preferred_element_type=jnp.float32)
        + gb1)                                           # (BT, H)
    gi_att = (jnp.dot(enc_facts_bf, a_wih, preferred_element_type=jnp.float32)
              + a_bih)                                   # (BT, 3H)

    memory = enc_q
    for _ep in range(episodes):
        # Attention gates for ALL T_C facts in one batched MLP evaluation;
        # only the memory-dependent terms are recomputed per episode.
        m_tiled = jnp.concatenate([memory] * T_C, axis=0)
        fm_all = enc_facts * m_tiled
        afm_all = jnp.abs(enc_facts - m_tiled)
        pre = (gate_base
               + jnp.dot(fm_all.astype(jnp.bfloat16), gw1[H:2 * H, :],
                         preferred_element_type=jnp.float32)
               + jnp.dot(afm_all.astype(jnp.bfloat16), gw1[3 * H:4 * H, :],
                         preferred_element_type=jnp.float32))
        g1 = jnp.tanh(pre)                               # (BT, H)
        g_all = jax.nn.sigmoid(
            jnp.sum(g1 * gw2, axis=1, keepdims=True) + gb2)    # (BT, 1)

        # Only the attn-GRU recurrence remains on the sequential chain.
        h = jnp.zeros((B, H), jnp.float32)
        for t in range(T_C):
            g_t = g_all[t * B:(t + 1) * B, :]
            h_att = _gru_step(gi_att[t * B:(t + 1) * B, :], h, a_whh, a_bhh, H)
            h = g_t * h_att + (1.0 - g_t) * h

        gi_m = (jnp.dot(h.astype(jnp.bfloat16), m_wih,
                        preferred_element_type=jnp.float32) + m_bih)
        memory = _gru_step(gi_m, memory, m_whh, m_bhh, H)

    # ---------------- answer module ------------------------------------------
    # Faithful to the reference: y_t_1 is never updated in the decode loop, so
    # the answer GRUCell's input projection is loop-invariant.  ans_wih (2H,3H)
    # is used as its y-/q- halves to avoid an in-kernel lane concat.
    ans_whh = w3h_ref[pl.ds(8 * H, H), :]
    ans_bih, ans_bhh = b3h[8:9, :], b3h[9:10, :]
    y0 = x[n_f + n_q:n_f + n_q + B, :]                   # bf16 (B, H)
    gi_ans = (jnp.dot(y0, w3h_ref[pl.ds(9 * H, H), :],
                      preferred_element_type=jnp.float32)
              + jnp.dot(enc_q.astype(jnp.bfloat16), w3h_ref[pl.ds(10 * H, H), :],
                        preferred_element_type=jnp.float32)
              + ans_bih)

    fc = fc_ref[...]                                     # f32 (H+1, 128)
    fcw, fcb = fc[0:H, :], fc[H:H + 1, :]                # fc path stays f32

    ah = memory
    rows = []
    for _t in range(num_decode):
        ah = _gru_step(gi_ans, ah, ans_whh, ans_bhh, H)
        logits = jnp.dot(ah, fcw, preferred_element_type=jnp.float32) + fcb
        s = logits - jnp.max(logits, axis=1, keepdims=True)
        lse = jnp.log(jnp.sum(jnp.exp(s), axis=1, keepdims=True))
        rows.append(s - lse)                             # lane-dense 128-wide row
    # Single dense store of all decode rows (row = t*B + b).
    out_ref[...] = jnp.concatenate(rows, axis=0)


# ------------------------------- JAX wrapper ----------------------------------

def dmn_forward(params, facts, fact_lens, questions, q_lens,
                num_decode, episodes=3):
    """facts:(B,T_C,T_I) int32, fact_lens:(B,T_C) int32 (# real tokens),
       questions:(B,T_Q) int32, q_lens:(B,) int32."""
    B, T_C, T_I = facts.shape
    T_Q = questions.shape[1]
    H = params['embed'].shape[1]
    V = params['fc_w'].shape[1]
    BT = B * T_C

    emb = params['embed'].astype(jnp.float32)

    # Embedding gathers + time-major / fact-index-major packed input slab.
    f_emb = jnp.transpose(emb[facts], (2, 1, 0, 3)).reshape(T_I * BT, H)
    q_emb = jnp.transpose(emb[questions], (1, 0, 2)).reshape(T_Q * B, H)
    y0 = jnp.broadcast_to(emb[2][None, :], (B, H))
    x = jnp.concatenate([f_emb, q_emb, y0], axis=0).astype(jnp.bfloat16)

    f_len = jnp.transpose(fact_lens, (1, 0)).reshape(BT, 1)
    lens = jnp.concatenate([f_len, q_lens.reshape(B, 1)], axis=0).astype(jnp.int32)

    # Packed bf16 recurrent / projection weights: (11H, 3H).
    w3h = jnp.concatenate([
        params['in_wih'], params['in_whh'],
        params['q_wih'], params['q_whh'],
        params['a_wih'], params['a_whh'],
        params['m_wih'], params['m_whh'],
        params['ans_whh'], params['ans_wih'],
    ], axis=0).astype(jnp.bfloat16)

    # Packed f32 GRU biases: (10, 3H).
    b3h = jnp.concatenate([
        params['in_bih'], params['in_bhh'],
        params['q_bih'], params['q_bhh'],
        params['a_bih'], params['a_bhh'],
        params['m_bih'], params['m_bhh'],
        params['ans_bih'], params['ans_bhh'],
    ], axis=0).astype(jnp.float32)

    gw1 = params['g_w1'].astype(jnp.bfloat16)            # (4H, H)
    gb2_row = jnp.zeros((1, H), jnp.float32).at[0, 0].set(params['g_b2'][0, 0])
    gmisc = jnp.concatenate(
        [params['g_b1'], params['g_w2'], gb2_row], axis=0).astype(jnp.float32)

    # answer_fc padded to 128 lanes: zero weights and -1e30 bias on pad lanes,
    # so exp() underflows to exactly 0 and the real-lane log_softmax is exact.
    fcw_p = jnp.zeros((H, _V_PAD), jnp.float32).at[:, :V].set(params['fc_w'])
    fcb_p = jnp.full((1, _V_PAD), -1e30, jnp.float32).at[:, :V].set(params['fc_b'])
    fc = jnp.concatenate([fcw_p, fcb_p], axis=0)         # (H+1, 128)

    kern = functools.partial(dmn_kernel, B=B, T_C=T_C, T_I=T_I, T_Q=T_Q,
                             H=H, num_decode=num_decode, episodes=episodes)
    dec = pl.pallas_call(
        kern,
        out_shape=jax.ShapeDtypeStruct((num_decode * B, _V_PAD), jnp.float32),
        in_specs=[_VMEM] * 7,
        out_specs=_VMEM,
    )(x, lens, w3h, b3h, gw1, gmisc, fc)

    # Rows are (t, b); torch reference is cat(decodes,1).view(B*num_decode,-1)
    # i.e. (b, t) ordering.
    dec = dec.reshape(num_decode, B, _V_PAD)[:, :, :V]
    return jnp.transpose(dec, (1, 0, 2)).reshape(B * num_decode, V)


# ------------------------------ parameter setup -------------------------------

def init_params(key, vocab, H, V):
    keys = jax.random.split(key, 24)

    def nrm(k, shape, scale=0.1):
        return jax.random.normal(k, shape, jnp.float32) * scale

    embed = nrm(keys[0], (vocab, H), 0.5).at[0].set(0.0)  # padding_idx=0 -> zero row
    return {
        'embed': embed,
        # input GRU (facts)
        'in_wih': nrm(keys[1], (H, 3 * H)), 'in_whh': nrm(keys[2], (H, 3 * H)),
        'in_bih': nrm(keys[3], (1, 3 * H)), 'in_bhh': nrm(keys[4], (1, 3 * H)),
        # question GRU
        'q_wih': nrm(keys[5], (H, 3 * H)), 'q_whh': nrm(keys[6], (H, 3 * H)),
        'q_bih': nrm(keys[7], (1, 3 * H)), 'q_bhh': nrm(keys[8], (1, 3 * H)),
        # gate MLP: Linear(4H,H) -> tanh -> Linear(H,1) -> sigmoid
        'g_w1': nrm(keys[9], (4 * H, H)), 'g_b1': nrm(keys[10], (1, H)),
        'g_w2': nrm(keys[11], (1, H)), 'g_b2': nrm(keys[12], (1, 1)),
        # attention GRUCell
        'a_wih': nrm(keys[13], (H, 3 * H)), 'a_whh': nrm(keys[14], (H, 3 * H)),
        'a_bih': nrm(keys[15], (1, 3 * H)), 'a_bhh': nrm(keys[16], (1, 3 * H)),
        # memory GRUCell
        'm_wih': nrm(keys[17], (H, 3 * H)), 'm_whh': nrm(keys[18], (H, 3 * H)),
        'm_bih': nrm(keys[19], (1, 3 * H)), 'm_bhh': nrm(keys[20], (1, 3 * H)),
        # answer GRUCell (input is cat([y, q]) -> 2H) and answer_fc
        'ans_wih': nrm(keys[21], (2 * H, 3 * H)), 'ans_whh': nrm(keys[22], (H, 3 * H)),
        'ans_bih': jnp.zeros((1, 3 * H), jnp.float32),
        'ans_bhh': jnp.zeros((1, 3 * H), jnp.float32),
        'fc_w': nrm(keys[23], (H, V)), 'fc_b': jnp.zeros((1, V), jnp.float32),
    }


# ----------------------------------- main --------------------------------------

if __name__ == "__main__":
    key = jax.random.PRNGKey(0)
    B, T_C, T_I, T_Q = 2, 4, 6, 5
    H, vocab = 32, 32
    num_decode = 3

    kp, kf, kq, kfl, kql = jax.random.split(key, 5)
    params = init_params(kp, vocab, H, vocab)

    facts = jax.random.randint(kf, (B, T_C, T_I), 1, vocab, dtype=jnp.int32)
    questions = jax.random.randint(kq, (B, T_Q), 1, vocab, dtype=jnp.int32)
    # lengths = number of real (non-pad) tokens, i.e. count of zeros in the masks
    fact_lens = jax.random.randint(kfl, (B, T_C), 2, T_I + 1, dtype=jnp.int32)
    q_lens = jax.random.randint(kql, (B,), 2, T_Q + 1, dtype=jnp.int32)

    fwd = jax.jit(dmn_forward, static_argnums=(5, 6))
    out = jax.block_until_ready(
        fwd(params, facts, fact_lens, questions, q_lens, num_decode, 3))
    assert out.shape == (B * num_decode, vocab), out.shape
    assert bool(jnp.all(jnp.isfinite(out)))
    print("KERNEL_OK")
</pallas_src>

<mosaic_0001>
module attributes {stable_mosaic.version = 11 : i64} {
  func.func @dmn_kernel(%arg0: memref<60x32xbf16, #tpu.memory_space<vmem>>, %arg1: memref<10x1xi32, #tpu.memory_space<vmem>>, %arg2: memref<352x96xbf16, #tpu.memory_space<vmem>>, %arg3: memref<10x96xf32, #tpu.memory_space<vmem>>, %arg4: memref<128x32xbf16, #tpu.memory_space<vmem>>, %arg5: memref<3x32xf32, #tpu.memory_space<vmem>>, %arg6: memref<33x128xf32, #tpu.memory_space<vmem>>, %arg7: memref<6x128xf32, #tpu.memory_space<vmem>>) attributes {dimension_semantics = [], scalar_prefetch = 0 : i64, scratch_operands = 0 : i64, tpu.core_type = #tpu.core_type<tc>} {
    %c0 = arith.constant 0 : index
    %c0_0 = arith.constant 0 : index
    %0 = vector.load %arg0[%c0, %c0_0] : memref<60x32xbf16, #tpu.memory_space<vmem>>, vector<60x32xbf16>
    %c0_1 = arith.constant 0 : index
    %c0_2 = arith.constant 0 : index
    %1 = vector.load %arg1[%c0_1, %c0_2] : memref<10x1xi32, #tpu.memory_space<vmem>>, vector<10x1xi32>
    %c0_3 = arith.constant 0 : index
    %c0_4 = arith.constant 0 : index
    %2 = vector.load %arg3[%c0_3, %c0_4] : memref<10x96xf32, #tpu.memory_space<vmem>>, vector<10x96xf32>
    %3 = vector.extract_strided_slice %0 {offsets = [0, 0], sizes = [48, 32], strides = [1, 1]} : vector<60x32xbf16> to vector<48x32xbf16>
    %c0_5 = arith.constant 0 : index
    %c0_6 = arith.constant 0 : index
    %4 = vector.load %arg2[%c0_5, %c0_6] : memref<352x96xbf16, #tpu.memory_space<vmem>>, vector<32x96xbf16>
    %cst = arith.constant dense<0.000000e+00> : vector<48x96xf32>
    %5 = tpu.matmul %3, %4, %cst {dimension_numbers = #tpu.dot_dimension_numbers<[1], [0], [0], [1], [0, 0, 1, 1], [], []>} : vector<48x32xbf16>, vector<32x96xbf16>, vector<48x96xf32> -> vector<48x96xf32>
    %6 = vector.extract_strided_slice %2 {offsets = [0, 0], sizes = [1, 96], strides = [1, 1]} : vector<10x96xf32> to vector<1x96xf32>
    %7 = vector.broadcast %6 : vector<1x96xf32> to vector<48x96xf32>
    %8 = arith.addf %5, %7 : vector<48x96xf32>
    %9 = vector.extract_strided_slice %1 {offsets = [0, 0], sizes = [8, 1], strides = [1, 1]} : vector<10x1xi32> to vector<8x1xi32>
    %c32 = arith.constant 32 : index
    %c0_7 = arith.constant 0 : index
    %10 = vector.load %arg2[%c32, %c0_7] : memref<352x96xbf16, #tpu.memory_space<vmem>>, vector<32x96xbf16>
    %11 = vector.extract_strided_slice %2 {offsets = [1, 0], sizes = [1, 96], strides = [1, 1]} : vector<10x96xf32> to vector<1x96xf32>
    %cst_8 = arith.constant 0.000000e+00 : f32
    %12 = vector.broadcast %cst_8 : f32 to vector<8x32xf32>
    %cst_9 = arith.constant 0.000000e+00 : f32
    %13 = vector.broadcast %cst_9 : f32 to vector<8x32xf32>
    %14 = vector.extract_strided_slice %8 {offsets = [0, 0], sizes = [8, 96], strides = [1, 1]} : vector<48x96xf32> to vector<8x96xf32>
    %15 = arith.truncf %12 : vector<8x32xf32> to vector<8x32xbf16>
    %cst_10 = arith.constant dense<0.000000e+00> : vector<8x96xf32>
    %16 = tpu.matmul %15, %10, %cst_10 {dimension_numbers = #tpu.dot_dimension_numbers<[1], [0], [0], [1], [0, 0, 1, 1], [], []>} : vector<8x32xbf16>, vector<32x96xbf16>, vector<8x96xf32> -> vector<8x96xf32>
    %17 = vector.broadcast %11 : vector<1x96xf32> to vector<8x96xf32>
    %18 = arith.addf %16, %17 : vector<8x96xf32>
    %19 = vector.extract_strided_slice %14 {offsets = [0, 0], sizes = [8, 64], strides = [1, 1]} : vector<8x96xf32> to vector<8x64xf32>
    %20 = vector.extract_strided_slice %18 {offsets = [0, 0], sizes = [8, 64], strides = [1, 1]} : vector<8x96xf32> to vector<8x64xf32>
    %21 = arith.addf %19, %20 : vector<8x64xf32>
    %22 = arith.negf %21 : vector<8x64xf32>
    %23 = math.exp %22 : vector<8x64xf32>
    %cst_11 = arith.constant 1.000000e+00 : f32
    %24 = vector.broadcast %cst_11 : f32 to vector<8x64xf32>
    %25 = arith.addf %24, %23 : vector<8x64xf32>
    %26 = arith.divf %24, %25 : vector<8x64xf32>
    %27 = vector.extract_strided_slice %26 {offsets = [0, 0], sizes = [8, 32], strides = [1, 1]} : vector<8x64xf32> to vector<8x32xf32>
    %28 = vector.extract_strided_slice %26 {offsets = [0, 32], sizes = [8, 32], strides = [1, 1]} : vector<8x64xf32> to vector<8x32xf32>
    %29 = vector.extract_strided_slice %14 {offsets = [0, 64], sizes = [8, 32], strides = [1, 1]} : vector<8x96xf32> to vector<8x32xf32>
    %30 = vector.extract_strided_slice %18 {offsets = [0, 64], sizes = [8, 32], strides = [1, 1]} : vector<8x96xf32> to vector<8x32xf32>
    %31 = arith.mulf %27, %30 : vector<8x32xf32>
    %32 = arith.addf %29, %31 : vector<8x32xf32>
    %33 = math.tanh %32 : vector<8x32xf32>
    %cst_12 = arith.constant 1.000000e+00 : f32
    %34 = vector.broadcast %cst_12 : f32 to vector<8x32xf32>
    %35 = arith.subf %34, %28 : vector<8x32xf32>
    %36 = arith.mulf %35, %33 : vector<8x32xf32>
    %37 = arith.mulf %28, %12 : vector<8x32xf32>
    %38 = arith.addf %36, %37 : vector<8x32xf32>
    %c1_i32 = arith.constant 1 : i32
    %39 = vector.broadcast %c1_i32 : i32 to vector<8x1xi32>
    %40 = arith.cmpi eq, %9, %39 : vector<8x1xi32>
    %41 = vector.shape_cast %40 : vector<8x1xi1> to vector<8x1xi1>
    %42 = vector.broadcast %41 : vector<8x1xi1> to vector<8x32xi1>
    %43 = arith.select %42, %38, %13 : vector<8x32xi1>, vector<8x32xf32>
    %44 = vector.extract_strided_slice %8 {offsets = [8, 0], sizes = [8, 96], strides = [1, 1]} : vector<48x96xf32> to vector<8x96xf32>
    %45 = arith.truncf %38 : vector<8x32xf32> to vector<8x32xbf16>
    %cst_13 = arith.constant dense<0.000000e+00> : vector<8x96xf32>
    %46 = tpu.matmul %45, %10, %cst_13 {dimension_numbers = #tpu.dot_dimension_numbers<[1], [0], [0], [1], [0, 0, 1, 1], [], []>} : vector<8x32xbf16>, vector<32x96xbf16>, vector<8x96xf32> -> vector<8x96xf32>
    %47 = vector.broadcast %11 : vector<1x96xf32> to vector<8x96xf32>
    %48 = arith.addf %46, %47 : vector<8x96xf32>
    %49 = vector.extract_strided_slice %44 {offsets = [0, 0], sizes = [8, 64], strides = [1, 1]} : vector<8x96xf32> to vector<8x64xf32>
    %50 = vector.extract_strided_slice %48 {offsets = [0, 0], sizes = [8, 64], strides = [1, 1]} : vector<8x96xf32> to vector<8x64xf32>
    %51 = arith.addf %49, %50 : vector<8x64xf32>
    %52 = arith.negf %51 : vector<8x64xf32>
    %53 = math.exp %52 : vector<8x64xf32>
    %cst_14 = arith.constant 1.000000e+00 : f32
    %54 = vector.broadcast %cst_14 : f32 to vector<8x64xf32>
    %55 = arith.addf %54, %53 : vector<8x64xf32>
    %56 = arith.divf %54, %55 : vector<8x64xf32>
    %57 = vector.extract_strided_slice %56 {offsets = [0, 0], sizes = [8, 32], strides = [1, 1]} : vector<8x64xf32> to vector<8x32xf32>
    %58 = vector.extract_strided_slice %56 {offsets = [0, 32], sizes = [8, 32], strides = [1, 1]} : vector<8x64xf32> to vector<8x32xf32>
    %59 = vector.extract_strided_slice %44 {offsets = [0, 64], sizes = [8, 32], strides = [1, 1]} : vector<8x96xf32> to vector<8x32xf32>
    %60 = vector.extract_strided_slice %48 {offsets = [0, 64], sizes = [8, 32], strides = [1, 1]} : vector<8x96xf32> to vector<8x32xf32>
    %61 = arith.mulf %57, %60 : vector<8x32xf32>
    %62 = arith.addf %59, %61 : vector<8x32xf32>
    %63 = math.tanh %62 : vector<8x32xf32>
    %cst_15 = arith.constant 1.000000e+00 : f32
    %64 = vector.broadcast %cst_15 : f32 to vector<8x32xf32>
    %65 = arith.subf %64, %58 : vector<8x32xf32>
    %66 = arith.mulf %65, %63 : vector<8x32xf32>
    %67 = arith.mulf %58, %38 : vector<8x32xf32>
    %68 = arith.addf %66, %67 : vector<8x32xf32>
    %c2_i32 = arith.constant 2 : i32
    %69 = vector.broadcast %c2_i32 : i32 to vector<8x1xi32>
    %70 = arith.cmpi eq, %9, %69 : vector<8x1xi32>
    %71 = vector.shape_cast %70 : vector<8x1xi1> to vector<8x1xi1>
    %72 = vector.broadcast %71 : vector<8x1xi1> to vector<8x32xi1>
    %73 = arith.select %72, %68, %43 : vector<8x32xi1>, vector<8x32xf32>
    %74 = vector.extract_strided_slice %8 {offsets = [16, 0], sizes = [8, 96], strides = [1, 1]} : vector<48x96xf32> to vector<8x96xf32>
    %75 = arith.truncf %68 : vector<8x32xf32> to vector<8x32xbf16>
    %cst_16 = arith.constant dense<0.000000e+00> : vector<8x96xf32>
    %76 = tpu.matmul %75, %10, %cst_16 {dimension_numbers = #tpu.dot_dimension_numbers<[1], [0], [0], [1], [0, 0, 1, 1], [], []>} : vector<8x32xbf16>, vector<32x96xbf16>, vector<8x96xf32> -> vector<8x96xf32>
    %77 = vector.broadcast %11 : vector<1x96xf32> to vector<8x96xf32>
    %78 = arith.addf %76, %77 : vector<8x96xf32>
    %79 = vector.extract_strided_slice %74 {offsets = [0, 0], sizes = [8, 64], strides = [1, 1]} : vector<8x96xf32> to vector<8x64xf32>
    %80 = vector.extract_strided_slice %78 {offsets = [0, 0], sizes = [8, 64], strides = [1, 1]} : vector<8x96xf32> to vector<8x64xf32>
    %81 = arith.addf %79, %80 : vector<8x64xf32>
    %82 = arith.negf %81 : vector<8x64xf32>
    %83 = math.exp %82 : vector<8x64xf32>
    %cst_17 = arith.constant 1.000000e+00 : f32
    %84 = vector.broadcast %cst_17 : f32 to vector<8x64xf32>
    %85 = arith.addf %84, %83 : vector<8x64xf32>
    %86 = arith.divf %84, %85 : vector<8x64xf32>
    %87 = vector.extract_strided_slice %86 {offsets = [0, 0], sizes = [8, 32], strides = [1, 1]} : vector<8x64xf32> to vector<8x32xf32>
    %88 = vector.extract_strided_slice %86 {offsets = [0, 32], sizes = [8, 32], strides = [1, 1]} : vector<8x64xf32> to vector<8x32xf32>
    %89 = vector.extract_strided_slice %74 {offsets = [0, 64], sizes = [8, 32], strides = [1, 1]} : vector<8x96xf32> to vector<8x32xf32>
    %90 = vector.extract_strided_slice %78 {offsets = [0, 64], sizes = [8, 32], strides = [1, 1]} : vector<8x96xf32> to vector<8x32xf32>
    %91 = arith.mulf %87, %90 : vector<8x32xf32>
    %92 = arith.addf %89, %91 : vector<8x32xf32>
    %93 = math.tanh %92 : vector<8x32xf32>
    %cst_18 = arith.constant 1.000000e+00 : f32
    %94 = vector.broadcast %cst_18 : f32 to vector<8x32xf32>
    %95 = arith.subf %94, %88 : vector<8x32xf32>
    %96 = arith.mulf %95, %93 : vector<8x32xf32>
    %97 = arith.mulf %88, %68 : vector<8x32xf32>
    %98 = arith.addf %96, %97 : vector<8x32xf32>
    %c3_i32 = arith.constant 3 : i32
    %99 = vector.broadcast %c3_i32 : i32 to vector<8x1xi32>
    %100 = arith.cmpi eq, %9, %99 : vector<8x1xi32>
    %101 = vector.shape_cast %100 : vector<8x1xi1> to vector<8x1xi1>
    %102 = vector.broadcast %101 : vector<8x1xi1> to vector<8x32xi1>
    %103 = arith.select %102, %98, %73 : vector<8x32xi1>, vector<8x32xf32>
    %104 = vector.extract_strided_slice %8 {offsets = [24, 0], sizes = [8, 96], strides = [1, 1]} : vector<48x96xf32> to vector<8x96xf32>
    %105 = arith.truncf %98 : vector<8x32xf32> to vector<8x32xbf16>
    %cst_19 = arith.constant dense<0.000000e+00> : vector<8x96xf32>
    %106 = tpu.matmul %105, %10, %cst_19 {dimension_numbers = #tpu.dot_dimension_numbers<[1], [0], [0], [1], [0, 0, 1, 1], [], []>} : vector<8x32xbf16>, vector<32x96xbf16>, vector<8x96xf32> -> vector<8x96xf32>
    %107 = vector.broadcast %11 : vector<1x96xf32> to vector<8x96xf32>
    %108 = arith.addf %106, %107 : vector<8x96xf32>
    %109 = vector.extract_strided_slice %104 {offsets = [0, 0], sizes = [8, 64], strides = [1, 1]} : vector<8x96xf32> to vector<8x64xf32>
    %110 = vector.extract_strided_slice %108 {offsets = [0, 0], sizes = [8, 64], strides = [1, 1]} : vector<8x96xf32> to vector<8x64xf32>
    %111 = arith.addf %109, %110 : vector<8x64xf32>
    %112 = arith.negf %111 : vector<8x64xf32>
    %113 = math.exp %112 : vector<8x64xf32>
    %cst_20 = arith.constant 1.000000e+00 : f32
    %114 = vector.broadcast %cst_20 : f32 to vector<8x64xf32>
    %115 = arith.addf %114, %113 : vector<8x64xf32>
    %116 = arith.divf %114, %115 : vector<8x64xf32>
    %117 = vector.extract_strided_slice %116 {offsets = [0, 0], sizes = [8, 32], strides = [1, 1]} : vector<8x64xf32> to vector<8x32xf32>
    %118 = vector.extract_strided_slice %116 {offsets = [0, 32], sizes = [8, 32], strides = [1, 1]} : vector<8x64xf32> to vector<8x32xf32>
    %119 = vector.extract_strided_slice %104 {offsets = [0, 64], sizes = [8, 32], strides = [1, 1]} : vector<8x96xf32> to vector<8x32xf32>
    %120 = vector.extract_strided_slice %108 {offsets = [0, 64], sizes = [8, 32], strides = [1, 1]} : vector<8x96xf32> to vector<8x32xf32>
    %121 = arith.mulf %117, %120 : vector<8x32xf32>
    %122 = arith.addf %119, %121 : vector<8x32xf32>
    %123 = math.tanh %122 : vector<8x32xf32>
    %cst_21 = arith.constant 1.000000e+00 : f32
    %124 = vector.broadcast %cst_21 : f32 to vector<8x32xf32>
    %125 = arith.subf %124, %118 : vector<8x32xf32>
    %126 = arith.mulf %125, %123 : vector<8x32xf32>
    %127 = arith.mulf %118, %98 : vector<8x32xf32>
    %128 = arith.addf %126, %127 : vector<8x32xf32>
    %c4_i32 = arith.constant 4 : i32
    %129 = vector.broadcast %c4_i32 : i32 to vector<8x1xi32>
    %130 = arith.cmpi eq, %9, %129 : vector<8x1xi32>
    %131 = vector.shape_cast %130 : vector<8x1xi1> to vector<8x1xi1>
    %132 = vector.broadcast %131 : vector<8x1xi1> to vector<8x32xi1>
    %133 = arith.select %132, %128, %103 : vector<8x32xi1>, vector<8x32xf32>
    %134 = vector.extract_strided_slice %8 {offsets = [32, 0], sizes = [8, 96], strides = [1, 1]} : vector<48x96xf32> to vector<8x96xf32>
    %135 = arith.truncf %128 : vector<8x32xf32> to vector<8x32xbf16>
    %cst_22 = arith.constant dense<0.000000e+00> : vector<8x96xf32>
    %136 = tpu.matmul %135, %10, %cst_22 {dimension_numbers = #tpu.dot_dimension_numbers<[1], [0], [0], [1], [0, 0, 1, 1], [], []>} : vector<8x32xbf16>, vector<32x96xbf16>, vector<8x96xf32> -> vector<8x96xf32>
    %137 = vector.broadcast %11 : vector<1x96xf32> to vector<8x96xf32>
    %138 = arith.addf %136, %137 : vector<8x96xf32>
    %139 = vector.extract_strided_slice %134 {offsets = [0, 0], sizes = [8, 64], strides = [1, 1]} : vector<8x96xf32> to vector<8x64xf32>
    %140 = vector.extract_strided_slice %138 {offsets = [0, 0], sizes = [8, 64], strides = [1, 1]} : vector<8x96xf32> to vector<8x64xf32>
    %141 = arith.addf %139, %140 : vector<8x64xf32>
    %142 = arith.negf %141 : vector<8x64xf32>
    %143 = math.exp %142 : vector<8x64xf32>
    %cst_23 = arith.constant 1.000000e+00 : f32
    %144 = vector.broadcast %cst_23 : f32 to vector<8x64xf32>
    %145 = arith.addf %144, %143 : vector<8x64xf32>
    %146 = arith.divf %144, %145 : vector<8x64xf32>
    %147 = vector.extract_strided_slice %146 {offsets = [0, 0], sizes = [8, 32], strides = [1, 1]} : vector<8x64xf32> to vector<8x32xf32>
    %148 = vector.extract_strided_slice %146 {offsets = [0, 32], sizes = [8, 32], strides = [1, 1]} : vector<8x64xf32> to vector<8x32xf32>
    %149 = vector.extract_strided_slice %134 {offsets = [0, 64], sizes = [8, 32], strides = [1, 1]} : vector<8x96xf32> to vector<8x32xf32>
    %150 = vector.extract_strided_slice %138 {offsets = [0, 64], sizes = [8, 32], strides = [1, 1]} : vector<8x96xf32> to vector<8x32xf32>
    %151 = arith.mulf %147, %150 : vector<8x32xf32>
    %152 = arith.addf %149, %151 : vector<8x32xf32>
    %153 = math.tanh %152 : vector<8x32xf32>
    %cst_24 = arith.constant 1.000000e+00 : f32
    %154 = vector.broadcast %cst_24 : f32 to vector<8x32xf32>
    %155 = arith.subf %154, %148 : vector<8x32xf32>
    %156 = arith.mulf %155, %153 : vector<8x32xf32>
    %157 = arith.mulf %148, %128 : vector<8x32xf32>
    %158 = arith.addf %156, %157 : vector<8x32xf32>
    %c5_i32 = arith.constant 5 : i32
    %159 = vector.broadcast %c5_i32 : i32 to vector<8x1xi32>
    %160 = arith.cmpi eq, %9, %159 : vector<8x1xi32>
    %161 = vector.shape_cast %160 : vector<8x1xi1> to vector<8x1xi1>
    %162 = vector.broadcast %161 : vector<8x1xi1> to vector<8x32xi1>
    %163 = arith.select %162, %158, %133 : vector<8x32xi1>, vector<8x32xf32>
    %164 = vector.extract_strided_slice %8 {offsets = [40, 0], sizes = [8, 96], strides = [1, 1]} : vector<48x96xf32> to vector<8x96xf32>
    %165 = arith.truncf %158 : vector<8x32xf32> to vector<8x32xbf16>
    %cst_25 = arith.constant dense<0.000000e+00> : vector<8x96xf32>
    %166 = tpu.matmul %165, %10, %cst_25 {dimension_numbers = #tpu.dot_dimension_numbers<[1], [0], [0], [1], [0, 0, 1, 1], [], []>} : vector<8x32xbf16>, vector<32x96xbf16>, vector<8x96xf32> -> vector<8x96xf32>
    %167 = vector.broadcast %11 : vector<1x96xf32> to vector<8x96xf32>
    %168 = arith.addf %166, %167 : vector<8x96xf32>
    %169 = vector.extract_strided_slice %164 {offsets = [0, 0], sizes = [8, 64], strides = [1, 1]} : vector<8x96xf32> to vector<8x64xf32>
    %170 = vector.extract_strided_slice %168 {offsets = [0, 0], sizes = [8, 64], strides = [1, 1]} : vector<8x96xf32> to vector<8x64xf32>
    %171 = arith.addf %169, %170 : vector<8x64xf32>
    %172 = arith.negf %171 : vector<8x64xf32>
    %173 = math.exp %172 : vector<8x64xf32>
    %cst_26 = arith.constant 1.000000e+00 : f32
    %174 = vector.broadcast %cst_26 : f32 to vector<8x64xf32>
    %175 = arith.addf %174, %173 : vector<8x64xf32>
    %176 = arith.divf %174, %175 : vector<8x64xf32>
    %177 = vector.extract_strided_slice %176 {offsets = [0, 0], sizes = [8, 32], strides = [1, 1]} : vector<8x64xf32> to vector<8x32xf32>
    %178 = vector.extract_strided_slice %176 {offsets = [0, 32], sizes = [8, 32], strides = [1, 1]} : vector<8x64xf32> to vector<8x32xf32>
    %179 = vector.extract_strided_slice %164 {offsets = [0, 64], sizes = [8, 32], strides = [1, 1]} : vector<8x96xf32> to vector<8x32xf32>
    %180 = vector.extract_strided_slice %168 {offsets = [0, 64], sizes = [8, 32], strides = [1, 1]} : vector<8x96xf32> to vector<8x32xf32>
    %181 = arith.mulf %177, %180 : vector<8x32xf32>
    %182 = arith.addf %179, %181 : vector<8x32xf32>
    %183 = math.tanh %182 : vector<8x32xf32>
    %cst_27 = arith.constant 1.000000e+00 : f32
    %184 = vector.broadcast %cst_27 : f32 to vector<8x32xf32>
    %185 = arith.subf %184, %178 : vector<8x32xf32>
    %186 = arith.mulf %185, %183 : vector<8x32xf32>
    %187 = arith.mulf %178, %158 : vector<8x32xf32>
    %188 = arith.addf %186, %187 : vector<8x32xf32>
    %c6_i32 = arith.constant 6 : i32
    %189 = vector.broadcast %c6_i32 : i32 to vector<8x1xi32>
    %190 = arith.cmpi eq, %9, %189 : vector<8x1xi32>
    %191 = vector.shape_cast %190 : vector<8x1xi1> to vector<8x1xi1>
    %192 = vector.broadcast %191 : vector<8x1xi1> to vector<8x32xi1>
    %193 = arith.select %192, %188, %163 : vector<8x32xi1>, vector<8x32xf32>
    %194 = vector.extract_strided_slice %0 {offsets = [48, 0], sizes = [10, 32], strides = [1, 1]} : vector<60x32xbf16> to vector<10x32xbf16>
    %c64 = arith.constant 64 : index
    %c0_28 = arith.constant 0 : index
    %195 = vector.load %arg2[%c64, %c0_28] : memref<352x96xbf16, #tpu.memory_space<vmem>>, vector<32x96xbf16>
    %cst_29 = arith.constant dense<0.000000e+00> : vector<10x96xf32>
    %196 = tpu.matmul %194, %195, %cst_29 {dimension_numbers = #tpu.dot_dimension_numbers<[1], [0], [0], [1], [0, 0, 1, 1], [], []>} : vector<10x32xbf16>, vector<32x96xbf16>, vector<10x96xf32> -> vector<10x96xf32>
    %197 = vector.extract_strided_slice %2 {offsets = [2, 0], sizes = [1, 96], strides = [1, 1]} : vector<10x96xf32> to vector<1x96xf32>
    %198 = vector.broadcast %197 : vector<1x96xf32> to vector<10x96xf32>
    %199 = arith.addf %196, %198 : vector<10x96xf32>
    %200 = vector.extract_strided_slice %1 {offsets = [8, 0], sizes = [2, 1], strides = [1, 1]} : vector<10x1xi32> to vector<2x1xi32>
    %c96 = arith.constant 96 : index
    %c0_30 = arith.constant 0 : index
    %201 = vector.load %arg2[%c96, %c0_30] : memref<352x96xbf16, #tpu.memory_space<vmem>>, vector<32x96xbf16>
    %202 = vector.extract_strided_slice %2 {offsets = [3, 0], sizes = [1, 96], strides = [1, 1]} : vector<10x96xf32> to vector<1x96xf32>
    %cst_31 = arith.constant 0.000000e+00 : f32
    %203 = vector.broadcast %cst_31 : f32 to vector<2x32xf32>
    %cst_32 = arith.constant 0.000000e+00 : f32
    %204 = vector.broadcast %cst_32 : f32 to vector<2x32xf32>
    %205 = vector.extract_strided_slice %199 {offsets = [0, 0], sizes = [2, 96], strides = [1, 1]} : vector<10x96xf32> to vector<2x96xf32>
    %206 = arith.truncf %203 : vector<2x32xf32> to vector<2x32xbf16>
    %cst_33 = arith.constant dense<0.000000e+00> : vector<2x96xf32>
    %207 = tpu.matmul %206, %201, %cst_33 {dimension_numbers = #tpu.dot_dimension_numbers<[1], [0], [0], [1], [0, 0, 1, 1], [], []>} : vector<2x32xbf16>, vector<32x96xbf16>, vector<2x96xf32> -> vector<2x96xf32>
    %208 = vector.broadcast %202 : vector<1x96xf32> to vector<2x96xf32>
    %209 = arith.addf %207, %208 : vector<2x96xf32>
    %210 = vector.extract_strided_slice %205 {offsets = [0, 0], sizes = [2, 64], strides = [1, 1]} : vector<2x96xf32> to vector<2x64xf32>
    %211 = vector.extract_strided_slice %209 {offsets = [0, 0], sizes = [2, 64], strides = [1, 1]} : vector<2x96xf32> to vector<2x64xf32>
    %212 = arith.addf %210, %211 : vector<2x64xf32>
    %213 = arith.negf %212 : vector<2x64xf32>
    %214 = math.exp %213 : vector<2x64xf32>
    %cst_34 = arith.constant 1.000000e+00 : f32
    %215 = vector.broadcast %cst_34 : f32 to vector<2x64xf32>
    %216 = arith.addf %215, %214 : vector<2x64xf32>
    %217 = arith.divf %215, %216 : vector<2x64xf32>
    %218 = vector.extract_strided_slice %217 {offsets = [0, 0], sizes = [2, 32], strides = [1, 1]} : vector<2x64xf32> to vector<2x32xf32>
    %219 = vector.extract_strided_slice %217 {offsets = [0, 32], sizes = [2, 32], strides = [1, 1]} : vector<2x64xf32> to vector<2x32xf32>
    %220 = vector.extract_strided_slice %205 {offsets = [0, 64], sizes = [2, 32], strides = [1, 1]} : vector<2x96xf32> to vector<2x32xf32>
    %221 = vector.extract_strided_slice %209 {offsets = [0, 64], sizes = [2, 32], strides = [1, 1]} : vector<2x96xf32> to vector<2x32xf32>
    %222 = arith.mulf %218, %221 : vector<2x32xf32>
    %223 = arith.addf %220, %222 : vector<2x32xf32>
    %224 = math.tanh %223 : vector<2x32xf32>
    %cst_35 = arith.constant 1.000000e+00 : f32
    %225 = vector.broadcast %cst_35 : f32 to vector<2x32xf32>
    %226 = arith.subf %225, %219 : vector<2x32xf32>
    %227 = arith.mulf %226, %224 : vector<2x32xf32>
    %228 = arith.mulf %219, %203 : vector<2x32xf32>
    %229 = arith.addf %227, %228 : vector<2x32xf32>
    %c1_i32_36 = arith.constant 1 : i32
    %230 = vector.broadcast %c1_i32_36 : i32 to vector<2x1xi32>
    %231 = arith.cmpi eq, %200, %230 : vector<2x1xi32>
    %232 = vector.shape_cast %231 : vector<2x1xi1> to vector<2x1xi1>
    %233 = vector.broadcast %232 : vector<2x1xi1> to vector<2x32xi1>
    %234 = arith.select %233, %229, %204 : vector<2x32xi1>, vector<2x32xf32>
    %235 = vector.extract_strided_slice %199 {offsets = [2, 0], sizes = [2, 96], strides = [1, 1]} : vector<10x96xf32> to vector<2x96xf32>
    %236 = arith.truncf %229 : vector<2x32xf32> to vector<2x32xbf16>
    %cst_37 = arith.constant dense<0.000000e+00> : vector<2x96xf32>
    %237 = tpu.matmul %236, %201, %cst_37 {dimension_numbers = #tpu.dot_dimension_numbers<[1], [0], [0], [1], [0, 0, 1, 1], [], []>} : vector<2x32xbf16>, vector<32x96xbf16>, vector<2x96xf32> -> vector<2x96xf32>
    %238 = vector.broadcast %202 : vector<1x96xf32> to vector<2x96xf32>
    %239 = arith.addf %237, %238 : vector<2x96xf32>
    %240 = vector.extract_strided_slice %235 {offsets = [0, 0], sizes = [2, 64], strides = [1, 1]} : vector<2x96xf32> to vector<2x64xf32>
    %241 = vector.extract_strided_slice %239 {offsets = [0, 0], sizes = [2, 64], strides = [1, 1]} : vector<2x96xf32> to vector<2x64xf32>
    %242 = arith.addf %240, %241 : vector<2x64xf32>
    %243 = arith.negf %242 : vector<2x64xf32>
    %244 = math.exp %243 : vector<2x64xf32>
    %cst_38 = arith.constant 1.000000e+00 : f32
    %245 = vector.broadcast %cst_38 : f32 to vector<2x64xf32>
    %246 = arith.addf %245, %244 : vector<2x64xf32>
    %247 = arith.divf %245, %246 : vector<2x64xf32>
    %248 = vector.extract_strided_slice %247 {offsets = [0, 0], sizes = [2, 32], strides = [1, 1]} : vector<2x64xf32> to vector<2x32xf32>
    %249 = vector.extract_strided_slice %247 {offsets = [0, 32], sizes = [2, 32], strides = [1, 1]} : vector<2x64xf32> to vector<2x32xf32>
    %250 = vector.extract_strided_slice %235 {offsets = [0, 64], sizes = [2, 32], strides = [1, 1]} : vector<2x96xf32> to vector<2x32xf32>
    %251 = vector.extract_strided_slice %239 {offsets = [0, 64], sizes = [2, 32], strides = [1, 1]} : vector<2x96xf32> to vector<2x32xf32>
    %252 = arith.mulf %248, %251 : vector<2x32xf32>
    %253 = arith.addf %250, %252 : vector<2x32xf32>
    %254 = math.tanh %253 : vector<2x32xf32>
    %cst_39 = arith.constant 1.000000e+00 : f32
    %255 = vector.broadcast %cst_39 : f32 to vector<2x32xf32>
    %256 = arith.subf %255, %249 : vector<2x32xf32>
    %257 = arith.mulf %256, %254 : vector<2x32xf32>
    %258 = arith.mulf %249, %229 : vector<2x32xf32>
    %259 = arith.addf %257, %258 : vector<2x32xf32>
    %c2_i32_40 = arith.constant 2 : i32
    %260 = vector.broadcast %c2_i32_40 : i32 to vector<2x1xi32>
    %261 = arith.cmpi eq, %200, %260 : vector<2x1xi32>
    %262 = vector.shape_cast %261 : vector<2x1xi1> to vector<2x1xi1>
    %263 = vector.broadcast %262 : vector<2x1xi1> to vector<2x32xi1>
    %264 = arith.select %263, %259, %234 : vector<2x32xi1>, vector<2x32xf32>
    %265 = vector.extract_strided_slice %199 {offsets = [4, 0], sizes = [2, 96], strides = [1, 1]} : vector<10x96xf32> to vector<2x96xf32>
    %266 = arith.truncf %259 : vector<2x32xf32> to vector<2x32xbf16>
    %cst_41 = arith.constant dense<0.000000e+00> : vector<2x96xf32>
    %267 = tpu.matmul %266, %201, %cst_41 {dimension_numbers = #tpu.dot_dimension_numbers<[1], [0], [0], [1], [0, 0, 1, 1], [], []>} : vector<2x32xbf16>, vector<32x96xbf16>, vector<2x96xf32> -> vector<2x96xf32>
    %268 = vector.broadcast %202 : vector<1x96xf32> to vector<2x96xf32>
    %269 = arith.addf %267, %268 : vector<2x96xf32>
    %270 = vector.extract_strided_slice %265 {offsets = [0, 0], sizes = [2, 64], strides = [1, 1]} : vector<2x96xf32> to vector<2x64xf32>
    %271 = vector.extract_strided_slice %269 {offsets = [0, 0], sizes = [2, 64], strides = [1, 1]} : vector<2x96xf32> to vector<2x64xf32>
    %272 = arith.addf %270, %271 : vector<2x64xf32>
    %273 = arith.negf %272 : vector<2x64xf32>
    %274 = math.exp %273 : vector<2x64xf32>
    %cst_42 = arith.constant 1.000000e+00 : f32
    %275 = vector.broadcast %cst_42 : f32 to vector<2x64xf32>
    %276 = arith.addf %275, %274 : vector<2x64xf32>
    %277 = arith.divf %275, %276 : vector<2x64xf32>
    %278 = vector.extract_strided_slice %277 {offsets = [0, 0], sizes = [2, 32], strides = [1, 1]} : vector<2x64xf32> to vector<2x32xf32>
    %279 = vector.extract_strided_slice %277 {offsets = [0, 32], sizes = [2, 32], strides = [1, 1]} : vector<2x64xf32> to vector<2x32xf32>
    %280 = vector.extract_strided_slice %265 {offsets = [0, 64], sizes = [2, 32], strides = [1, 1]} : vector<2x96xf32> to vector<2x32xf32>
    %281 = vector.extract_strided_slice %269 {offsets = [0, 64], sizes = [2, 32], strides = [1, 1]} : vector<2x96xf32> to vector<2x32xf32>
    %282 = arith.mulf %278, %281 : vector<2x32xf32>
    %283 = arith.addf %280, %282 : vector<2x32xf32>
    %284 = math.tanh %283 : vector<2x32xf32>
    %cst_43 = arith.constant 1.000000e+00 : f32
    %285 = vector.broadcast %cst_43 : f32 to vector<2x32xf32>
    %286 = arith.subf %285, %279 : vector<2x32xf32>
    %287 = arith.mulf %286, %284 : vector<2x32xf32>
    %288 = arith.mulf %279, %259 : vector<2x32xf32>
    %289 = arith.addf %287, %288 : vector<2x32xf32>
    %c3_i32_44 = arith.constant 3 : i32
    %290 = vector.broadcast %c3_i32_44 : i32 to vector<2x1xi32>
    %291 = arith.cmpi eq, %200, %290 : vector<2x1xi32>
    %292 = vector.shape_cast %291 : vector<2x1xi1> to vector<2x1xi1>
    %293 = vector.broadcast %292 : vector<2x1xi1> to vector<2x32xi1>
    %294 = arith.select %293, %289, %264 : vector<2x32xi1>, vector<2x32xf32>
    %295 = vector.extract_strided_slice %199 {offsets = [6, 0], sizes = [2, 96], strides = [1, 1]} : vector<10x96xf32> to vector<2x96xf32>
    %296 = arith.truncf %289 : vector<2x32xf32> to vector<2x32xbf16>
    %cst_45 = arith.constant dense<0.000000e+00> : vector<2x96xf32>
    %297 = tpu.matmul %296, %201, %cst_45 {dimension_numbers = #tpu.dot_dimension_numbers<[1], [0], [0], [1], [0, 0, 1, 1], [], []>} : vector<2x32xbf16>, vector<32x96xbf16>, vector<2x96xf32> -> vector<2x96xf32>
    %298 = vector.broadcast %202 : vector<1x96xf32> to vector<2x96xf32>
    %299 = arith.addf %297, %298 : vector<2x96xf32>
    %300 = vector.extract_strided_slice %295 {offsets = [0, 0], sizes = [2, 64], strides = [1, 1]} : vector<2x96xf32> to vector<2x64xf32>
    %301 = vector.extract_strided_slice %299 {offsets = [0, 0], sizes = [2, 64], strides = [1, 1]} : vector<2x96xf32> to vector<2x64xf32>
    %302 = arith.addf %300, %301 : vector<2x64xf32>
    %303 = arith.negf %302 : vector<2x64xf32>
    %304 = math.exp %303 : vector<2x64xf32>
    %cst_46 = arith.constant 1.000000e+00 : f32
    %305 = vector.broadcast %cst_46 : f32 to vector<2x64xf32>
    %306 = arith.addf %305, %304 : vector<2x64xf32>
    %307 = arith.divf %305, %306 : vector<2x64xf32>
    %308 = vector.extract_strided_slice %307 {offsets = [0, 0], sizes = [2, 32], strides = [1, 1]} : vector<2x64xf32> to vector<2x32xf32>
    %309 = vector.extract_strided_slice %307 {offsets = [0, 32], sizes = [2, 32], strides = [1, 1]} : vector<2x64xf32> to vector<2x32xf32>
    %310 = vector.extract_strided_slice %295 {offsets = [0, 64], sizes = [2, 32], strides = [1, 1]} : vector<2x96xf32> to vector<2x32xf32>
    %311 = vector.extract_strided_slice %299 {offsets = [0, 64], sizes = [2, 32], strides = [1, 1]} : vector<2x96xf32> to vector<2x32xf32>
    %312 = arith.mulf %308, %311 : vector<2x32xf32>
    %313 = arith.addf %310, %312 : vector<2x32xf32>
    %314 = math.tanh %313 : vector<2x32xf32>
    %cst_47 = arith.constant 1.000000e+00 : f32
    %315 = vector.broadcast %cst_47 : f32 to vector<2x32xf32>
    %316 = arith.subf %315, %309 : vector<2x32xf32>
    %317 = arith.mulf %316, %314 : vector<2x32xf32>
    %318 = arith.mulf %309, %289 : vector<2x32xf32>
    %319 = arith.addf %317, %318 : vector<2x32xf32>
    %c4_i32_48 = arith.constant 4 : i32
    %320 = vector.broadcast %c4_i32_48 : i32 to vector<2x1xi32>
    %321 = arith.cmpi eq, %200, %320 : vector<2x1xi32>
    %322 = vector.shape_cast %321 : vector<2x1xi1> to vector<2x1xi1>
    %323 = vector.broadcast %322 : vector<2x1xi1> to vector<2x32xi1>
    %324 = arith.select %323, %319, %294 : vector<2x32xi1>, vector<2x32xf32>
    %325 = vector.extract_strided_slice %199 {offsets = [8, 0], sizes = [2, 96], strides = [1, 1]} : vector<10x96xf32> to vector<2x96xf32>
    %326 = arith.truncf %319 : vector<2x32xf32> to vector<2x32xbf16>
    %cst_49 = arith.constant dense<0.000000e+00> : vector<2x96xf32>
    %327 = tpu.matmul %326, %201, %cst_49 {dimension_numbers = #tpu.dot_dimension_numbers<[1], [0], [0], [1], [0, 0, 1, 1], [], []>} : vector<2x32xbf16>, vector<32x96xbf16>, vector<2x96xf32> -> vector<2x96xf32>
    %328 = vector.broadcast %202 : vector<1x96xf32> to vector<2x96xf32>
    %329 = arith.addf %327, %328 : vector<2x96xf32>
    %330 = vector.extract_strided_slice %325 {offsets = [0, 0], sizes = [2, 64], strides = [1, 1]} : vector<2x96xf32> to vector<2x64xf32>
    %331 = vector.extract_strided_slice %329 {offsets = [0, 0], sizes = [2, 64], strides = [1, 1]} : vector<2x96xf32> to vector<2x64xf32>
    %332 = arith.addf %330, %331 : vector<2x64xf32>
    %333 = arith.negf %332 : vector<2x64xf32>
    %334 = math.exp %333 : vector<2x64xf32>
    %cst_50 = arith.constant 1.000000e+00 : f32
    %335 = vector.broadcast %cst_50 : f32 to vector<2x64xf32>
    %336 = arith.addf %335, %334 : vector<2x64xf32>
    %337 = arith.divf %335, %336 : vector<2x64xf32>
    %338 = vector.extract_strided_slice %337 {offsets = [0, 0], sizes = [2, 32], strides = [1, 1]} : vector<2x64xf32> to vector<2x32xf32>
    %339 = vector.extract_strided_slice %337 {offsets = [0, 32], sizes = [2, 32], strides = [1, 1]} : vector<2x64xf32> to vector<2x32xf32>
    %340 = vector.extract_strided_slice %325 {offsets = [0, 64], sizes = [2, 32], strides = [1, 1]} : vector<2x96xf32> to vector<2x32xf32>
    %341 = vector.extract_strided_slice %329 {offsets = [0, 64], sizes = [2, 32], strides = [1, 1]} : vector<2x96xf32> to vector<2x32xf32>
    %342 = arith.mulf %338, %341 : vector<2x32xf32>
    %343 = arith.addf %340, %342 : vector<2x32xf32>
    %344 = math.tanh %343 : vector<2x32xf32>
    %cst_51 = arith.constant 1.000000e+00 : f32
    %345 = vector.broadcast %cst_51 : f32 to vector<2x32xf32>
    %346 = arith.subf %345, %339 : vector<2x32xf32>
    %347 = arith.mulf %346, %344 : vector<2x32xf32>
    %348 = arith.mulf %339, %319 : vector<2x32xf32>
    %349 = arith.addf %347, %348 : vector<2x32xf32>
    %c5_i32_52 = arith.constant 5 : i32
    %350 = vector.broadcast %c5_i32_52 : i32 to vector<2x1xi32>
    %351 = arith.cmpi eq, %200, %350 : vector<2x1xi32>
    %352 = vector.shape_cast %351 : vector<2x1xi1> to vector<2x1xi1>
    %353 = vector.broadcast %352 : vector<2x1xi1> to vector<2x32xi1>
    %354 = arith.select %353, %349, %324 : vector<2x32xi1>, vector<2x32xf32>
    %c128 = arith.constant 128 : index
    %c0_53 = arith.constant 0 : index
    %355 = vector.load %arg2[%c128, %c0_53] : memref<352x96xbf16, #tpu.memory_space<vmem>>, vector<32x96xbf16>
    %c160 = arith.constant 160 : index
    %c0_54 = arith.constant 0 : index
    %356 = vector.load %arg2[%c160, %c0_54] : memref<352x96xbf16, #tpu.memory_space<vmem>>, vector<32x96xbf16>
    %357 = vector.extract_strided_slice %2 {offsets = [4, 0], sizes = [1, 96], strides = [1, 1]} : vector<10x96xf32> to vector<1x96xf32>
    %358 = vector.extract_strided_slice %2 {offsets = [5, 0], sizes = [1, 96], strides = [1, 1]} : vector<10x96xf32> to vector<1x96xf32>
    %c192 = arith.constant 192 : index
    %c0_55 = arith.constant 0 : index
    %359 = vector.load %arg2[%c192, %c0_55] : memref<352x96xbf16, #tpu.memory_space<vmem>>, vector<32x96xbf16>
    %c224 = arith.constant 224 : index
    %c0_56 = arith.constant 0 : index
    %360 = vector.load %arg2[%c224, %c0_56] : memref<352x96xbf16, #tpu.memory_space<vmem>>, vector<32x96xbf16>
    %361 = vector.extract_strided_slice %2 {offsets = [6, 0], sizes = [1, 96], strides = [1, 1]} : vector<10x96xf32> to vector<1x96xf32>
    %362 = vector.extract_strided_slice %2 {offsets = [7, 0], sizes = [1, 96], strides = [1, 1]} : vector<10x96xf32> to vector<1x96xf32>
    %c0_57 = arith.constant 0 : index
    %c0_58 = arith.constant 0 : index
    %363 = vector.load %arg4[%c0_57, %c0_58] : memref<128x32xbf16, #tpu.memory_space<vmem>>, vector<128x32xbf16>
    %c0_59 = arith.constant 0 : index
    %c0_60 = arith.constant 0 : index
    %364 = vector.load %arg5[%c0_59, %c0_60] : memref<3x32xf32, #tpu.memory_space<vmem>>, vector<3x32xf32>
    %365 = vector.extract_strided_slice %364 {offsets = [0, 0], sizes = [1, 32], strides = [1, 1]} : vector<3x32xf32> to vector<1x32xf32>
    %366 = vector.extract_strided_slice %364 {offsets = [1, 0], sizes = [1, 32], strides = [1, 1]} : vector<3x32xf32> to vector<1x32xf32>
    %367 = vector.extract_strided_slice %364 {offsets = [2, 0], sizes = [1, 1], strides = [1, 1]} : vector<3x32xf32> to vector<1x1xf32>
    %368 = arith.truncf %193 : vector<8x32xf32> to vector<8x32xbf16>
    %369 = tpu.concatenate %354, %354, %354, %354 in 0 : vector<2x32xf32>, vector<2x32xf32>, vector<2x32xf32>, vector<2x32xf32> -> vector<8x32xf32>
    %370 = arith.mulf %193, %369 : vector<8x32xf32>
    %371 = arith.subf %193, %369 : vector<8x32xf32>
    %372 = math.absf %371 : vector<8x32xf32>
    %373 = arith.truncf %370 : vector<8x32xf32> to vector<8x32xbf16>
    %374 = vector.extract_strided_slice %363 {offsets = [0, 0], sizes = [32, 32], strides = [1, 1]} : vector<128x32xbf16> to vector<32x32xbf16>
    %cst_61 = arith.constant dense<0.000000e+00> : vector<8x32xf32>
    %375 = tpu.matmul %373, %374, %cst_61 {dimension_numbers = #tpu.dot_dimension_numbers<[1], [0], [0], [1], [0, 0, 1, 1], [], []>} : vector<8x32xbf16>, vector<32x32xbf16>, vector<8x32xf32> -> vector<8x32xf32>
    %376 = arith.truncf %372 : vector<8x32xf32> to vector<8x32xbf16>
    %377 = vector.extract_strided_slice %363 {offsets = [64, 0], sizes = [32, 32], strides = [1, 1]} : vector<128x32xbf16> to vector<32x32xbf16>
    %cst_62 = arith.constant dense<0.000000e+00> : vector<8x32xf32>
    %378 = tpu.matmul %376, %377, %cst_62 {dimension_numbers = #tpu.dot_dimension_numbers<[1], [0], [0], [1], [0, 0, 1, 1], [], []>} : vector<8x32xbf16>, vector<32x32xbf16>, vector<8x32xf32> -> vector<8x32xf32>
    %379 = arith.addf %375, %378 : vector<8x32xf32>
    %380 = vector.broadcast %365 : vector<1x32xf32> to vector<8x32xf32>
    %381 = arith.addf %379, %380 : vector<8x32xf32>
    %cst_63 = arith.constant dense<0.000000e+00> : vector<8x96xf32>
    %382 = tpu.matmul %368, %355, %cst_63 {dimension_numbers = #tpu.dot_dimension_numbers<[1], [0], [0], [1], [0, 0, 1, 1], [], []>} : vector<8x32xbf16>, vector<32x96xbf16>, vector<8x96xf32> -> vector<8x96xf32>
    %383 = vector.broadcast %357 : vector<1x96xf32> to vector<8x96xf32>
    %384 = arith.addf %382, %383 : vector<8x96xf32>
    %385 = tpu.concatenate %354, %354, %354, %354 in 0 : vector<2x32xf32>, vector<2x32xf32>, vector<2x32xf32>, vector<2x32xf32> -> vector<8x32xf32>
    %386 = arith.mulf %193, %385 : vector<8x32xf32>
    %387 = arith.subf %193, %385 : vector<8x32xf32>
    %388 = math.absf %387 : vector<8x32xf32>
    %389 = arith.truncf %386 : vector<8x32xf32> to vector<8x32xbf16>
    %390 = vector.extract_strided_slice %363 {offsets = [32, 0], sizes = [32, 32], strides = [1, 1]} : vector<128x32xbf16> to vector<32x32xbf16>
    %cst_64 = arith.constant dense<0.000000e+00> : vector<8x32xf32>
    %391 = tpu.matmul %389, %390, %cst_64 {dimension_numbers = #tpu.dot_dimension_numbers<[1], [0], [0], [1], [0, 0, 1, 1], [], []>} : vector<8x32xbf16>, vector<32x32xbf16>, vector<8x32xf32> -> vector<8x32xf32>
    %392 = arith.addf %381, %391 : vector<8x32xf32>
    %393 = arith.truncf %388 : vector<8x32xf32> to vector<8x32xbf16>
    %394 = vector.extract_strided_slice %363 {offsets = [96, 0], sizes = [32, 32], strides = [1, 1]} : vector<128x32xbf16> to vector<32x32xbf16>
    %cst_65 = arith.constant dense<0.000000e+00> : vector<8x32xf32>
    %395 = tpu.matmul %393, %394, %cst_65 {dimension_numbers = #tpu.dot_dimension_numbers<[1], [0], [0], [1], [0, 0, 1, 1], [], []>} : vector<8x32xbf16>, vector<32x32xbf16>, vector<8x32xf32> -> vector<8x32xf32>
    %396 = arith.addf %392, %395 : vector<8x32xf32>
    %397 = math.tanh %396 : vector<8x32xf32>
    %398 = vector.broadcast %366 : vector<1x32xf32> to vector<8x32xf32>
    %399 = arith.mulf %397, %398 : vector<8x32xf32>
    %cst_66 = arith.constant dense<0.000000e+00> : vector<8xf32>
    %400 = vector.multi_reduction <add>, %399, %cst_66 [1] : vector<8x32xf32> to vector<8xf32>
    %401 = vector.shape_cast %400 : vector<8xf32> to vector<8x1xf32>
    %402 = vector.broadcast %367 : vector<1x1xf32> to vector<8x1xf32>
    %403 = arith.addf %401, %402 : vector<8x1xf32>
    %404 = arith.negf %403 : vector<8x1xf32>
    %405 = math.exp %404 : vector<8x1xf32>
    %cst_67 = arith.constant 1.000000e+00 : f32
    %406 = vector.broadcast %cst_67 : f32 to vector<8x1xf32>
    %407 = arith.addf %406, %405 : vector<8x1xf32>
    %408 = arith.divf %406, %407 : vector<8x1xf32>
    %cst_68 = arith.constant 0.000000e+00 : f32
    %409 = vector.broadcast %cst_68 : f32 to vector<2x32xf32>
    %410 = vector.extract_strided_slice %408 {offsets = [0, 0], sizes = [2, 1], strides = [1, 1]} : vector<8x1xf32> to vector<2x1xf32>
    %411 = vector.extract_strided_slice %384 {offsets = [0, 0], sizes = [2, 96], strides = [1, 1]} : vector<8x96xf32> to vector<2x96xf32>
    %412 = arith.truncf %409 : vector<2x32xf32> to vector<2x32xbf16>
    %cst_69 = arith.constant dense<0.000000e+00> : vector<2x96xf32>
    %413 = tpu.matmul %412, %356, %cst_69 {dimension_numbers = #tpu.dot_dimension_numbers<[1], [0], [0], [1], [0, 0, 1, 1], [], []>} : vector<2x32xbf16>, vector<32x96xbf16>, vector<2x96xf32> -> vector<2x96xf32>
    %414 = vector.broadcast %358 : vector<1x96xf32> to vector<2x96xf32>
    %415 = arith.addf %413, %414 : vector<2x96xf32>
    %416 = vector.extract_strided_slice %411 {offsets = [0, 0], sizes = [2, 64], strides = [1, 1]} : vector<2x96xf32> to vector<2x64xf32>
    %417 = vector.extract_strided_slice %415 {offsets = [0, 0], sizes = [2, 64], strides = [1, 1]} : vector<2x96xf32> to vector<2x64xf32>
    %418 = arith.addf %416, %417 : vector<2x64xf32>
    %419 = arith.negf %418 : vector<2x64xf32>
    %420 = math.exp %419 : vector<2x64xf32>
    %cst_70 = arith.constant 1.000000e+00 : f32
    %421 = vector.broadcast %cst_70 : f32 to vector<2x64xf32>
    %422 = arith.addf %421, %420 : vector<2x64xf32>
    %423 = arith.divf %421, %422 : vector<2x64xf32>
    %424 = vector.extract_strided_slice %423 {offsets = [0, 0], sizes = [2, 32], strides = [1, 1]} : vector<2x64xf32> to vector<2x32xf32>
    %425 = vector.extract_strided_slice %423 {offsets = [0, 32], sizes = [2, 32], strides = [1, 1]} : vector<2x64xf32> to vector<2x32xf32>
    %426 = vector.extract_strided_slice %411 {offsets = [0, 64], sizes = [2, 32], strides = [1, 1]} : vector<2x96xf32> to vector<2x32xf32>
    %427 = vector.extract_strided_slice %415 {offsets = [0, 64], sizes = [2, 32], strides = [1, 1]} : vector<2x96xf32> to vector<2x32xf32>
    %428 = arith.mulf %424, %427 : vector<2x32xf32>
    %429 = arith.addf %426, %428 : vector<2x32xf32>
    %430 = math.tanh %429 : vector<2x32xf32>
    %cst_71 = arith.constant 1.000000e+00 : f32
    %431 = vector.broadcast %cst_71 : f32 to vector<2x32xf32>
    %432 = arith.subf %431, %425 : vector<2x32xf32>
    %433 = arith.mulf %432, %430 : vector<2x32xf32>
    %434 = arith.mulf %425, %409 : vector<2x32xf32>
    %435 = arith.addf %433, %434 : vector<2x32xf32>
    %436 = vector.broadcast %410 : vector<2x1xf32> to vector<2x32xf32>
    %437 = arith.mulf %436, %435 : vector<2x32xf32>
    %cst_72 = arith.constant 1.000000e+00 : f32
    %438 = vector.broadcast %cst_72 : f32 to vector<2x1xf32>
    %439 = arith.subf %438, %410 : vector<2x1xf32>
    %440 = vector.broadcast %439 : vector<2x1xf32> to vector<2x32xf32>
    %441 = arith.mulf %440, %409 : vector<2x32xf32>
    %442 = arith.addf %437, %441 : vector<2x32xf32>
    %443 = vector.extract_strided_slice %408 {offsets = [2, 0], sizes = [2, 1], strides = [1, 1]} : vector<8x1xf32> to vector<2x1xf32>
    %444 = vector.extract_strided_slice %384 {offsets = [2, 0], sizes = [2, 96], strides = [1, 1]} : vector<8x96xf32> to vector<2x96xf32>
    %445 = arith.truncf %442 : vector<2x32xf32> to vector<2x32xbf16>
    %cst_73 = arith.constant dense<0.000000e+00> : vector<2x96xf32>
    %446 = tpu.matmul %445, %356, %cst_73 {dimension_numbers = #tpu.dot_dimension_numbers<[1], [0], [0], [1], [0, 0, 1, 1], [], []>} : vector<2x32xbf16>, vector<32x96xbf16>, vector<2x96xf32> -> vector<2x96xf32>
    %447 = vector.broadcast %358 : vector<1x96xf32> to vector<2x96xf32>
    %448 = arith.addf %446, %447 : vector<2x96xf32>
    %449 = vector.extract_strided_slice %444 {offsets = [0, 0], sizes = [2, 64], strides = [1, 1]} : vector<2x96xf32> to vector<2x64xf32>
    %450 = vector.extract_strided_slice %448 {offsets = [0, 0], sizes = [2, 64], strides = [1, 1]} : vector<2x96xf32> to vector<2x64xf32>
    %451 = arith.addf %449, %450 : vector<2x64xf32>
    %452 = arith.negf %451 : vector<2x64xf32>
    %453 = math.exp %452 : vector<2x64xf32>
    %cst_74 = arith.constant 1.000000e+00 : f32
    %454 = vector.broadcast %cst_74 : f32 to vector<2x64xf32>
    %455 = arith.addf %454, %453 : vector<2x64xf32>
    %456 = arith.divf %454, %455 : vector<2x64xf32>
    %457 = vector.extract_strided_slice %456 {offsets = [0, 0], sizes = [2, 32], strides = [1, 1]} : vector<2x64xf32> to vector<2x32xf32>
    %458 = vector.extract_strided_slice %456 {offsets = [0, 32], sizes = [2, 32], strides = [1, 1]} : vector<2x64xf32> to vector<2x32xf32>
    %459 = vector.extract_strided_slice %444 {offsets = [0, 64], sizes = [2, 32], strides = [1, 1]} : vector<2x96xf32> to vector<2x32xf32>
    %460 = vector.extract_strided_slice %448 {offsets = [0, 64], sizes = [2, 32], strides = [1, 1]} : vector<2x96xf32> to vector<2x32xf32>
    %461 = arith.mulf %457, %460 : vector<2x32xf32>
    %462 = arith.addf %459, %461 : vector<2x32xf32>
    %463 = math.tanh %462 : vector<2x32xf32>
    %cst_75 = arith.constant 1.000000e+00 : f32
    %464 = vector.broadcast %cst_75 : f32 to vector<2x32xf32>
    %465 = arith.subf %464, %458 : vector<2x32xf32>
    %466 = arith.mulf %465, %463 : vector<2x32xf32>
    %467 = arith.mulf %458, %442 : vector<2x32xf32>
    %468 = arith.addf %466, %467 : vector<2x32xf32>
    %469 = vector.broadcast %443 : vector<2x1xf32> to vector<2x32xf32>
    %470 = arith.mulf %469, %468 : vector<2x32xf32>
    %cst_76 = arith.constant 1.000000e+00 : f32
    %471 = vector.broadcast %cst_76 : f32 to vector<2x1xf32>
    %472 = arith.subf %471, %443 : vector<2x1xf32>
    %473 = vector.broadcast %472 : vector<2x1xf32> to vector<2x32xf32>
    %474 = arith.mulf %473, %442 : vector<2x32xf32>
    %475 = arith.addf %470, %474 : vector<2x32xf32>
    %476 = vector.extract_strided_slice %408 {offsets = [4, 0], sizes = [2, 1], strides = [1, 1]} : vector<8x1xf32> to vector<2x1xf32>
    %477 = vector.extract_strided_slice %384 {offsets = [4, 0], sizes = [2, 96], strides = [1, 1]} : vector<8x96xf32> to vector<2x96xf32>
    %478 = arith.truncf %475 : vector<2x32xf32> to vector<2x32xbf16>
    %cst_77 = arith.constant dense<0.000000e+00> : vector<2x96xf32>
    %479 = tpu.matmul %478, %356, %cst_77 {dimension_numbers = #tpu.dot_dimension_numbers<[1], [0], [0], [1], [0, 0, 1, 1], [], []>} : vector<2x32xbf16>, vector<32x96xbf16>, vector<2x96xf32> -> vector<2x96xf32>
    %480 = vector.broadcast %358 : vector<1x96xf32> to vector<2x96xf32>
    %481 = arith.addf %479, %480 : vector<2x96xf32>
    %482 = vector.extract_strided_slice %477 {offsets = [0, 0], sizes = [2, 64], strides = [1, 1]} : vector<2x96xf32> to vector<2x64xf32>
    %483 = vector.extract_strided_slice %481 {offsets = [0, 0], sizes = [2, 64], strides = [1, 1]} : vector<2x96xf32> to vector<2x64xf32>
    %484 = arith.addf %482, %483 : vector<2x64xf32>
    %485 = arith.negf %484 : vector<2x64xf32>
    %486 = math.exp %485 : vector<2x64xf32>
    %cst_78 = arith.constant 1.000000e+00 : f32
    %487 = vector.broadcast %cst_78 : f32 to vector<2x64xf32>
    %488 = arith.addf %487, %486 : vector<2x64xf32>
    %489 = arith.divf %487, %488 : vector<2x64xf32>
    %490 = vector.extract_strided_slice %489 {offsets = [0, 0], sizes = [2, 32], strides = [1, 1]} : vector<2x64xf32> to vector<2x32xf32>
    %491 = vector.extract_strided_slice %489 {offsets = [0, 32], sizes = [2, 32], strides = [1, 1]} : vector<2x64xf32> to vector<2x32xf32>
    %492 = vector.extract_strided_slice %477 {offsets = [0, 64], sizes = [2, 32], strides = [1, 1]} : vector<2x96xf32> to vector<2x32xf32>
    %493 = vector.extract_strided_slice %481 {offsets = [0, 64], sizes = [2, 32], strides = [1, 1]} : vector<2x96xf32> to vector<2x32xf32>
    %494 = arith.mulf %490, %493 : vector<2x32xf32>
    %495 = arith.addf %492, %494 : vector<2x32xf32>
    %496 = math.tanh %495 : vector<2x32xf32>
    %cst_79 = arith.constant 1.000000e+00 : f32
    %497 = vector.broadcast %cst_79 : f32 to vector<2x32xf32>
    %498 = arith.subf %497, %491 : vector<2x32xf32>
    %499 = arith.mulf %498, %496 : vector<2x32xf32>
    %500 = arith.mulf %491, %475 : vector<2x32xf32>
    %501 = arith.addf %499, %500 : vector<2x32xf32>
    %502 = vector.broadcast %476 : vector<2x1xf32> to vector<2x32xf32>
    %503 = arith.mulf %502, %501 : vector<2x32xf32>
    %cst_80 = arith.constant 1.000000e+00 : f32
    %504 = vector.broadcast %cst_80 : f32 to vector<2x1xf32>
    %505 = arith.subf %504, %476 : vector<2x1xf32>
    %506 = vector.broadcast %505 : vector<2x1xf32> to vector<2x32xf32>
    %507 = arith.mulf %506, %475 : vector<2x32xf32>
    %508 = arith.addf %503, %507 : vector<2x32xf32>
    %509 = vector.extract_strided_slice %408 {offsets = [6, 0], sizes = [2, 1], strides = [1, 1]} : vector<8x1xf32> to vector<2x1xf32>
    %510 = vector.extract_strided_slice %384 {offsets = [6, 0], sizes = [2, 96], strides = [1, 1]} : vector<8x96xf32> to vector<2x96xf32>
    %511 = arith.truncf %508 : vector<2x32xf32> to vector<2x32xbf16>
    %cst_81 = arith.constant dense<0.000000e+00> : vector<2x96xf32>
    %512 = tpu.matmul %511, %356, %cst_81 {dimension_numbers = #tpu.dot_dimension_numbers<[1], [0], [0], [1], [0, 0, 1, 1], [], []>} : vector<2x32xbf16>, vector<32x96xbf16>, vector<2x96xf32> -> vector<2x96xf32>
    %513 = vector.broadcast %358 : vector<1x96xf32> to vector<2x96xf32>
    %514 = arith.addf %512, %513 : vector<2x96xf32>
    %515 = vector.extract_strided_slice %510 {offsets = [0, 0], sizes = [2, 64], strides = [1, 1]} : vector<2x96xf32> to vector<2x64xf32>
    %516 = vector.extract_strided_slice %514 {offsets = [0, 0], sizes = [2, 64], strides = [1, 1]} : vector<2x96xf32> to vector<2x64xf32>
    %517 = arith.addf %515, %516 : vector<2x64xf32>
    %518 = arith.negf %517 : vector<2x64xf32>
    %519 = math.exp %518 : vector<2x64xf32>
    %cst_82 = arith.constant 1.000000e+00 : f32
    %520 = vector.broadcast %cst_82 : f32 to vector<2x64xf32>
    %521 = arith.addf %520, %519 : vector<2x64xf32>
    %522 = arith.divf %520, %521 : vector<2x64xf32>
    %523 = vector.extract_strided_slice %522 {offsets = [0, 0], sizes = [2, 32], strides = [1, 1]} : vector<2x64xf32> to vector<2x32xf32>
    %524 = vector.extract_strided_slice %522 {offsets = [0, 32], sizes = [2, 32], strides = [1, 1]} : vector<2x64xf32> to vector<2x32xf32>
    %525 = vector.extract_strided_slice %510 {offsets = [0, 64], sizes = [2, 32], strides = [1, 1]} : vector<2x96xf32> to vector<2x32xf32>
    %526 = vector.extract_strided_slice %514 {offsets = [0, 64], sizes = [2, 32], strides = [1, 1]} : vector<2x96xf32> to vector<2x32xf32>
    %527 = arith.mulf %523, %526 : vector<2x32xf32>
    %528 = arith.addf %525, %527 : vector<2x32xf32>
    %529 = math.tanh %528 : vector<2x32xf32>
    %cst_83 = arith.constant 1.000000e+00 : f32
    %530 = vector.broadcast %cst_83 : f32 to vector<2x32xf32>
    %531 = arith.subf %530, %524 : vector<2x32xf32>
    %532 = arith.mulf %531, %529 : vector<2x32xf32>
    %533 = arith.mulf %524, %508 : vector<2x32xf32>
    %534 = arith.addf %532, %533 : vector<2x32xf32>
    %535 = vector.broadcast %509 : vector<2x1xf32> to vector<2x32xf32>
    %536 = arith.mulf %535, %534 : vector<2x32xf32>
    %cst_84 = arith.constant 1.000000e+00 : f32
    %537 = vector.broadcast %cst_84 : f32 to vector<2x1xf32>
    %538 = arith.subf %537, %509 : vector<2x1xf32>
    %539 = vector.broadcast %538 : vector<2x1xf32> to vector<2x32xf32>
    %540 = arith.mulf %539, %508 : vector<2x32xf32>
    %541 = arith.addf %536, %540 : vector<2x32xf32>
    %542 = arith.truncf %541 : vector<2x32xf32> to vector<2x32xbf16>
    %cst_85 = arith.constant dense<0.000000e+00> : vector<2x96xf32>
    %543 = tpu.matmul %542, %359, %cst_85 {dimension_numbers = #tpu.dot_dimension_numbers<[1], [0], [0], [1], [0, 0, 1, 1], [], []>} : vector<2x32xbf16>, vector<32x96xbf16>, vector<2x96xf32> -> vector<2x96xf32>
    %544 = vector.broadcast %361 : vector<1x96xf32> to vector<2x96xf32>
    %545 = arith.addf %543, %544 : vector<2x96xf32>
    %546 = arith.truncf %354 : vector<2x32xf32> to vector<2x32xbf16>
    %cst_86 = arith.constant dense<0.000000e+00> : vector<2x96xf32>
    %547 = tpu.matmul %546, %360, %cst_86 {dimension_numbers = #tpu.dot_dimension_numbers<[1], [0], [0], [1], [0, 0, 1, 1], [], []>} : vector<2x32xbf16>, vector<32x96xbf16>, vector<2x96xf32> -> vector<2x96xf32>
    %548 = vector.broadcast %362 : vector<1x96xf32> to vector<2x96xf32>
    %549 = arith.addf %547, %548 : vector<2x96xf32>
    %550 = vector.extract_strided_slice %545 {offsets = [0, 0], sizes = [2, 64], strides = [1, 1]} : vector<2x96xf32> to vector<2x64xf32>
    %551 = vector.extract_strided_slice %549 {offsets = [0, 0], sizes = [2, 64], strides = [1, 1]} : vector<2x96xf32> to vector<2x64xf32>
    %552 = arith.addf %550, %551 : vector<2x64xf32>
    %553 = arith.negf %552 : vector<2x64xf32>
    %554 = math.exp %553 : vector<2x64xf32>
    %cst_87 = arith.constant 1.000000e+00 : f32
    %555 = vector.broadcast %cst_87 : f32 to vector<2x64xf32>
    %556 = arith.addf %555, %554 : vector<2x64xf32>
    %557 = arith.divf %555, %556 : vector<2x64xf32>
    %558 = vector.extract_strided_slice %557 {offsets = [0, 0], sizes = [2, 32], strides = [1, 1]} : vector<2x64xf32> to vector<2x32xf32>
    %559 = vector.extract_strided_slice %557 {offsets = [0, 32], sizes = [2, 32], strides = [1, 1]} : vector<2x64xf32> to vector<2x32xf32>
    %560 = vector.extract_strided_slice %545 {offsets = [0, 64], sizes = [2, 32], strides = [1, 1]} : vector<2x96xf32> to vector<2x32xf32>
    %561 = vector.extract_strided_slice %549 {offsets = [0, 64], sizes = [2, 32], strides = [1, 1]} : vector<2x96xf32> to vector<2x32xf32>
    %562 = arith.mulf %558, %561 : vector<2x32xf32>
    %563 = arith.addf %560, %562 : vector<2x32xf32>
    %564 = math.tanh %563 : vector<2x32xf32>
    %cst_88 = arith.constant 1.000000e+00 : f32
    %565 = vector.broadcast %cst_88 : f32 to vector<2x32xf32>
    %566 = arith.subf %565, %559 : vector<2x32xf32>
    %567 = arith.mulf %566, %564 : vector<2x32xf32>
    %568 = arith.mulf %559, %354 : vector<2x32xf32>
    %569 = arith.addf %567, %568 : vector<2x32xf32>
    %570 = tpu.concatenate %569, %569, %569, %569 in 0 : vector<2x32xf32>, vector<2x32xf32>, vector<2x32xf32>, vector<2x32xf32> -> vector<8x32xf32>
    %571 = arith.mulf %193, %570 : vector<8x32xf32>
    %572 = arith.subf %193, %570 : vector<8x32xf32>
    %573 = math.absf %572 : vector<8x32xf32>
    %574 = arith.truncf %571 : vector<8x32xf32> to vector<8x32xbf16>
    %575 = vector.extract_strided_slice %363 {offsets = [32, 0], sizes = [32, 32], strides = [1, 1]} : vector<128x32xbf16> to vector<32x32xbf16>
    %cst_89 = arith.constant dense<0.000000e+00> : vector<8x32xf32>
    %576 = tpu.matmul %574, %575, %cst_89 {dimension_numbers = #tpu.dot_dimension_numbers<[1], [0], [0], [1], [0, 0, 1, 1], [], []>} : vector<8x32xbf16>, vector<32x32xbf16>, vector<8x32xf32> -> vector<8x32xf32>
    %577 = arith.addf %381, %576 : vector<8x32xf32>
    %578 = arith.truncf %573 : vector<8x32xf32> to vector<8x32xbf16>
    %579 = vector.extract_strided_slice %363 {offsets = [96, 0], sizes = [32, 32], strides = [1, 1]} : vector<128x32xbf16> to vector<32x32xbf16>
    %cst_90 = arith.constant dense<0.000000e+00> : vector<8x32xf32>
    %580 = tpu.matmul %578, %579, %cst_90 {dimension_numbers = #tpu.dot_dimension_numbers<[1], [0], [0], [1], [0, 0, 1, 1], [], []>} : vector<8x32xbf16>, vector<32x32xbf16>, vector<8x32xf32> -> vector<8x32xf32>
    %581 = arith.addf %577, %580 : vector<8x32xf32>
    %582 = math.tanh %581 : vector<8x32xf32>
    %583 = vector.broadcast %366 : vector<1x32xf32> to vector<8x32xf32>
    %584 = arith.mulf %582, %583 : vector<8x32xf32>
    %cst_91 = arith.constant dense<0.000000e+00> : vector<8xf32>
    %585 = vector.multi_reduction <add>, %584, %cst_91 [1] : vector<8x32xf32> to vector<8xf32>
    %586 = vector.shape_cast %585 : vector<8xf32> to vector<8x1xf32>
    %587 = vector.broadcast %367 : vector<1x1xf32> to vector<8x1xf32>
    %588 = arith.addf %586, %587 : vector<8x1xf32>
    %589 = arith.negf %588 : vector<8x1xf32>
    %590 = math.exp %589 : vector<8x1xf32>
    %cst_92 = arith.constant 1.000000e+00 : f32
    %591 = vector.broadcast %cst_92 : f32 to vector<8x1xf32>
    %592 = arith.addf %591, %590 : vector<8x1xf32>
    %593 = arith.divf %591, %592 : vector<8x1xf32>
    %cst_93 = arith.constant 0.000000e+00 : f32
    %594 = vector.broadcast %cst_93 : f32 to vector<2x32xf32>
    %595 = vector.extract_strided_slice %593 {offsets = [0, 0], sizes = [2, 1], strides = [1, 1]} : vector<8x1xf32> to vector<2x1xf32>
    %596 = vector.extract_strided_slice %384 {offsets = [0, 0], sizes = [2, 96], strides = [1, 1]} : vector<8x96xf32> to vector<2x96xf32>
    %597 = arith.truncf %594 : vector<2x32xf32> to vector<2x32xbf16>
    %cst_94 = arith.constant dense<0.000000e+00> : vector<2x96xf32>
    %598 = tpu.matmul %597, %356, %cst_94 {dimension_numbers = #tpu.dot_dimension_numbers<[1], [0], [0], [1], [0, 0, 1, 1], [], []>} : vector<2x32xbf16>, vector<32x96xbf16>, vector<2x96xf32> -> vector<2x96xf32>
    %599 = vector.broadcast %358 : vector<1x96xf32> to vector<2x96xf32>
    %600 = arith.addf %598, %599 : vector<2x96xf32>
    %601 = vector.extract_strided_slice %596 {offsets = [0, 0], sizes = [2, 64], strides = [1, 1]} : vector<2x96xf32> to vector<2x64xf32>
    %602 = vector.extract_strided_slice %600 {offsets = [0, 0], sizes = [2, 64], strides = [1, 1]} : vector<2x96xf32> to vector<2x64xf32>
    %603 = arith.addf %601, %602 : vector<2x64xf32>
    %604 = arith.negf %603 : vector<2x64xf32>
    %605 = math.exp %604 : vector<2x64xf32>
    %cst_95 = arith.constant 1.000000e+00 : f32
    %606 = vector.broadcast %cst_95 : f32 to vector<2x64xf32>
    %607 = arith.addf %606, %605 : vector<2x64xf32>
    %608 = arith.divf %606, %607 : vector<2x64xf32>
    %609 = vector.extract_strided_slice %608 {offsets = [0, 0], sizes = [2, 32], strides = [1, 1]} : vector<2x64xf32> to vector<2x32xf32>
    %610 = vector.extract_strided_slice %608 {offsets = [0, 32], sizes = [2, 32], strides = [1, 1]} : vector<2x64xf32> to vector<2x32xf32>
    %611 = vector.extract_strided_slice %596 {offsets = [0, 64], sizes = [2, 32], strides = [1, 1]} : vector<2x96xf32> to vector<2x32xf32>
    %612 = vector.extract_strided_slice %600 {offsets = [0, 64], sizes = [2, 32], strides = [1, 1]} : vector<2x96xf32> to vector<2x32xf32>
    %613 = arith.mulf %609, %612 : vector<2x32xf32>
    %614 = arith.addf %611, %613 : vector<2x32xf32>
    %615 = math.tanh %614 : vector<2x32xf32>
    %cst_96 = arith.constant 1.000000e+00 : f32
    %616 = vector.broadcast %cst_96 : f32 to vector<2x32xf32>
    %617 = arith.subf %616, %610 : vector<2x32xf32>
    %618 = arith.mulf %617, %615 : vector<2x32xf32>
    %619 = arith.mulf %610, %594 : vector<2x32xf32>
    %620 = arith.addf %618, %619 : vector<2x32xf32>
    %621 = vector.broadcast %595 : vector<2x1xf32> to vector<2x32xf32>
    %622 = arith.mulf %621, %620 : vector<2x32xf32>
    %cst_97 = arith.constant 1.000000e+00 : f32
    %623 = vector.broadcast %cst_97 : f32 to vector<2x1xf32>
    %624 = arith.subf %623, %595 : vector<2x1xf32>
    %625 = vector.broadcast %624 : vector<2x1xf32> to vector<2x32xf32>
    %626 = arith.mulf %625, %594 : vector<2x32xf32>
    %627 = arith.addf %622, %626 : vector<2x32xf32>
    %628 = vector.extract_strided_slice %593 {offsets = [2, 0], sizes = [2, 1], strides = [1, 1]} : vector<8x1xf32> to vector<2x1xf32>
    %629 = vector.extract_strided_slice %384 {offsets = [2, 0], sizes = [2, 96], strides = [1, 1]} : vector<8x96xf32> to vector<2x96xf32>
    %630 = arith.truncf %627 : vector<2x32xf32> to vector<2x32xbf16>
    %cst_98 = arith.constant dense<0.000000e+00> : vector<2x96xf32>
    %631 = tpu.matmul %630, %356, %cst_98 {dimension_numbers = #tpu.dot_dimension_numbers<[1], [0], [0], [1], [0, 0, 1, 1], [], []>} : vector<2x32xbf16>, vector<32x96xbf16>, vector<2x96xf32> -> vector<2x96xf32>
    %632 = vector.broadcast %358 : vector<1x96xf32> to vector<2x96xf32>
    %633 = arith.addf %631, %632 : vector<2x96xf32>
    %634 = vector.extract_strided_slice %629 {offsets = [0, 0], sizes = [2, 64], strides = [1, 1]} : vector<2x96xf32> to vector<2x64xf32>
    %635 = vector.extract_strided_slice %633 {offsets = [0, 0], sizes = [2, 64], strides = [1, 1]} : vector<2x96xf32> to vector<2x64xf32>
    %636 = arith.addf %634, %635 : vector<2x64xf32>
    %637 = arith.negf %636 : vector<2x64xf32>
    %638 = math.exp %637 : vector<2x64xf32>
    %cst_99 = arith.constant 1.000000e+00 : f32
    %639 = vector.broadcast %cst_99 : f32 to vector<2x64xf32>
    %640 = arith.addf %639, %638 : vector<2x64xf32>
    %641 = arith.divf %639, %640 : vector<2x64xf32>
    %642 = vector.extract_strided_slice %641 {offsets = [0, 0], sizes = [2, 32], strides = [1, 1]} : vector<2x64xf32> to vector<2x32xf32>
    %643 = vector.extract_strided_slice %641 {offsets = [0, 32], sizes = [2, 32], strides = [1, 1]} : vector<2x64xf32> to vector<2x32xf32>
    %644 = vector.extract_strided_slice %629 {offsets = [0, 64], sizes = [2, 32], strides = [1, 1]} : vector<2x96xf32> to vector<2x32xf32>
    %645 = vector.extract_strided_slice %633 {offsets = [0, 64], sizes = [2, 32], strides = [1, 1]} : vector<2x96xf32> to vector<2x32xf32>
    %646 = arith.mulf %642, %645 : vector<2x32xf32>
    %647 = arith.addf %644, %646 : vector<2x32xf32>
    %648 = math.tanh %647 : vector<2x32xf32>
    %cst_100 = arith.constant 1.000000e+00 : f32
    %649 = vector.broadcast %cst_100 : f32 to vector<2x32xf32>
    %650 = arith.subf %649, %643 : vector<2x32xf32>
    %651 = arith.mulf %650, %648 : vector<2x32xf32>
    %652 = arith.mulf %643, %627 : vector<2x32xf32>
    %653 = arith.addf %651, %652 : vector<2x32xf32>
    %654 = vector.broadcast %628 : vector<2x1xf32> to vector<2x32xf32>
    %655 = arith.mulf %654, %653 : vector<2x32xf32>
    %cst_101 = arith.constant 1.000000e+00 : f32
    %656 = vector.broadcast %cst_101 : f32 to vector<2x1xf32>
    %657 = arith.subf %656, %628 : vector<2x1xf32>
    %658 = vector.broadcast %657 : vector<2x1xf32> to vector<2x32xf32>
    %659 = arith.mulf %658, %627 : vector<2x32xf32>
    %660 = arith.addf %655, %659 : vector<2x32xf32>
    %661 = vector.extract_strided_slice %593 {offsets = [4, 0], sizes = [2, 1], strides = [1, 1]} : vector<8x1xf32> to vector<2x1xf32>
    %662 = vector.extract_strided_slice %384 {offsets = [4, 0], sizes = [2, 96], strides = [1, 1]} : vector<8x96xf32> to vector<2x96xf32>
    %663 = arith.truncf %660 : vector<2x32xf32> to vector<2x32xbf16>
    %cst_102 = arith.constant dense<0.000000e+00> : vector<2x96xf32>
    %664 = tpu.matmul %663, %356, %cst_102 {dimension_numbers = #tpu.dot_dimension_numbers<[1], [0], [0], [1], [0, 0, 1, 1], [], []>} : vector<2x32xbf16>, vector<32x96xbf16>, vector<2x96xf32> -> vector<2x96xf32>
    %665 = vector.broadcast %358 : vector<1x96xf32> to vector<2x96xf32>
    %666 = arith.addf %664, %665 : vector<2x96xf32>
    %667 = vector.extract_strided_slice %662 {offsets = [0, 0], sizes = [2, 64], strides = [1, 1]} : vector<2x96xf32> to vector<2x64xf32>
    %668 = vector.extract_strided_slice %666 {offsets = [0, 0], sizes = [2, 64], strides = [1, 1]} : vector<2x96xf32> to vector<2x64xf32>
    %669 = arith.addf %667, %668 : vector<2x64xf32>
    %670 = arith.negf %669 : vector<2x64xf32>
    %671 = math.exp %670 : vector<2x64xf32>
    %cst_103 = arith.constant 1.000000e+00 : f32
    %672 = vector.broadcast %cst_103 : f32 to vector<2x64xf32>
    %673 = arith.addf %672, %671 : vector<2x64xf32>
    %674 = arith.divf %672, %673 : vector<2x64xf32>
    %675 = vector.extract_strided_slice %674 {offsets = [0, 0], sizes = [2, 32], strides = [1, 1]} : vector<2x64xf32> to vector<2x32xf32>
    %676 = vector.extract_strided_slice %674 {offsets = [0, 32], sizes = [2, 32], strides = [1, 1]} : vector<2x64xf32> to vector<2x32xf32>
    %677 = vector.extract_strided_slice %662 {offsets = [0, 64], sizes = [2, 32], strides = [1, 1]} : vector<2x96xf32> to vector<2x32xf32>
    %678 = vector.extract_strided_slice %666 {offsets = [0, 64], sizes = [2, 32], strides = [1, 1]} : vector<2x96xf32> to vector<2x32xf32>
    %679 = arith.mulf %675, %678 : vector<2x32xf32>
    %680 = arith.addf %677, %679 : vector<2x32xf32>
    %681 = math.tanh %680 : vector<2x32xf32>
    %cst_104 = arith.constant 1.000000e+00 : f32
    %682 = vector.broadcast %cst_104 : f32 to vector<2x32xf32>
    %683 = arith.subf %682, %676 : vector<2x32xf32>
    %684 = arith.mulf %683, %681 : vector<2x32xf32>
    %685 = arith.mulf %676, %660 : vector<2x32xf32>
    %686 = arith.addf %684, %685 : vector<2x32xf32>
    %687 = vector.broadcast %661 : vector<2x1xf32> to vector<2x32xf32>
    %688 = arith.mulf %687, %686 : vector<2x32xf32>
    %cst_105 = arith.constant 1.000000e+00 : f32
    %689 = vector.broadcast %cst_105 : f32 to vector<2x1xf32>
    %690 = arith.subf %689, %661 : vector<2x1xf32>
    %691 = vector.broadcast %690 : vector<2x1xf32> to vector<2x32xf32>
    %692 = arith.mulf %691, %660 : vector<2x32xf32>
    %693 = arith.addf %688, %692 : vector<2x32xf32>
    %694 = vector.extract_strided_slice %593 {offsets = [6, 0], sizes = [2, 1], strides = [1, 1]} : vector<8x1xf32> to vector<2x1xf32>
    %695 = vector.extract_strided_slice %384 {offsets = [6, 0], sizes = [2, 96], strides = [1, 1]} : vector<8x96xf32> to vector<2x96xf32>
    %696 = arith.truncf %693 : vector<2x32xf32> to vector<2x32xbf16>
    %cst_106 = arith.constant dense<0.000000e+00> : vector<2x96xf32>
    %697 = tpu.matmul %696, %356, %cst_106 {dimension_numbers = #tpu.dot_dimension_numbers<[1], [0], [0], [1], [0, 0, 1, 1], [], []>} : vector<2x32xbf16>, vector<32x96xbf16>, vector<2x96xf32> -> vector<2x96xf32>
    %698 = vector.broadcast %358 : vector<1x96xf32> to vector<2x96xf32>
    %699 = arith.addf %697, %698 : vector<2x96xf32>
    %700 = vector.extract_strided_slice %695 {offsets = [0, 0], sizes = [2, 64], strides = [1, 1]} : vector<2x96xf32> to vector<2x64xf32>
    %701 = vector.extract_strided_slice %699 {offsets = [0, 0], sizes = [2, 64], strides = [1, 1]} : vector<2x96xf32> to vector<2x64xf32>
    %702 = arith.addf %700, %701 : vector<2x64xf32>
    %703 = arith.negf %702 : vector<2x64xf32>
    %704 = math.exp %703 : vector<2x64xf32>
    %cst_107 = arith.constant 1.000000e+00 : f32
    %705 = vector.broadcast %cst_107 : f32 to vector<2x64xf32>
    %706 = arith.addf %705, %704 : vector<2x64xf32>
    %707 = arith.divf %705, %706 : vector<2x64xf32>
    %708 = vector.extract_strided_slice %707 {offsets = [0, 0], sizes = [2, 32], strides = [1, 1]} : vector<2x64xf32> to vector<2x32xf32>
    %709 = vector.extract_strided_slice %707 {offsets = [0, 32], sizes = [2, 32], strides = [1, 1]} : vector<2x64xf32> to vector<2x32xf32>
    %710 = vector.extract_strided_slice %695 {offsets = [0, 64], sizes = [2, 32], strides = [1, 1]} : vector<2x96xf32> to vector<2x32xf32>
    %711 = vector.extract_strided_slice %699 {offsets = [0, 64], sizes = [2, 32], strides = [1, 1]} : vector<2x96xf32> to vector<2x32xf32>
    %712 = arith.mulf %708, %711 : vector<2x32xf32>
    %713 = arith.addf %710, %712 : vector<2x32xf32>
    %714 = math.tanh %713 : vector<2x32xf32>
    %cst_108 = arith.constant 1.000000e+00 : f32
    %715 = vector.broadcast %cst_108 : f32 to vector<2x32xf32>
    %716 = arith.subf %715, %709 : vector<2x32xf32>
    %717 = arith.mulf %716, %714 : vector<2x32xf32>
    %718 = arith.mulf %709, %693 : vector<2x32xf32>
    %719 = arith.addf %717, %718 : vector<2x32xf32>
    %720 = vector.broadcast %694 : vector<2x1xf32> to vector<2x32xf32>
    %721 = arith.mulf %720, %719 : vector<2x32xf32>
    %cst_109 = arith.constant 1.000000e+00 : f32
    %722 = vector.broadcast %cst_109 : f32 to vector<2x1xf32>
    %723 = arith.subf %722, %694 : vector<2x1xf32>
    %724 = vector.broadcast %723 : vector<2x1xf32> to vector<2x32xf32>
    %725 = arith.mulf %724, %693 : vector<2x32xf32>
    %726 = arith.addf %721, %725 : vector<2x32xf32>
    %727 = arith.truncf %726 : vector<2x32xf32> to vector<2x32xbf16>
    %cst_110 = arith.constant dense<0.000000e+00> : vector<2x96xf32>
    %728 = tpu.matmul %727, %359, %cst_110 {dimension_numbers = #tpu.dot_dimension_numbers<[1], [0], [0], [1], [0, 0, 1, 1], [], []>} : vector<2x32xbf16>, vector<32x96xbf16>, vector<2x96xf32> -> vector<2x96xf32>
    %729 = vector.broadcast %361 : vector<1x96xf32> to vector<2x96xf32>
    %730 = arith.addf %728, %729 : vector<2x96xf32>
    %731 = arith.truncf %569 : vector<2x32xf32> to vector<2x32xbf16>
    %cst_111 = arith.constant dense<0.000000e+00> : vector<2x96xf32>
    %732 = tpu.matmul %731, %360, %cst_111 {dimension_numbers = #tpu.dot_dimension_numbers<[1], [0], [0], [1], [0, 0, 1, 1], [], []>} : vector<2x32xbf16>, vector<32x96xbf16>, vector<2x96xf32> -> vector<2x96xf32>
    %733 = vector.broadcast %362 : vector<1x96xf32> to vector<2x96xf32>
    %734 = arith.addf %732, %733 : vector<2x96xf32>
    %735 = vector.extract_strided_slice %730 {offsets = [0, 0], sizes = [2, 64], strides = [1, 1]} : vector<2x96xf32> to vector<2x64xf32>
    %736 = vector.extract_strided_slice %734 {offsets = [0, 0], sizes = [2, 64], strides = [1, 1]} : vector<2x96xf32> to vector<2x64xf32>
    %737 = arith.addf %735, %736 : vector<2x64xf32>
    %738 = arith.negf %737 : vector<2x64xf32>
    %739 = math.exp %738 : vector<2x64xf32>
    %cst_112 = arith.constant 1.000000e+00 : f32
    %740 = vector.broadcast %cst_112 : f32 to vector<2x64xf32>
    %741 = arith.addf %740, %739 : vector<2x64xf32>
    %742 = arith.divf %740, %741 : vector<2x64xf32>
    %743 = vector.extract_strided_slice %742 {offsets = [0, 0], sizes = [2, 32], strides = [1, 1]} : vector<2x64xf32> to vector<2x32xf32>
    %744 = vector.extract_strided_slice %742 {offsets = [0, 32], sizes = [2, 32], strides = [1, 1]} : vector<2x64xf32> to vector<2x32xf32>
    %745 = vector.extract_strided_slice %730 {offsets = [0, 64], sizes = [2, 32], strides = [1, 1]} : vector<2x96xf32> to vector<2x32xf32>
    %746 = vector.extract_strided_slice %734 {offsets = [0, 64], sizes = [2, 32], strides = [1, 1]} : vector<2x96xf32> to vector<2x32xf32>
    %747 = arith.mulf %743, %746 : vector<2x32xf32>
    %748 = arith.addf %745, %747 : vector<2x32xf32>
    %749 = math.tanh %748 : vector<2x32xf32>
    %cst_113 = arith.constant 1.000000e+00 : f32
    %750 = vector.broadcast %cst_113 : f32 to vector<2x32xf32>
    %751 = arith.subf %750, %744 : vector<2x32xf32>
    %752 = arith.mulf %751, %749 : vector<2x32xf32>
    %753 = arith.mulf %744, %569 : vector<2x32xf32>
    %754 = arith.addf %752, %753 : vector<2x32xf32>
    %755 = tpu.concatenate %754, %754, %754, %754 in 0 : vector<2x32xf32>, vector<2x32xf32>, vector<2x32xf32>, vector<2x32xf32> -> vector<8x32xf32>
    %756 = arith.mulf %193, %755 : vector<8x32xf32>
    %757 = arith.subf %193, %755 : vector<8x32xf32>
    %758 = math.absf %757 : vector<8x32xf32>
    %759 = arith.truncf %756 : vector<8x32xf32> to vector<8x32xbf16>
    %760 = vector.extract_strided_slice %363 {offsets = [32, 0], sizes = [32, 32], strides = [1, 1]} : vector<128x32xbf16> to vector<32x32xbf16>
    %cst_114 = arith.constant dense<0.000000e+00> : vector<8x32xf32>
    %761 = tpu.matmul %759, %760, %cst_114 {dimension_numbers = #tpu.dot_dimension_numbers<[1], [0], [0], [1], [0, 0, 1, 1], [], []>} : vector<8x32xbf16>, vector<32x32xbf16>, vector<8x32xf32> -> vector<8x32xf32>
    %762 = arith.addf %381, %761 : vector<8x32xf32>
    %763 = arith.truncf %758 : vector<8x32xf32> to vector<8x32xbf16>
    %764 = vector.extract_strided_slice %363 {offsets = [96, 0], sizes = [32, 32], strides = [1, 1]} : vector<128x32xbf16> to vector<32x32xbf16>
    %cst_115 = arith.constant dense<0.000000e+00> : vector<8x32xf32>
    %765 = tpu.matmul %763, %764, %cst_115 {dimension_numbers = #tpu.dot_dimension_numbers<[1], [0], [0], [1], [0, 0, 1, 1], [], []>} : vector<8x32xbf16>, vector<32x32xbf16>, vector<8x32xf32> -> vector<8x32xf32>
    %766 = arith.addf %762, %765 : vector<8x32xf32>
    %767 = math.tanh %766 : vector<8x32xf32>
    %768 = vector.broadcast %366 : vector<1x32xf32> to vector<8x32xf32>
    %769 = arith.mulf %767, %768 : vector<8x32xf32>
    %cst_116 = arith.constant dense<0.000000e+00> : vector<8xf32>
    %770 = vector.multi_reduction <add>, %769, %cst_116 [1] : vector<8x32xf32> to vector<8xf32>
    %771 = vector.shape_cast %770 : vector<8xf32> to vector<8x1xf32>
    %772 = vector.broadcast %367 : vector<1x1xf32> to vector<8x1xf32>
    %773 = arith.addf %771, %772 : vector<8x1xf32>
    %774 = arith.negf %773 : vector<8x1xf32>
    %775 = math.exp %774 : vector<8x1xf32>
    %cst_117 = arith.constant 1.000000e+00 : f32
    %776 = vector.broadcast %cst_117 : f32 to vector<8x1xf32>
    %777 = arith.addf %776, %775 : vector<8x1xf32>
    %778 = arith.divf %776, %777 : vector<8x1xf32>
    %cst_118 = arith.constant 0.000000e+00 : f32
    %779 = vector.broadcast %cst_118 : f32 to vector<2x32xf32>
    %780 = vector.extract_strided_slice %778 {offsets = [0, 0], sizes = [2, 1], strides = [1, 1]} : vector<8x1xf32> to vector<2x1xf32>
    %781 = vector.extract_strided_slice %384 {offsets = [0, 0], sizes = [2, 96], strides = [1, 1]} : vector<8x96xf32> to vector<2x96xf32>
    %782 = arith.truncf %779 : vector<2x32xf32> to vector<2x32xbf16>
    %cst_119 = arith.constant dense<0.000000e+00> : vector<2x96xf32>
    %783 = tpu.matmul %782, %356, %cst_119 {dimension_numbers = #tpu.dot_dimension_numbers<[1], [0], [0], [1], [0, 0, 1, 1], [], []>} : vector<2x32xbf16>, vector<32x96xbf16>, vector<2x96xf32> -> vector<2x96xf32>
    %784 = vector.broadcast %358 : vector<1x96xf32> to vector<2x96xf32>
    %785 = arith.addf %783, %784 : vector<2x96xf32>
    %786 = vector.extract_strided_slice %781 {offsets = [0, 0], sizes = [2, 64], strides = [1, 1]} : vector<2x96xf32> to vector<2x64xf32>
    %787 = vector.extract_strided_slice %785 {offsets = [0, 0], sizes = [2, 64], strides = [1, 1]} : vector<2x96xf32> to vector<2x64xf32>
    %788 = arith.addf %786, %787 : vector<2x64xf32>
    %789 = arith.negf %788 : vector<2x64xf32>
    %790 = math.exp %789 : vector<2x64xf32>
    %cst_120 = arith.constant 1.000000e+00 : f32
    %791 = vector.broadcast %cst_120 : f32 to vector<2x64xf32>
    %792 = arith.addf %791, %790 : vector<2x64xf32>
    %793 = arith.divf %791, %792 : vector<2x64xf32>
    %794 = vector.extract_strided_slice %793 {offsets = [0, 0], sizes = [2, 32], strides = [1, 1]} : vector<2x64xf32> to vector<2x32xf32>
    %795 = vector.extract_strided_slice %793 {offsets = [0, 32], sizes = [2, 32], strides = [1, 1]} : vector<2x64xf32> to vector<2x32xf32>
    %796 = vector.extract_strided_slice %781 {offsets = [0, 64], sizes = [2, 32], strides = [1, 1]} : vector<2x96xf32> to vector<2x32xf32>
    %797 = vector.extract_strided_slice %785 {offsets = [0, 64], sizes = [2, 32], strides = [1, 1]} : vector<2x96xf32> to vector<2x32xf32>
    %798 = arith.mulf %794, %797 : vector<2x32xf32>
    %799 = arith.addf %796, %798 : vector<2x32xf32>
    %800 = math.tanh %799 : vector<2x32xf32>
    %cst_121 = arith.constant 1.000000e+00 : f32
    %801 = vector.broadcast %cst_121 : f32 to vector<2x32xf32>
    %802 = arith.subf %801, %795 : vector<2x32xf32>
    %803 = arith.mulf %802, %800 : vector<2x32xf32>
    %804 = arith.mulf %795, %779 : vector<2x32xf32>
    %805 = arith.addf %803, %804 : vector<2x32xf32>
    %806 = vector.broadcast %780 : vector<2x1xf32> to vector<2x32xf32>
    %807 = arith.mulf %806, %805 : vector<2x32xf32>
    %cst_122 = arith.constant 1.000000e+00 : f32
    %808 = vector.broadcast %cst_122 : f32 to vector<2x1xf32>
    %809 = arith.subf %808, %780 : vector<2x1xf32>
    %810 = vector.broadcast %809 : vector<2x1xf32> to vector<2x32xf32>
    %811 = arith.mulf %810, %779 : vector<2x32xf32>
    %812 = arith.addf %807, %811 : vector<2x32xf32>
    %813 = vector.extract_strided_slice %778 {offsets = [2, 0], sizes = [2, 1], strides = [1, 1]} : vector<8x1xf32> to vector<2x1xf32>
    %814 = vector.extract_strided_slice %384 {offsets = [2, 0], sizes = [2, 96], strides = [1, 1]} : vector<8x96xf32> to vector<2x96xf32>
    %815 = arith.truncf %812 : vector<2x32xf32> to vector<2x32xbf16>
    %cst_123 = arith.constant dense<0.000000e+00> : vector<2x96xf32>
    %816 = tpu.matmul %815, %356, %cst_123 {dimension_numbers = #tpu.dot_dimension_numbers<[1], [0], [0], [1], [0, 0, 1, 1], [], []>} : vector<2x32xbf16>, vector<32x96xbf16>, vector<2x96xf32> -> vector<2x96xf32>
    %817 = vector.broadcast %358 : vector<1x96xf32> to vector<2x96xf32>
    %818 = arith.addf %816, %817 : vector<2x96xf32>
    %819 = vector.extract_strided_slice %814 {offsets = [0, 0], sizes = [2, 64], strides = [1, 1]} : vector<2x96xf32> to vector<2x64xf32>
    %820 = vector.extract_strided_slice %818 {offsets = [0, 0], sizes = [2, 64], strides = [1, 1]} : vector<2x96xf32> to vector<2x64xf32>
    %821 = arith.addf %819, %820 : vector<2x64xf32>
    %822 = arith.negf %821 : vector<2x64xf32>
    %823 = math.exp %822 : vector<2x64xf32>
    %cst_124 = arith.constant 1.000000e+00 : f32
    %824 = vector.broadcast %cst_124 : f32 to vector<2x64xf32>
    %825 = arith.addf %824, %823 : vector<2x64xf32>
    %826 = arith.divf %824, %825 : vector<2x64xf32>
    %827 = vector.extract_strided_slice %826 {offsets = [0, 0], sizes = [2, 32], strides = [1, 1]} : vector<2x64xf32> to vector<2x32xf32>
    %828 = vector.extract_strided_slice %826 {offsets = [0, 32], sizes = [2, 32], strides = [1, 1]} : vector<2x64xf32> to vector<2x32xf32>
    %829 = vector.extract_strided_slice %814 {offsets = [0, 64], sizes = [2, 32], strides = [1, 1]} : vector<2x96xf32> to vector<2x32xf32>
    %830 = vector.extract_strided_slice %818 {offsets = [0, 64], sizes = [2, 32], strides = [1, 1]} : vector<2x96xf32> to vector<2x32xf32>
    %831 = arith.mulf %827, %830 : vector<2x32xf32>
    %832 = arith.addf %829, %831 : vector<2x32xf32>
    %833 = math.tanh %832 : vector<2x32xf32>
    %cst_125 = arith.constant 1.000000e+00 : f32
    %834 = vector.broadcast %cst_125 : f32 to vector<2x32xf32>
    %835 = arith.subf %834, %828 : vector<2x32xf32>
    %836 = arith.mulf %835, %833 : vector<2x32xf32>
    %837 = arith.mulf %828, %812 : vector<2x32xf32>
    %838 = arith.addf %836, %837 : vector<2x32xf32>
    %839 = vector.broadcast %813 : vector<2x1xf32> to vector<2x32xf32>
    %840 = arith.mulf %839, %838 : vector<2x32xf32>
    %cst_126 = arith.constant 1.000000e+00 : f32
    %841 = vector.broadcast %cst_126 : f32 to vector<2x1xf32>
    %842 = arith.subf %841, %813 : vector<2x1xf32>
    %843 = vector.broadcast %842 : vector<2x1xf32> to vector<2x32xf32>
    %844 = arith.mulf %843, %812 : vector<2x32xf32>
    %845 = arith.addf %840, %844 : vector<2x32xf32>
    %846 = vector.extract_strided_slice %778 {offsets = [4, 0], sizes = [2, 1], strides = [1, 1]} : vector<8x1xf32> to vector<2x1xf32>
    %847 = vector.extract_strided_slice %384 {offsets = [4, 0], sizes = [2, 96], strides = [1, 1]} : vector<8x96xf32> to vector<2x96xf32>
    %848 = arith.truncf %845 : vector<2x32xf32> to vector<2x32xbf16>
    %cst_127 = arith.constant dense<0.000000e+00> : vector<2x96xf32>
    %849 = tpu.matmul %848, %356, %cst_127 {dimension_numbers = #tpu.dot_dimension_numbers<[1], [0], [0], [1], [0, 0, 1, 1], [], []>} : vector<2x32xbf16>, vector<32x96xbf16>, vector<2x96xf32> -> vector<2x96xf32>
    %850 = vector.broadcast %358 : vector<1x96xf32> to vector<2x96xf32>
    %851 = arith.addf %849, %850 : vector<2x96xf32>
    %852 = vector.extract_strided_slice %847 {offsets = [0, 0], sizes = [2, 64], strides = [1, 1]} : vector<2x96xf32> to vector<2x64xf32>
    %853 = vector.extract_strided_slice %851 {offsets = [0, 0], sizes = [2, 64], strides = [1, 1]} : vector<2x96xf32> to vector<2x64xf32>
    %854 = arith.addf %852, %853 : vector<2x64xf32>
    %855 = arith.negf %854 : vector<2x64xf32>
    %856 = math.exp %855 : vector<2x64xf32>
    %cst_128 = arith.constant 1.000000e+00 : f32
    %857 = vector.broadcast %cst_128 : f32 to vector<2x64xf32>
    %858 = arith.addf %857, %856 : vector<2x64xf32>
    %859 = arith.divf %857, %858 : vector<2x64xf32>
    %860 = vector.extract_strided_slice %859 {offsets = [0, 0], sizes = [2, 32], strides = [1, 1]} : vector<2x64xf32> to vector<2x32xf32>
    %861 = vector.extract_strided_slice %859 {offsets = [0, 32], sizes = [2, 32], strides = [1, 1]} : vector<2x64xf32> to vector<2x32xf32>
    %862 = vector.extract_strided_slice %847 {offsets = [0, 64], sizes = [2, 32], strides = [1, 1]} : vector<2x96xf32> to vector<2x32xf32>
    %863 = vector.extract_strided_slice %851 {offsets = [0, 64], sizes = [2, 32], strides = [1, 1]} : vector<2x96xf32> to vector<2x32xf32>
    %864 = arith.mulf %860, %863 : vector<2x32xf32>
    %865 = arith.addf %862, %864 : vector<2x32xf32>
    %866 = math.tanh %865 : vector<2x32xf32>
    %cst_129 = arith.constant 1.000000e+00 : f32
    %867 = vector.broadcast %cst_129 : f32 to vector<2x32xf32>
    %868 = arith.subf %867, %861 : vector<2x32xf32>
    %869 = arith.mulf %868, %866 : vector<2x32xf32>
    %870 = arith.mulf %861, %845 : vector<2x32xf32>
    %871 = arith.addf %869, %870 : vector<2x32xf32>
    %872 = vector.broadcast %846 : vector<2x1xf32> to vector<2x32xf32>
    %873 = arith.mulf %872, %871 : vector<2x32xf32>
    %cst_130 = arith.constant 1.000000e+00 : f32
    %874 = vector.broadcast %cst_130 : f32 to vector<2x1xf32>
    %875 = arith.subf %874, %846 : vector<2x1xf32>
    %876 = vector.broadcast %875 : vector<2x1xf32> to vector<2x32xf32>
    %877 = arith.mulf %876, %845 : vector<2x32xf32>
    %878 = arith.addf %873, %877 : vector<2x32xf32>
    %879 = vector.extract_strided_slice %778 {offsets = [6, 0], sizes = [2, 1], strides = [1, 1]} : vector<8x1xf32> to vector<2x1xf32>
    %880 = vector.extract_strided_slice %384 {offsets = [6, 0], sizes = [2, 96], strides = [1, 1]} : vector<8x96xf32> to vector<2x96xf32>
    %881 = arith.truncf %878 : vector<2x32xf32> to vector<2x32xbf16>
    %cst_131 = arith.constant dense<0.000000e+00> : vector<2x96xf32>
    %882 = tpu.matmul %881, %356, %cst_131 {dimension_numbers = #tpu.dot_dimension_numbers<[1], [0], [0], [1], [0, 0, 1, 1], [], []>} : vector<2x32xbf16>, vector<32x96xbf16>, vector<2x96xf32> -> vector<2x96xf32>
    %883 = vector.broadcast %358 : vector<1x96xf32> to vector<2x96xf32>
    %884 = arith.addf %882, %883 : vector<2x96xf32>
    %885 = vector.extract_strided_slice %880 {offsets = [0, 0], sizes = [2, 64], strides = [1, 1]} : vector<2x96xf32> to vector<2x64xf32>
    %886 = vector.extract_strided_slice %884 {offsets = [0, 0], sizes = [2, 64], strides = [1, 1]} : vector<2x96xf32> to vector<2x64xf32>
    %887 = arith.addf %885, %886 : vector<2x64xf32>
    %888 = arith.negf %887 : vector<2x64xf32>
    %889 = math.exp %888 : vector<2x64xf32>
    %cst_132 = arith.constant 1.000000e+00 : f32
    %890 = vector.broadcast %cst_132 : f32 to vector<2x64xf32>
    %891 = arith.addf %890, %889 : vector<2x64xf32>
    %892 = arith.divf %890, %891 : vector<2x64xf32>
    %893 = vector.extract_strided_slice %892 {offsets = [0, 0], sizes = [2, 32], strides = [1, 1]} : vector<2x64xf32> to vector<2x32xf32>
    %894 = vector.extract_strided_slice %892 {offsets = [0, 32], sizes = [2, 32], strides = [1, 1]} : vector<2x64xf32> to vector<2x32xf32>
    %895 = vector.extract_strided_slice %880 {offsets = [0, 64], sizes = [2, 32], strides = [1, 1]} : vector<2x96xf32> to vector<2x32xf32>
    %896 = vector.extract_strided_slice %884 {offsets = [0, 64], sizes = [2, 32], strides = [1, 1]} : vector<2x96xf32> to vector<2x32xf32>
    %897 = arith.mulf %893, %896 : vector<2x32xf32>
    %898 = arith.addf %895, %897 : vector<2x32xf32>
    %899 = math.tanh %898 : vector<2x32xf32>
    %cst_133 = arith.constant 1.000000e+00 : f32
    %900 = vector.broadcast %cst_133 : f32 to vector<2x32xf32>
    %901 = arith.subf %900, %894 : vector<2x32xf32>
    %902 = arith.mulf %901, %899 : vector<2x32xf32>
    %903 = arith.mulf %894, %878 : vector<2x32xf32>
    %904 = arith.addf %902, %903 : vector<2x32xf32>
    %905 = vector.broadcast %879 : vector<2x1xf32> to vector<2x32xf32>
    %906 = arith.mulf %905, %904 : vector<2x32xf32>
    %cst_134 = arith.constant 1.000000e+00 : f32
    %907 = vector.broadcast %cst_134 : f32 to vector<2x1xf32>
    %908 = arith.subf %907, %879 : vector<2x1xf32>
    %909 = vector.broadcast %908 : vector<2x1xf32> to vector<2x32xf32>
    %910 = arith.mulf %909, %878 : vector<2x32xf32>
    %911 = arith.addf %906, %910 : vector<2x32xf32>
    %912 = arith.truncf %911 : vector<2x32xf32> to vector<2x32xbf16>
    %cst_135 = arith.constant dense<0.000000e+00> : vector<2x96xf32>
    %913 = tpu.matmul %912, %359, %cst_135 {dimension_numbers = #tpu.dot_dimension_numbers<[1], [0], [0], [1], [0, 0, 1, 1], [], []>} : vector<2x32xbf16>, vector<32x96xbf16>, vector<2x96xf32> -> vector<2x96xf32>
    %914 = vector.broadcast %361 : vector<1x96xf32> to vector<2x96xf32>
    %915 = arith.addf %913, %914 : vector<2x96xf32>
    %916 = arith.truncf %754 : vector<2x32xf32> to vector<2x32xbf16>
    %cst_136 = arith.constant dense<0.000000e+00> : vector<2x96xf32>
    %917 = tpu.matmul %916, %360, %cst_136 {dimension_numbers = #tpu.dot_dimension_numbers<[1], [0], [0], [1], [0, 0, 1, 1], [], []>} : vector<2x32xbf16>, vector<32x96xbf16>, vector<2x96xf32> -> vector<2x96xf32>
    %918 = vector.broadcast %362 : vector<1x96xf32> to vector<2x96xf32>
    %919 = arith.addf %917, %918 : vector<2x96xf32>
    %920 = vector.extract_strided_slice %915 {offsets = [0, 0], sizes = [2, 64], strides = [1, 1]} : vector<2x96xf32> to vector<2x64xf32>
    %921 = vector.extract_strided_slice %919 {offsets = [0, 0], sizes = [2, 64], strides = [1, 1]} : vector<2x96xf32> to vector<2x64xf32>
    %922 = arith.addf %920, %921 : vector<2x64xf32>
    %923 = arith.negf %922 : vector<2x64xf32>
    %924 = math.exp %923 : vector<2x64xf32>
    %cst_137 = arith.constant 1.000000e+00 : f32
    %925 = vector.broadcast %cst_137 : f32 to vector<2x64xf32>
    %926 = arith.addf %925, %924 : vector<2x64xf32>
    %927 = arith.divf %925, %926 : vector<2x64xf32>
    %928 = vector.extract_strided_slice %927 {offsets = [0, 0], sizes = [2, 32], strides = [1, 1]} : vector<2x64xf32> to vector<2x32xf32>
    %929 = vector.extract_strided_slice %927 {offsets = [0, 32], sizes = [2, 32], strides = [1, 1]} : vector<2x64xf32> to vector<2x32xf32>
    %930 = vector.extract_strided_slice %915 {offsets = [0, 64], sizes = [2, 32], strides = [1, 1]} : vector<2x96xf32> to vector<2x32xf32>
    %931 = vector.extract_strided_slice %919 {offsets = [0, 64], sizes = [2, 32], strides = [1, 1]} : vector<2x96xf32> to vector<2x32xf32>
    %932 = arith.mulf %928, %931 : vector<2x32xf32>
    %933 = arith.addf %930, %932 : vector<2x32xf32>
    %934 = math.tanh %933 : vector<2x32xf32>
    %cst_138 = arith.constant 1.000000e+00 : f32
    %935 = vector.broadcast %cst_138 : f32 to vector<2x32xf32>
    %936 = arith.subf %935, %929 : vector<2x32xf32>
    %937 = arith.mulf %936, %934 : vector<2x32xf32>
    %938 = arith.mulf %929, %754 : vector<2x32xf32>
    %939 = arith.addf %937, %938 : vector<2x32xf32>
    %c256 = arith.constant 256 : index
    %c0_139 = arith.constant 0 : index
    %940 = vector.load %arg2[%c256, %c0_139] : memref<352x96xbf16, #tpu.memory_space<vmem>>, vector<32x96xbf16>
    %941 = vector.extract_strided_slice %2 {offsets = [8, 0], sizes = [1, 96], strides = [1, 1]} : vector<10x96xf32> to vector<1x96xf32>
    %942 = vector.extract_strided_slice %2 {offsets = [9, 0], sizes = [1, 96], strides = [1, 1]} : vector<10x96xf32> to vector<1x96xf32>
    %943 = vector.extract_strided_slice %0 {offsets = [58, 0], sizes = [2, 32], strides = [1, 1]} : vector<60x32xbf16> to vector<2x32xbf16>
    %c288 = arith.constant 288 : index
    %c0_140 = arith.constant 0 : index
    %944 = vector.load %arg2[%c288, %c0_140] : memref<352x96xbf16, #tpu.memory_space<vmem>>, vector<32x96xbf16>
    %cst_141 = arith.constant dense<0.000000e+00> : vector<2x96xf32>
    %945 = tpu.matmul %943, %944, %cst_141 {dimension_numbers = #tpu.dot_dimension_numbers<[1], [0], [0], [1], [0, 0, 1, 1], [], []>} : vector<2x32xbf16>, vector<32x96xbf16>, vector<2x96xf32> -> vector<2x96xf32>
    %946 = arith.truncf %354 : vector<2x32xf32> to vector<2x32xbf16>
    %c320 = arith.constant 320 : index
    %c0_142 = arith.constant 0 : index
    %947 = vector.load %arg2[%c320, %c0_142] : memref<352x96xbf16, #tpu.memory_space<vmem>>, vector<32x96xbf16>
    %cst_143 = arith.constant dense<0.000000e+00> : vector<2x96xf32>
    %948 = tpu.matmul %946, %947, %cst_143 {dimension_numbers = #tpu.dot_dimension_numbers<[1], [0], [0], [1], [0, 0, 1, 1], [], []>} : vector<2x32xbf16>, vector<32x96xbf16>, vector<2x96xf32> -> vector<2x96xf32>
    %949 = arith.addf %945, %948 : vector<2x96xf32>
    %950 = vector.broadcast %941 : vector<1x96xf32> to vector<2x96xf32>
    %951 = arith.addf %949, %950 : vector<2x96xf32>
    %c0_144 = arith.constant 0 : index
    %c0_145 = arith.constant 0 : index
    %952 = vector.load %arg6[%c0_144, %c0_145] : memref<33x128xf32, #tpu.memory_space<vmem>>, vector<33x128xf32>
    %953 = vector.extract_strided_slice %952 {offsets = [0, 0], sizes = [32, 128], strides = [1, 1]} : vector<33x128xf32> to vector<32x128xf32>
    %954 = vector.extract_strided_slice %952 {offsets = [32, 0], sizes = [1, 128], strides = [1, 1]} : vector<33x128xf32> to vector<1x128xf32>
    %955 = arith.truncf %939 : vector<2x32xf32> to vector<2x32xbf16>
    %cst_146 = arith.constant dense<0.000000e+00> : vector<2x96xf32>
    %956 = tpu.matmul %955, %940, %cst_146 {dimension_numbers = #tpu.dot_dimension_numbers<[1], [0], [0], [1], [0, 0, 1, 1], [], []>} : vector<2x32xbf16>, vector<32x96xbf16>, vector<2x96xf32> -> vector<2x96xf32>
    %957 = vector.broadcast %942 : vector<1x96xf32> to vector<2x96xf32>
    %958 = arith.addf %956, %957 : vector<2x96xf32>
    %959 = vector.extract_strided_slice %951 {offsets = [0, 0], sizes = [2, 64], strides = [1, 1]} : vector<2x96xf32> to vector<2x64xf32>
    %960 = vector.extract_strided_slice %958 {offsets = [0, 0], sizes = [2, 64], strides = [1, 1]} : vector<2x96xf32> to vector<2x64xf32>
    %961 = arith.addf %959, %960 : vector<2x64xf32>
    %962 = arith.negf %961 : vector<2x64xf32>
    %963 = math.exp %962 : vector<2x64xf32>
    %cst_147 = arith.constant 1.000000e+00 : f32
    %964 = vector.broadcast %cst_147 : f32 to vector<2x64xf32>
    %965 = arith.addf %964, %963 : vector<2x64xf32>
    %966 = arith.divf %964, %965 : vector<2x64xf32>
    %967 = vector.extract_strided_slice %966 {offsets = [0, 0], sizes = [2, 32], strides = [1, 1]} : vector<2x64xf32> to vector<2x32xf32>
    %968 = vector.extract_strided_slice %966 {offsets = [0, 32], sizes = [2, 32], strides = [1, 1]} : vector<2x64xf32> to vector<2x32xf32>
    %969 = vector.extract_strided_slice %951 {offsets = [0, 64], sizes = [2, 32], strides = [1, 1]} : vector<2x96xf32> to vector<2x32xf32>
    %970 = vector.extract_strided_slice %958 {offsets = [0, 64], sizes = [2, 32], strides = [1, 1]} : vector<2x96xf32> to vector<2x32xf32>
    %971 = arith.mulf %967, %970 : vector<2x32xf32>
    %972 = arith.addf %969, %971 : vector<2x32xf32>
    %973 = math.tanh %972 : vector<2x32xf32>
    %cst_148 = arith.constant 1.000000e+00 : f32
    %974 = vector.broadcast %cst_148 : f32 to vector<2x32xf32>
    %975 = arith.subf %974, %968 : vector<2x32xf32>
    %976 = arith.mulf %975, %973 : vector<2x32xf32>
    %977 = arith.mulf %968, %939 : vector<2x32xf32>
    %978 = arith.addf %976, %977 : vector<2x32xf32>
    %cst_149 = arith.constant dense<0.000000e+00> : vector<2x128xf32>
    %979 = tpu.matmul %978, %953, %cst_149 {dimension_numbers = #tpu.dot_dimension_numbers<[1], [0], [0], [1], [0, 0, 1, 1], [], []>} : vector<2x32xf32>, vector<32x128xf32>, vector<2x128xf32> -> vector<2x128xf32>
    %980 = vector.broadcast %954 : vector<1x128xf32> to vector<2x128xf32>
    %981 = arith.addf %979, %980 : vector<2x128xf32>
    %cst_150 = arith.constant dense<0xFF800000> : vector<2xf32>
    %982 = vector.multi_reduction <maximumf>, %981, %cst_150 [1] : vector<2x128xf32> to vector<2xf32>
    %983 = vector.shape_cast %982 : vector<2xf32> to vector<2x1xf32>
    %984 = vector.broadcast %983 : vector<2x1xf32> to vector<2x128xf32>
    %985 = arith.subf %981, %984 : vector<2x128xf32>
    %986 = math.exp %985 : vector<2x128xf32>
    %cst_151 = arith.constant dense<0.000000e+00> : vector<2xf32>
    %987 = vector.multi_reduction <add>, %986, %cst_151 [1] : vector<2x128xf32> to vector<2xf32>
    %988 = vector.shape_cast %987 : vector<2xf32> to vector<2x1xf32>
    %989 = math.log %988 : vector<2x1xf32>
    %990 = vector.broadcast %989 : vector<2x1xf32> to vector<2x128xf32>
    %991 = arith.subf %985, %990 : vector<2x128xf32>
    %992 = arith.truncf %978 : vector<2x32xf32> to vector<2x32xbf16>
    %cst_152 = arith.constant dense<0.000000e+00> : vector<2x96xf32>
    %993 = tpu.matmul %992, %940, %cst_152 {dimension_numbers = #tpu.dot_dimension_numbers<[1], [0], [0], [1], [0, 0, 1, 1], [], []>} : vector<2x32xbf16>, vector<32x96xbf16>, vector<2x96xf32> -> vector<2x96xf32>
    %994 = vector.broadcast %942 : vector<1x96xf32> to vector<2x96xf32>
    %995 = arith.addf %993, %994 : vector<2x96xf32>
    %996 = vector.extract_strided_slice %951 {offsets = [0, 0], sizes = [2, 64], strides = [1, 1]} : vector<2x96xf32> to vector<2x64xf32>
    %997 = vector.extract_strided_slice %995 {offsets = [0, 0], sizes = [2, 64], strides = [1, 1]} : vector<2x96xf32> to vector<2x64xf32>
    %998 = arith.addf %996, %997 : vector<2x64xf32>
    %999 = arith.negf %998 : vector<2x64xf32>
    %1000 = math.exp %999 : vector<2x64xf32>
    %cst_153 = arith.constant 1.000000e+00 : f32
    %1001 = vector.broadcast %cst_153 : f32 to vector<2x64xf32>
    %1002 = arith.addf %1001, %1000 : vector<2x64xf32>
    %1003 = arith.divf %1001, %1002 : vector<2x64xf32>
    %1004 = vector.extract_strided_slice %1003 {offsets = [0, 0], sizes = [2, 32], strides = [1, 1]} : vector<2x64xf32> to vector<2x32xf32>
    %1005 = vector.extract_strided_slice %1003 {offsets = [0, 32], sizes = [2, 32], strides = [1, 1]} : vector<2x64xf32> to vector<2x32xf32>
    %1006 = vector.extract_strided_slice %951 {offsets = [0, 64], sizes = [2, 32], strides = [1, 1]} : vector<2x96xf32> to vector<2x32xf32>
    %1007 = vector.extract_strided_slice %995 {offsets = [0, 64], sizes = [2, 32], strides = [1, 1]} : vector<2x96xf32> to vector<2x32xf32>
    %1008 = arith.mulf %1004, %1007 : vector<2x32xf32>
    %1009 = arith.addf %1006, %1008 : vector<2x32xf32>
    %1010 = math.tanh %1009 : vector<2x32xf32>
    %cst_154 = arith.constant 1.000000e+00 : f32
    %1011 = vector.broadcast %cst_154 : f32 to vector<2x32xf32>
    %1012 = arith.subf %1011, %1005 : vector<2x32xf32>
    %1013 = arith.mulf %1012, %1010 : vector<2x32xf32>
    %1014 = arith.mulf %1005, %978 : vector<2x32xf32>
    %1015 = arith.addf %1013, %1014 : vector<2x32xf32>
    %cst_155 = arith.constant dense<0.000000e+00> : vector<2x128xf32>
    %1016 = tpu.matmul %1015, %953, %cst_155 {dimension_numbers = #tpu.dot_dimension_numbers<[1], [0], [0], [1], [0, 0, 1, 1], [], []>} : vector<2x32xf32>, vector<32x128xf32>, vector<2x128xf32> -> vector<2x128xf32>
    %1017 = vector.broadcast %954 : vector<1x128xf32> to vector<2x128xf32>
    %1018 = arith.addf %1016, %1017 : vector<2x128xf32>
    %cst_156 = arith.constant dense<0xFF800000> : vector<2xf32>
    %1019 = vector.multi_reduction <maximumf>, %1018, %cst_156 [1] : vector<2x128xf32> to vector<2xf32>
    %1020 = vector.shape_cast %1019 : vector<2xf32> to vector<2x1xf32>
    %1021 = vector.broadcast %1020 : vector<2x1xf32> to vector<2x128xf32>
    %1022 = arith.subf %1018, %1021 : vector<2x128xf32>
    %1023 = math.exp %1022 : vector<2x128xf32>
    %cst_157 = arith.constant dense<0.000000e+00> : vector<2xf32>
    %1024 = vector.multi_reduction <add>, %1023, %cst_157 [1] : vector<2x128xf32> to vector<2xf32>
    %1025 = vector.shape_cast %1024 : vector<2xf32> to vector<2x1xf32>
    %1026 = math.log %1025 : vector<2x1xf32>
    %1027 = vector.broadcast %1026 : vector<2x1xf32> to vector<2x128xf32>
    %1028 = arith.subf %1022, %1027 : vector<2x128xf32>
    %1029 = arith.truncf %1015 : vector<2x32xf32> to vector<2x32xbf16>
    %cst_158 = arith.constant dense<0.000000e+00> : vector<2x96xf32>
    %1030 = tpu.matmul %1029, %940, %cst_158 {dimension_numbers = #tpu.dot_dimension_numbers<[1], [0], [0], [1], [0, 0, 1, 1], [], []>} : vector<2x32xbf16>, vector<32x96xbf16>, vector<2x96xf32> -> vector<2x96xf32>
    %1031 = vector.broadcast %942 : vector<1x96xf32> to vector<2x96xf32>
    %1032 = arith.addf %1030, %1031 : vector<2x96xf32>
    %1033 = vector.extract_strided_slice %951 {offsets = [0, 0], sizes = [2, 64], strides = [1, 1]} : vector<2x96xf32> to vector<2x64xf32>
    %1034 = vector.extract_strided_slice %1032 {offsets = [0, 0], sizes = [2, 64], strides = [1, 1]} : vector<2x96xf32> to vector<2x64xf32>
    %1035 = arith.addf %1033, %1034 : vector<2x64xf32>
    %1036 = arith.negf %1035 : vector<2x64xf32>
    %1037 = math.exp %1036 : vector<2x64xf32>
    %cst_159 = arith.constant 1.000000e+00 : f32
    %1038 = vector.broadcast %cst_159 : f32 to vector<2x64xf32>
    %1039 = arith.addf %1038, %1037 : vector<2x64xf32>
    %1040 = arith.divf %1038, %1039 : vector<2x64xf32>
    %1041 = vector.extract_strided_slice %1040 {offsets = [0, 0], sizes = [2, 32], strides = [1, 1]} : vector<2x64xf32> to vector<2x32xf32>
    %1042 = vector.extract_strided_slice %1040 {offsets = [0, 32], sizes = [2, 32], strides = [1, 1]} : vector<2x64xf32> to vector<2x32xf32>
    %1043 = vector.extract_strided_slice %951 {offsets = [0, 64], sizes = [2, 32], strides = [1, 1]} : vector<2x96xf32> to vector<2x32xf32>
    %1044 = vector.extract_strided_slice %1032 {offsets = [0, 64], sizes = [2, 32], strides = [1, 1]} : vector<2x96xf32> to vector<2x32xf32>
    %1045 = arith.mulf %1041, %1044 : vector<2x32xf32>
    %1046 = arith.addf %1043, %1045 : vector<2x32xf32>
    %1047 = math.tanh %1046 : vector<2x32xf32>
    %cst_160 = arith.constant 1.000000e+00 : f32
    %1048 = vector.broadcast %cst_160 : f32 to vector<2x32xf32>
    %1049 = arith.subf %1048, %1042 : vector<2x32xf32>
    %1050 = arith.mulf %1049, %1047 : vector<2x32xf32>
    %1051 = arith.mulf %1042, %1015 : vector<2x32xf32>
    %1052 = arith.addf %1050, %1051 : vector<2x32xf32>
    %cst_161 = arith.constant dense<0.000000e+00> : vector<2x128xf32>
    %1053 = tpu.matmul %1052, %953, %cst_161 {dimension_numbers = #tpu.dot_dimension_numbers<[1], [0], [0], [1], [0, 0, 1, 1], [], []>} : vector<2x32xf32>, vector<32x128xf32>, vector<2x128xf32> -> vector<2x128xf32>
    %1054 = vector.broadcast %954 : vector<1x128xf32> to vector<2x128xf32>
    %1055 = arith.addf %1053, %1054 : vector<2x128xf32>
    %cst_162 = arith.constant dense<0xFF800000> : vector<2xf32>
    %1056 = vector.multi_reduction <maximumf>, %1055, %cst_162 [1] : vector<2x128xf32> to vector<2xf32>
    %1057 = vector.shape_cast %1056 : vector<2xf32> to vector<2x1xf32>
    %1058 = vector.broadcast %1057 : vector<2x1xf32> to vector<2x128xf32>
    %1059 = arith.subf %1055, %1058 : vector<2x128xf32>
    %1060 = math.exp %1059 : vector<2x128xf32>
    %cst_163 = arith.constant dense<0.000000e+00> : vector<2xf32>
    %1061 = vector.multi_reduction <add>, %1060, %cst_163 [1] : vector<2x128xf32> to vector<2xf32>
    %1062 = vector.shape_cast %1061 : vector<2xf32> to vector<2x1xf32>
    %1063 = math.log %1062 : vector<2x1xf32>
    %1064 = vector.broadcast %1063 : vector<2x1xf32> to vector<2x128xf32>
    %1065 = arith.subf %1059, %1064 : vector<2x128xf32>
    %1066 = tpu.concatenate %991, %1028, %1065 in 0 : vector<2x128xf32>, vector<2x128xf32>, vector<2x128xf32> -> vector<6x128xf32>
    %c0_164 = arith.constant 0 : index
    %c0_165 = arith.constant 0 : index
    %1067 = vector.load %arg7[%c0_164, %c0_165] : memref<6x128xf32, #tpu.memory_space<vmem>>, vector<6x128xf32>
    tpu.vector_store %arg7[%c0_164, %c0_165], %1066 {strides = array<i32>} : memref<6x128xf32, #tpu.memory_space<vmem>>, vector<6x128xf32>,
    return
  }
}

</mosaic_0001>

<llo_original>
// kernel: dmn_forward.1
$region0: #{dmn_forward.1}
  #allocation0 [shape = 'u32[]', space=smem, size = 0x4, offset = 0x4, fixed_abs, tag = 'smem constant byte address 0x4 - core index']
  #allocation1 [shape = 'u32[72,128]{1,0:T(1,128)}', space=vmem, size = 0x9000, scoped, tag = 'internal scratch']
  %s0 = inlined_call_operand.vmem [shape: bf16[60,32], index: 0, kind: input, shape index: {}]
  %s1 = inlined_call_operand.vmem [shape: s32[10,1], index: 1, kind: input, shape index: {}]
  %s2 = inlined_call_operand.vmem [shape: bf16[352,96], index: 2, kind: input, shape index: {}]
  %s3 = inlined_call_operand.vmem [shape: f32[10,96], index: 3, kind: input, shape index: {}]
  %s4 = inlined_call_operand.vmem [shape: bf16[128,32], index: 4, kind: input, shape index: {}]
  %s5 = inlined_call_operand.vmem [shape: f32[3,32], index: 5, kind: input, shape index: {}]
  %s6 = inlined_call_operand.vmem [shape: f32[33,128], index: 6, kind: input, shape index: {}]
  %s7 = inlined_call_operand.vmem [shape: f32[6,128], index: 7, kind: output, shape index: {}]
  %s8 = sld [smem:[#allocation0]]
  $region38: #{dmn_forward.1} parent=0
    _
  %s10 = ssub.s32 1, %s8
  %s11 = scalar_select 0, %s10, %s8
  // Predicated region
  $region2: #{dmn_forward.1} parent=0 // pred_check
    _
  $region3: #{dmn_forward.1} parent=0 // pred_check_branch
    %13 = sbr.rel (0) target = $region5
  $region4: #{dmn_forward.1} parent=0 // pred_region
    _
  $region5: #{dmn_forward.1} parent=0 // pred_fallthru
    _
  // Predicated region
  $region6: #{dmn_forward.1} parent=0 // pred_check
    _
  $region7: #{dmn_forward.1} parent=0 // pred_check_branch
    %15 = sbr.rel (0) target = $region9
  $region8: #{dmn_forward.1} parent=0 // pred_region
    _
  $region9: #{dmn_forward.1} parent=0 // pred_fallthru
    _
  // Predicated region
  $region10: #{dmn_forward.1} parent=0 // pred_check
    _
  $region11: #{dmn_forward.1} parent=0 // pred_check_branch
    %17 = sbr.rel (0) target = $region13
  $region12: #{dmn_forward.1} parent=0 // pred_region
    _
  $region13: #{dmn_forward.1} parent=0 // pred_fallthru
    _
  // Predicated region
  $region14: #{dmn_forward.1} parent=0 // pred_check
    _
  $region15: #{dmn_forward.1} parent=0 // pred_check_branch
    %19 = sbr.rel (0) target = $region17
  $region16: #{dmn_forward.1} parent=0 // pred_region
    _
  $region17: #{dmn_forward.1} parent=0 // pred_fallthru
    _
  // Predicated region
  $region18: #{dmn_forward.1} parent=0 // pred_check
    _
  $region19: #{dmn_forward.1} parent=0 // pred_check_branch
    %21 = sbr.rel (0) target = $region21
  $region20: #{dmn_forward.1} parent=0 // pred_region
    _
  $region21: #{dmn_forward.1} parent=0 // pred_fallthru
    _
  // Predicated region
  $region22: #{dmn_forward.1} parent=0 // pred_check
    _
  $region23: #{dmn_forward.1} parent=0 // pred_check_branch
    %23 = sbr.rel (0) target = $region25
  $region24: #{dmn_forward.1} parent=0 // pred_region
    _
  $region25: #{dmn_forward.1} parent=0 // pred_fallthru
    _
  // Predicated region
  $region26: #{dmn_forward.1} parent=0 // pred_check
    _
  $region27: #{dmn_forward.1} parent=0 // pred_check_branch
    %25 = sbr.rel (0) target = $region29
  $region28: #{dmn_forward.1} parent=0 // pred_region
    _
  $region29: #{dmn_forward.1} parent=0 // pred_fallthru
    _
  %v27 = vld [vmem:[%s0] sm:$0xf]
  %v28 = vld [vmem:[%s0 + $0x4] sm:$0xf]
  %v29 = vld [vmem:[%s0 + $0x8] sm:$0xf]
  %v30 = vld [vmem:[%s0 + $0xc] sm:$0xf]
  %v31 = vld [vmem:[%s0 + $0x10] sm:$0xf]
  %v32 = vld [vmem:[%s0 + $0x14] sm:$0xf]
  %v33 = vld [vmem:[%s0 + $0x18] sm:$0xf]
  %v34 = vld [vmem:[%s0 + $0x1c] sm:$0x3]
  %v35 = vld [vmem:[%s1] sm:$0xff]
  %v36 = vld [vmem:[%s1 + $0x8] sm:$0x3]
  %v37 = vld [vmem:[%s3] sm:$0xff]
  %v38 = vld [vmem:[%s3 + $0x8] sm:$0x3]
  %v39 = vld [vmem:[%s2] sm:$0xf]
  %v40 = vld [vmem:[%s2 + $0x4] sm:$0xf]
  %v41 = vld [vmem:[%s2 + $0x8] sm:$0xf]
  %v42 = vld [vmem:[%s2 + $0xc] sm:$0xf]
  %v43 = vperm.slane %v37, 0
  %v50 = vunpack.c.l.b16 %v27
  %v51 = vunpack.c.l.b16 %v28
  %v52 = vunpack.c.l.b16 %v29
  %v53 = vunpack.c.l.b16 %v30
  %v54 = vunpack.c.l.b16 %v31
  %v55 = vunpack.c.l.b16 %v32
  %v56 = vpack.c.b16 %v51, %v50
  %v57 = vpack.c.b16 %v53, %v52
  %v58 = vpack.c.b16 %v55, %v54
  %v63 = vunpack.c.l.b16 %v39
  %v64 = vunpack.c.l.b16 %v40
  %v65 = vunpack.c.l.b16 %v41
  %v66 = vunpack.c.l.b16 %v42
  %v67 = vpack.c.b16 %v64, %v63
  %v68 = vpack.c.b16 %v66, %v65
  %vm71 = vcmask 261120
  %v73 = vsel %vm71, %v56, 0
  %v76 = vsel %vm71, %v57, 0
  %v79 = vsel %vm71, %v58, 0
  %81 = vmatpush.bf16.msra.mxu0 0
  %82 = vmatpush.bf16.msra.mxu0 0
  %83 = vmatpush.bf16.msra.mxu0 0
  %84 = vmatpush.bf16.msra.mxu0 0
  %85 = vmatpush.bf16.msra.mxu0 0
  %86 = vmatpush.bf16.msra.mxu0 0
  %87 = vmatpush.bf16.msra.mxu0 %v68
  %88 = vmatpush.bf16.msra.mxu0 %v67
  %89 = vmatmul.bf16.gmra.mxu0 %v73
  %v90 = vpop.f32.mrf.mxu0
  %v91 = vadd.f32 %v43, %v90
  %v92 = vpop.f32.mrf.mxu0
  %v93 = vadd.f32 %v43, %v92
  %94 = vmatmul.bf16.gmra.mxu0 %v76
  %v95 = vpop.f32.mrf.mxu0
  %v96 = vadd.f32 %v43, %v95
  %v97 = vpop.f32.mrf.mxu0
  %v98 = vadd.f32 %v43, %v97
  %99 = vmatmul.bf16.gmra.mxu0 %v79
  %v100 = vpop.f32.mrf.mxu0
  %v101 = vadd.f32 %v43, %v100
  %v102 = vpop.f32.mrf.mxu0
  %v103 = vadd.f32 %v43, %v102
  %104 = vdwg.mxu0
  %v105 = vld [vmem:[%s2 + $0x10] sm:$0xf]
  %v106 = vld [vmem:[%s2 + $0x14] sm:$0xf]
  %v107 = vld [vmem:[%s2 + $0x18] sm:$0xf]
  %v108 = vld [vmem:[%s2 + $0x1c] sm:$0xf]
  %v109 = vperm.slane %v37, 1
  %v114 = vunpack.c.l.b16 %v105
  %v115 = vunpack.c.l.b16 %v106
  %v116 = vunpack.c.l.b16 %v107
  %v117 = vunpack.c.l.b16 %v108
  %v118 = vpack.c.b16 %v115, %v114
  %v119 = vpack.c.b16 %v117, %v116
  %v123 = vsel %vm71, 0, 0
  %125 = vmatpush.bf16.msra.mxu0 0
  %126 = vmatpush.bf16.msra.mxu0 0
  %127 = vmatpush.bf16.msra.mxu0 0
  %128 = vmatpush.bf16.msra.mxu0 0
  %129 = vmatpush.bf16.msra.mxu0 0
  %130 = vmatpush.bf16.msra.mxu0 0
  %131 = vmatpush.bf16.msra.mxu0 %v119
  %132 = vmatpush.bf16.msra.mxu0 %v118
  %133 = vmatmul.bf16.gmra.mxu0 %v123
  %v134 = vpop.f32.mrf.mxu0
  %v135 = vadd.f32 %v109, %v134
  %v136 = vpop.f32.mrf.mxu0
  %137 = vdwg.mxu0
  %v138 = vadd.f32 %v91, %v135
  %v139 = vxor.u32 %v138, 2147483648
  %v140 = vmul.f32 %v139, 1.442695
  %v141 = vpow.pop %v140
  %v142 = vadd.f32 %v141, 1.0
  %v143 = vrcp.pop %v142
  %v144 = vmul.f32 %v142, %v143
  %v145 = vsub.f32 1.0, %v144
  %v146 = vmul.f32 %v143, %v145
  %v147 = vadd.f32 %v143, %v146
  %vm148 = vweird.f32 %v142
  %vm149 = vweird.f32 %v143
  %vm150 = vmor %vm148, %vm149
  %v151 = vsel %vm150, %v143, %v147
  %v152 = vand.u32 2147483647, %v142
  %vm153 = vcmp.eq.f32.partialorder %v152, 8.507059e+37
  %v154 = vand.u32 %v142, 2147483648
  %v155 = vor.u32 1.1754944e-38, %v154
  %v156 = vsel %vm153, %v155, %v151
  %v157 = vmul.f32 1.0, %v156
  %159 = vrot.lane.b32.xlu0 %v135, 64
  %v160 = vpop.permute.xlu0 %159
  %v162 = vmul.f32 %v157, %v160
  %164 = vrot.lane.b32.xlu0 %v162, 64
  %v165 = vpop.permute.xlu0 %164
  %v167 = vadd.f32 %v91, %v165
  %v168 = vtanh.pop %v167
  %v169 = vsub.f32 1.0, %v157
  %171 = vrot.lane.b32.xlu0 %v168, 96
  %v172 = vpop.permute.xlu0 %171
  %v174 = vmul.f32 %v169, %v172
  %v175 = vmul.f32 %v157, 0.0
  %v176 = vadd.f32 %v174, %v175
  %vm177 = vcmp.eq.s32.totalorder %v35, 1
  %v178 = vsel %vm177, 1, 0
  %179 = vset.pattern.permute.xlu0 0
  %180 = vperm.xlu0 %179, %v178
  %v181 = vpop.permute.xlu0 %180
  %vm182 = vcmp.eq.s32.totalorder %v181, 1
  %v183 = vsel %vm182, %v176, 0.0
  %v184 = vpack.c.bf16 %v176, %v176
  %186 = vrot.lane.b32.xlu0 %v184, 96
  %v187 = vpop.permute.xlu0 %186
  %v189 = vsel %vm71, %v187, 0
  %191 = vmatpush.bf16.msra.mxu0 0
  %192 = vmatpush.bf16.msra.mxu0 0
  %193 = vmatpush.bf16.msra.mxu0 0
  %194 = vmatpush.bf16.msra.mxu0 0
  %195 = vmatpush.bf16.msra.mxu0 0
  %196 = vmatpush.bf16.msra.mxu0 0
  %197 = vmatpush.bf16.msra.mxu0 %v119
  %198 = vmatpush.bf16.msra.mxu0 %v118
  %199 = vmatmul.bf16.gmra.mxu0 %v189
  %v200 = vpop.f32.mrf.mxu0
  %v201 = vadd.f32 %v109, %v200
  %v202 = vpop.f32.mrf.mxu0
  %203 = vdwg.mxu0
  %v204 = vadd.f32 %v93, %v201
  %v205 = vxor.u32 %v204, 2147483648
  %v206 = vmul.f32 %v205, 1.442695
  %v207 = vpow.pop %v206
  %v208 = vadd.f32 %v207, 1.0
  %v209 = vrcp.pop %v208
  %v210 = vmul.f32 %v208, %v209
  %v211 = vsub.f32 1.0, %v210
  %v212 = vmul.f32 %v209, %v211
  %v213 = vadd.f32 %v209, %v212
  %vm214 = vweird.f32 %v208
  %vm215 = vweird.f32 %v209
  %vm216 = vmor %vm214, %vm215
  %v217 = vsel %vm216, %v209, %v213
  %v218 = vand.u32 2147483647, %v208
  %vm219 = vcmp.eq.f32.partialorder %v218, 8.507059e+37
  %v220 = vand.u32 %v208, 2147483648
  %v221 = vor.u32 1.1754944e-38, %v220
  %v222 = vsel %vm219, %v221, %v217
  %v223 = vmul.f32 1.0, %v222
  %225 = vrot.lane.b32.xlu0 %v201, 64
  %v226 = vpop.permute.xlu0 %225
  %v228 = vmul.f32 %v223, %v226
  %230 = vrot.lane.b32.xlu0 %v228, 64
  %v231 = vpop.permute.xlu0 %230
  %v233 = vadd.f32 %v93, %v231
  %v234 = vtanh.pop %v233
  %v235 = vsub.f32 1.0, %v223
  %237 = vrot.lane.b32.xlu0 %v234, 96
  %v238 = vpop.permute.xlu0 %237
  %v240 = vmul.f32 %v235, %v238
  %v241 = vmul.f32 %v223, %v176
  %v242 = vadd.f32 %v240, %v241
  %vm243 = vcmp.eq.s32.totalorder %v35, 2
  %v244 = vsel %vm243, 1, 0
  %245 = vset.pattern.permute.xlu0 0
  %246 = vperm.xlu0 %245, %v244
  %v247 = vpop.permute.xlu0 %246
  %vm248 = vcmp.eq.s32.totalorder %v247, 1
  %v249 = vsel %vm248, %v242, %v183
  %v250 = vpack.c.bf16 %v242, %v242
  %252 = vrot.lane.b32.xlu0 %v250, 96
  %v253 = vpop.permute.xlu0 %252
  %v255 = vsel %vm71, %v253, 0
  %257 = vmatpush.bf16.msra.mxu0 0
  %258 = vmatpush.bf16.msra.mxu0 0
  %259 = vmatpush.bf16.msra.mxu0 0
  %260 = vmatpush.bf16.msra.mxu0 0
  %261 = vmatpush.bf16.msra.mxu0 0
  %262 = vmatpush.bf16.msra.mxu0 0
  %263 = vmatpush.bf16.msra.mxu0 %v119
  %264 = vmatpush.bf16.msra.mxu0 %v118
  %265 = vmatmul.bf16.gmra.mxu0 %v255
  %v266 = vpop.f32.mrf.mxu0
  %v267 = vadd.f32 %v109, %v266
  %v268 = vpop.f32.mrf.mxu0
  %269 = vdwg.mxu0
  %v270 = vadd.f32 %v96, %v267
  %v271 = vxor.u32 %v270, 2147483648
  %v272 = vmul.f32 %v271, 1.442695
  %v273 = vpow.pop %v272
  %v274 = vadd.f32 %v273, 1.0
  %v275 = vrcp.pop %v274
  %v276 = vmul.f32 %v274, %v275
  %v277 = vsub.f32 1.0, %v276
  %v278 = vmul.f32 %v275, %v277
  %v279 = vadd.f32 %v275, %v278
  %vm280 = vweird.f32 %v274
  %vm281 = vweird.f32 %v275
  %vm282 = vmor %vm280, %vm281
  %v283 = vsel %vm282, %v275, %v279
  %v284 = vand.u32 2147483647, %v274
  %vm285 = vcmp.eq.f32.partialorder %v284, 8.507059e+37
  %v286 = vand.u32 %v274, 2147483648
  %v287 = vor.u32 1.1754944e-38, %v286
  %v288 = vsel %vm285, %v287, %v283
  %v289 = vmul.f32 1.0, %v288
  %291 = vrot.lane.b32.xlu0 %v267, 64
  %v292 = vpop.permute.xlu0 %291
  %v294 = vmul.f32 %v289, %v292
  %296 = vrot.lane.b32.xlu0 %v294, 64
  %v297 = vpop.permute.xlu0 %296
  %v299 = vadd.f32 %v96, %v297
  %v300 = vtanh.pop %v299
  %v301 = vsub.f32 1.0, %v289
  %303 = vrot.lane.b32.xlu0 %v300, 96
  %v304 = vpop.permute.xlu0 %303
  %v306 = vmul.f32 %v301, %v304
  %v307 = vmul.f32 %v289, %v242
  %v308 = vadd.f32 %v306, %v307
  %vm309 = vcmp.eq.s32.totalorder %v35, 3
  %v310 = vsel %vm309, 1, 0
  %311 = vset.pattern.permute.xlu0 0
  %312 = vperm.xlu0 %311, %v310
  %v313 = vpop.permute.xlu0 %312
  %vm314 = vcmp.eq.s32.totalorder %v313, 1
  %v315 = vsel %vm314, %v308, %v249
  %v316 = vpack.c.bf16 %v308, %v308
  %318 = vrot.lane.b32.xlu0 %v316, 96
  %v319 = vpop.permute.xlu0 %318
  %v321 = vsel %vm71, %v319, 0
  %323 = vmatpush.bf16.msra.mxu0 0
  %324 = vmatpush.bf16.msra.mxu0 0
  %325 = vmatpush.bf16.msra.mxu0 0
  %326 = vmatpush.bf16.msra.mxu0 0
  %327 = vmatpush.bf16.msra.mxu0 0
  %328 = vmatpush.bf16.msra.mxu0 0
  %329 = vmatpush.bf16.msra.mxu0 %v119
  %330 = vmatpush.bf16.msra.mxu0 %v118
  %331 = vmatmul.bf16.gmra.mxu0 %v321
  %v332 = vpop.f32.mrf.mxu0
  %v333 = vadd.f32 %v109, %v332
  %v334 = vpop.f32.mrf.mxu0
  %335 = vdwg.mxu0
  %v336 = vadd.f32 %v98, %v333
  %v337 = vxor.u32 %v336, 2147483648
  %v338 = vmul.f32 %v337, 1.442695
  %v339 = vpow.pop %v338
  %v340 = vadd.f32 %v339, 1.0
  %v341 = vrcp.pop %v340
  %v342 = vmul.f32 %v340, %v341
  %v343 = vsub.f32 1.0, %v342
  %v344 = vmul.f32 %v341, %v343
  %v345 = vadd.f32 %v341, %v344
  %vm346 = vweird.f32 %v340
  %vm347 = vweird.f32 %v341
  %vm348 = vmor %vm346, %vm347
  %v349 = vsel %vm348, %v341, %v345
  %v350 = vand.u32 2147483647, %v340
  %vm351 = vcmp.eq.f32.partialorder %v350, 8.507059e+37
  %v352 = vand.u32 %v340, 2147483648
  %v353 = vor.u32 1.1754944e-38, %v352
  %v354 = vsel %vm351, %v353, %v349
  %v355 = vmul.f32 1.0, %v354
  %357 = vrot.lane.b32.xlu0 %v333, 64
  %v358 = vpop.permute.xlu0 %357
  %v360 = vmul.f32 %v355, %v358
  %362 = vrot.lane.b32.xlu0 %v360, 64
  %v363 = vpop.permute.xlu0 %362
  %v365 = vadd.f32 %v98, %v363
  %v366 = vtanh.pop %v365
  %v367 = vsub.f32 1.0, %v355
  %369 = vrot.lane.b32.xlu0 %v366, 96
  %v370 = vpop.permute.xlu0 %369
  %v372 = vmul.f32 %v367, %v370
  %v373 = vmul.f32 %v355, %v308
  %v374 = vadd.f32 %v372, %v373
  %vm375 = vcmp.eq.s32.totalorder %v35, 4
  %v376 = vsel %vm375, 1, 0
  %377 = vset.pattern.permute.xlu0 0
  %378 = vperm.xlu0 %377, %v376
  %v379 = vpop.permute.xlu0 %378
  %vm380 = vcmp.eq.s32.totalorder %v379, 1
  %v381 = vsel %vm380, %v374, %v315
  %v382 = vpack.c.bf16 %v374, %v374
  %384 = vrot.lane.b32.xlu0 %v382, 96
  %v385 = vpop.permute.xlu0 %384
  %v387 = vsel %vm71, %v385, 0
  %389 = vmatpush.bf16.msra.mxu0 0
  %390 = vmatpush.bf16.msra.mxu0 0
  %391 = vmatpush.bf16.msra.mxu0 0
  %392 = vmatpush.bf16.msra.mxu0 0
  %393 = vmatpush.bf16.msra.mxu0 0
  %394 = vmatpush.bf16.msra.mxu0 0
  %395 = vmatpush.bf16.msra.mxu0 %v119
  %396 = vmatpush.bf16.msra.mxu0 %v118
  %397 = vmatmul.bf16.gmra.mxu0 %v387
  %v398 = vpop.f32.mrf.mxu0
  %v399 = vadd.f32 %v109, %v398
  %v400 = vpop.f32.mrf.mxu0
  %401 = vdwg.mxu0
  %v402 = vadd.f32 %v101, %v399
  %v403 = vxor.u32 %v402, 2147483648
  %v404 = vmul.f32 %v403, 1.442695
  %v405 = vpow.pop %v404
  %v406 = vadd.f32 %v405, 1.0
  %v407 = vrcp.pop %v406
  %v408 = vmul.f32 %v406, %v407
  %v409 = vsub.f32 1.0, %v408
  %v410 = vmul.f32 %v407, %v409
  %v411 = vadd.f32 %v407, %v410
  %vm412 = vweird.f32 %v406
  %vm413 = vweird.f32 %v407
  %vm414 = vmor %vm412, %vm413
  %v415 = vsel %vm414, %v407, %v411
  %v416 = vand.u32 2147483647, %v406
  %vm417 = vcmp.eq.f32.partialorder %v416, 8.507059e+37
  %v418 = vand.u32 %v406, 2147483648
  %v419 = vor.u32 1.1754944e-38, %v418
  %v420 = vsel %vm417, %v419, %v415
  %v421 = vmul.f32 1.0, %v420
  %423 = vrot.lane.b32.xlu0 %v399, 64
  %v424 = vpop.permute.xlu0 %423
  %v426 = vmul.f32 %v421, %v424
  %428 = vrot.lane.b32.xlu0 %v426, 64
  %v429 = vpop.permute.xlu0 %428
  %v431 = vadd.f32 %v101, %v429
  %v432 = vtanh.pop %v431
  %v433 = vsub.f32 1.0, %v421
  %435 = vrot.lane.b32.xlu0 %v432, 96
  %v436 = vpop.permute.xlu0 %435
  %v438 = vmul.f32 %v433, %v436
  %v439 = vmul.f32 %v421, %v374
  %v440 = vadd.f32 %v438, %v439
  %vm441 = vcmp.eq.s32.totalorder %v35, 5
  %v442 = vsel %vm441, 1, 0
  %443 = vset.pattern.permute.xlu0 0
  %444 = vperm.xlu0 %443, %v442
  %v445 = vpop.permute.xlu0 %444
  %vm446 = vcmp.eq.s32.totalorder %v445, 1
  %v447 = vsel %vm446, %v440, %v381
  %v448 = vpack.c.bf16 %v440, %v440
  %450 = vrot.lane.b32.xlu0 %v448, 96
  %v451 = vpop.permute.xlu0 %450
  %v453 = vsel %vm71, %v451, 0
  %455 = vmatpush.bf16.msra.mxu0 0
  %456 = vmatpush.bf16.msra.mxu0 0
  %457 = vmatpush.bf16.msra.mxu0 0
  %458 = vmatpush.bf16.msra.mxu0 0
  %459 = vmatpush.bf16.msra.mxu0 0
  %460 = vmatpush.bf16.msra.mxu0 0
  %461 = vmatpush.bf16.msra.mxu0 %v119
  %462 = vmatpush.bf16.msra.mxu0 %v118
  %463 = vmatmul.bf16.gmra.mxu0 %v453
  %v464 = vpop.f32.mrf.mxu0
  %v465 = vadd.f32 %v109, %v464
  %v466 = vpop.f32.mrf.mxu0
  %467 = vdwg.mxu0
  %v468 = vadd.f32 %v103, %v465
  %v469 = vxor.u32 %v468, 2147483648
  %v470 = vmul.f32 %v469, 1.442695
  %v471 = vpow.pop %v470
  %v472 = vadd.f32 %v471, 1.0
  %v473 = vrcp.pop %v472
  %v474 = vmul.f32 %v472, %v473
  %v475 = vsub.f32 1.0, %v474
  %v476 = vmul.f32 %v473, %v475
  %v477 = vadd.f32 %v473, %v476
  %vm478 = vweird.f32 %v472
  %vm479 = vweird.f32 %v473
  %vm480 = vmor %vm478, %vm479
  %v481 = vsel %vm480, %v473, %v477
  %v482 = vand.u32 2147483647, %v472
  %vm483 = vcmp.eq.f32.partialorder %v482, 8.507059e+37
  %v484 = vand.u32 %v472, 2147483648
  %v485 = vor.u32 1.1754944e-38, %v484
  %v486 = vsel %vm483, %v485, %v481
  %v487 = vmul.f32 1.0, %v486
  %489 = vrot.lane.b32.xlu0 %v465, 64
  %v490 = vpop.permute.xlu0 %489
  %v492 = vmul.f32 %v487, %v490
  %494 = vrot.lane.b32.xlu0 %v492, 64
  %v495 = vpop.permute.xlu0 %494
  %v497 = vadd.f32 %v103, %v495
  %v498 = vtanh.pop %v497
  %v499 = vsub.f32 1.0, %v487
  %501 = vrot.lane.b32.xlu0 %v498, 96
  %v502 = vpop.permute.xlu0 %501
  %v504 = vmul.f32 %v499, %v502
  %v505 = vmul.f32 %v487, %v440
  %v506 = vadd.f32 %v504, %v505
  %vm507 = vcmp.eq.s32.totalorder %v35, 6
  %v508 = vsel %vm507, 1, 0
  %509 = vset.pattern.permute.xlu0 0
  %510 = vperm.xlu0 %509, %v508
  %v511 = vpop.permute.xlu0 %510
  %vm512 = vcmp.eq.s32.totalorder %v511, 1
  %v513 = vsel %vm512, %v506, %v447
  %v514 = vld [vmem:[%s2 + $0x20] sm:$0xf]
  %v515 = vld [vmem:[%s2 + $0x24] sm:$0xf]
  %v516 = vld [vmem:[%s2 + $0x28] sm:$0xf]
  %v517 = vld [vmem:[%s2 + $0x2c] sm:$0xf]
  %v518 = vperm.slane %v37, 2
  %v521 = vunpack.c.l.b16 %v33
  %v522 = vunpack.c.l.b16 %v34
  %v523 = vpack.c.b16 %v522, %v521
  %v528 = vunpack.c.l.b16 %v514
  %v529 = vunpack.c.l.b16 %v515
  %v530 = vunpack.c.l.b16 %v516
  %v531 = vunpack.c.l.b16 %v517
  %v532 = vpack.c.b16 %v529, %v528
  %v533 = vpack.c.b16 %v531, %v530
  %v537 = vsel %vm71, %v523, 0
  %539 = vmatpush.bf16.msra.mxu0 0
  %540 = vmatpush.bf16.msra.mxu0 0
  %541 = vmatpush.bf16.msra.mxu0 0
  %542 = vmatpush.bf16.msra.mxu0 0
  %543 = vmatpush.bf16.msra.mxu0 0
  %544 = vmatpush.bf16.msra.mxu0 0
  %545 = vmatpush.bf16.msra.mxu0 %v533
  %546 = vmatpush.bf16.msra.mxu0 %v532
  %547 = vmatmul.bf16.gmra.mxu0 %v537
  %v548 = vpop.f32.mrf.mxu0
  %v549 = vadd.f32 %v518, %v548
  %v550 = vpop.f32.mrf.mxu0
  %v551 = vadd.f32 %v518, %v550
  %552 = vdwg.mxu0
  %v553 = vld [vmem:[%s2 + $0x30] sm:$0xf]
  %v554 = vld [vmem:[%s2 + $0x34] sm:$0xf]
  %v555 = vld [vmem:[%s2 + $0x38] sm:$0xf]
  %v556 = vld [vmem:[%s2 + $0x3c] sm:$0xf]
  %v557 = vperm.slane %v37, 3
  %v562 = vunpack.c.l.b16 %v553
  %v563 = vunpack.c.l.b16 %v554
  %v564 = vunpack.c.l.b16 %v555
  %v565 = vunpack.c.l.b16 %v556
  %v566 = vpack.c.b16 %v563, %v562
  %v567 = vpack.c.b16 %v565, %v564
  %570 = vmatpush.bf16.msra.mxu0 0
  %571 = vmatpush.bf16.msra.mxu0 0
  %572 = vmatpush.bf16.msra.mxu0 0
  %573 = vmatpush.bf16.msra.mxu0 0
  %574 = vmatpush.bf16.msra.mxu0 0
  %575 = vmatpush.bf16.msra.mxu0 0
  %576 = vmatpush.bf16.msra.mxu0 %v567
  %577 = vmatpush.bf16.msra.mxu0 %v566
  %578 = vmatmul.bf16.gmra.mxu0 %v123
  %v579 = vpop.f32.mrf.mxu0
  %v580 = vadd.f32 %v557, %v579
  %v581 = vpop.f32.mrf.mxu0
  %582 = vdwg.mxu0
  %v583 = vadd.f32 %v549, %v580
  %v584 = vxor.u32 %v583, 2147483648
  %v585 = vmul.f32 %v584, 1.442695
  %v586 = vpow.pop %v585
  %v587 = vadd.f32 %v586, 1.0
  %v588 = vrcp.pop %v587
  %v589 = vmul.f32 %v587, %v588
  %v590 = vsub.f32 1.0, %v589
  %v591 = vmul.f32 %v588, %v590
  %v592 = vadd.f32 %v588, %v591
  %vm593 = vweird.f32 %v587
  %vm594 = vweird.f32 %v588
  %vm595 = vmor %vm593, %vm594
  %v596 = vsel %vm595, %v588, %v592
  %v597 = vand.u32 2147483647, %v587
  %vm598 = vcmp.eq.f32.partialorder %v597, 8.507059e+37
  %v599 = vand.u32 %v587, 2147483648
  %v600 = vor.u32 1.1754944e-38, %v599
  %v601 = vsel %vm598, %v600, %v596
  %v602 = vmul.f32 1.0, %v601
  %604 = vrot.lane.b32.xlu0 %v580, 64
  %v605 = vpop.permute.xlu0 %604
  %v607 = vmul.f32 %v602, %v605
  %609 = vrot.lane.b32.xlu0 %v607, 64
  %v610 = vpop.permute.xlu0 %609
  %v612 = vadd.f32 %v549, %v610
  %v613 = vtanh.pop %v612
  %v614 = vsub.f32 1.0, %v602
  %616 = vrot.lane.b32.xlu0 %v613, 96
  %v617 = vpop.permute.xlu0 %616
  %v619 = vmul.f32 %v614, %v617
  %v620 = vmul.f32 %v602, 0.0
  %v621 = vadd.f32 %v619, %v620
  %vm622 = vcmp.eq.s32.totalorder %v36, 1
  %v623 = vsel %vm622, 1, 0
  %624 = vset.pattern.permute.xlu0 0
  %625 = vperm.xlu0 %624, %v623
  %v626 = vpop.permute.xlu0 %625
  %vm627 = vcmp.eq.s32.totalorder %v626, 1
  %v628 = vsel %vm627, %v621, 0.0
  %v629 = vpack.c.bf16 %v621, %v621
  %631 = vrot.lane.b32.xlu0 %v629, 96
  %v632 = vpop.permute.xlu0 %631
  %v634 = vsel %vm71, %v632, 0
  %636 = vmatpush.bf16.msra.mxu0 0
  %637 = vmatpush.bf16.msra.mxu0 0
  %638 = vmatpush.bf16.msra.mxu0 0
  %639 = vmatpush.bf16.msra.mxu0 0
  %640 = vmatpush.bf16.msra.mxu0 0
  %641 = vmatpush.bf16.msra.mxu0 0
  %642 = vmatpush.bf16.msra.mxu0 %v567
  %643 = vmatpush.bf16.msra.mxu0 %v566
  %644 = vmatmul.bf16.gmra.mxu0 %v634
  %v645 = vpop.f32.mrf.mxu0
  %v646 = vadd.f32 %v557, %v645
  %v647 = vpop.f32.mrf.mxu0
  %648 = vdwg.mxu0
  %v650 = vrot.slane %v646, 6
  %v652 = vadd.f32 %v549, %v650
  %v653 = vxor.u32 %v652, 2147483648
  %v654 = vmul.f32 %v653, 1.442695
  %v655 = vpow.pop %v654
  %v656 = vadd.f32 %v655, 1.0
  %v657 = vrcp.pop %v656
  %v658 = vmul.f32 %v656, %v657
  %v659 = vsub.f32 1.0, %v658
  %v660 = vmul.f32 %v657, %v659
  %v661 = vadd.f32 %v657, %v660
  %vm662 = vweird.f32 %v656
  %vm663 = vweird.f32 %v657
  %vm664 = vmor %vm662, %vm663
  %v665 = vsel %vm664, %v657, %v661
  %v666 = vand.u32 2147483647, %v656
  %vm667 = vcmp.eq.f32.partialorder %v666, 8.507059e+37
  %v668 = vand.u32 %v656, 2147483648
  %v669 = vor.u32 1.1754944e-38, %v668
  %v670 = vsel %vm667, %v669, %v665
  %v671 = vmul.f32 1.0, %v670
  %672 = vrot.lane.b32.xlu0 %v650, 64
  %v673 = vpop.permute.xlu0 %672
  %v675 = vmul.f32 %v671, %v673
  %677 = vrot.lane.b32.xlu0 %v675, 64
  %v678 = vpop.permute.xlu0 %677
  %v680 = vadd.f32 %v549, %v678
  %v681 = vtanh.pop %v680
  %v682 = vsub.f32 1.0, %v671
  %684 = vrot.lane.b32.xlu0 %v681, 96
  %v685 = vpop.permute.xlu0 %684
  %v687 = vmul.f32 %v682, %v685
  %v689 = vrot.slane %v621, 6
  %v691 = vmul.f32 %v671, %v689
  %v692 = vadd.f32 %v687, %v691
  %vm693 = vcmp.eq.s32.totalorder %v36, 2
  %v694 = vsel %vm693, 1, 0
  %695 = vset.pattern.permute.xlu0 0
  %696 = vperm.xlu0 %695, %v694
  %v697 = vpop.permute.xlu0 %696
  %vm698 = vcmp.eq.s32.totalorder %v697, 1
  %v700 = vrot.slane %v692, 2
  %701 = vrot.lane.b32.xlu0 %v700, 96
  %v702 = vpop.permute.xlu0 %701
  %705 = vrot.lane.b32.xlu0 %v628, 96
  %v706 = vpop.permute.xlu0 %705
  %v708 = vsel %vm698, %v702, %v706
  %v709 = vpack.c.bf16 %v692, %v692
  %v711 = vrot.slane %v709, 1
  %712 = vrot.lane.b32.xlu0 %v711, 96
  %v713 = vpop.permute.xlu0 %712
  %v715 = vsel %vm71, %v713, 0
  %717 = vmatpush.bf16.msra.mxu0 0
  %718 = vmatpush.bf16.msra.mxu0 0
  %719 = vmatpush.bf16.msra.mxu0 0
  %720 = vmatpush.bf16.msra.mxu0 0
  %721 = vmatpush.bf16.msra.mxu0 0
  %722 = vmatpush.bf16.msra.mxu0 0
  %723 = vmatpush.bf16.msra.mxu0 %v567
  %724 = vmatpush.bf16.msra.mxu0 %v566
  %725 = vmatmul.bf16.gmra.mxu0 %v715
  %v726 = vpop.f32.mrf.mxu0
  %v727 = vadd.f32 %v557, %v726
  %v728 = vpop.f32.mrf.mxu0
  %729 = vdwg.mxu0
  %v731 = vrot.slane %v727, 4
  %v733 = vadd.f32 %v549, %v731
  %v734 = vxor.u32 %v733, 2147483648
  %v735 = vmul.f32 %v734, 1.442695
  %v736 = vpow.pop %v735
  %v737 = vadd.f32 %v736, 1.0
  %v738 = vrcp.pop %v737
  %v739 = vmul.f32 %v737, %v738
  %v740 = vsub.f32 1.0, %v739
  %v741 = vmul.f32 %v738, %v740
  %v742 = vadd.f32 %v738, %v741
  %vm743 = vweird.f32 %v737
  %vm744 = vweird.f32 %v738
  %vm745 = vmor %vm743, %vm744
  %v746 = vsel %vm745, %v738, %v742
  %v747 = vand.u32 2147483647, %v737
  %vm748 = vcmp.eq.f32.partialorder %v747, 8.507059e+37
  %v749 = vand.u32 %v737, 2147483648
  %v750 = vor.u32 1.1754944e-38, %v749
  %v751 = vsel %vm748, %v750, %v746
  %v752 = vmul.f32 1.0, %v751
  %753 = vrot.lane.b32.xlu0 %v731, 64
  %v754 = vpop.permute.xlu0 %753
  %v756 = vmul.f32 %v752, %v754
  %758 = vrot.lane.b32.xlu0 %v756, 64
  %v759 = vpop.permute.xlu0 %758
  %v761 = vadd.f32 %v549, %v759
  %v762 = vtanh.pop %v761
  %v763 = vsub.f32 1.0, %v752
  %765 = vrot.lane.b32.xlu0 %v762, 96
  %v766 = vpop.permute.xlu0 %765
  %v768 = vmul.f32 %v763, %v766
  %v769 = vrot.slane %v692, 6
  %v771 = vmul.f32 %v752, %v769
  %v772 = vadd.f32 %v768, %v771
  %vm773 = vcmp.eq.s32.totalorder %v36, 3
  %v774 = vsel %vm773, 1, 0
  %775 = vset.pattern.permute.xlu0 0
  %776 = vperm.xlu0 %775, %v774
  %v777 = vpop.permute.xlu0 %776
  %vm778 = vcmp.eq.s32.totalorder %v777, 1
  %v780 = vrot.slane %v772, 4
  %781 = vrot.lane.b32.xlu0 %v780, 96
  %v782 = vpop.permute.xlu0 %781
  %v784 = vsel %vm778, %v782, %v708
  %v785 = vpack.c.bf16 %v772, %v772
  %v787 = vrot.slane %v785, 2
  %788 = vrot.lane.b32.xlu0 %v787, 96
  %v789 = vpop.permute.xlu0 %788
  %v791 = vsel %vm71, %v789, 0
  %793 = vmatpush.bf16.msra.mxu0 0
  %794 = vmatpush.bf16.msra.mxu0 0
  %795 = vmatpush.bf16.msra.mxu0 0
  %796 = vmatpush.bf16.msra.mxu0 0
  %797 = vmatpush.bf16.msra.mxu0 0
  %798 = vmatpush.bf16.msra.mxu0 0
  %799 = vmatpush.bf16.msra.mxu0 %v567
  %800 = vmatpush.bf16.msra.mxu0 %v566
  %801 = vmatmul.bf16.gmra.mxu0 %v791
  %v802 = vpop.f32.mrf.mxu0
  %v803 = vadd.f32 %v557, %v802
  %v804 = vpop.f32.mrf.mxu0
  %805 = vdwg.mxu0
  %v807 = vrot.slane %v803, 2
  %v809 = vadd.f32 %v549, %v807
  %v810 = vxor.u32 %v809, 2147483648
  %v811 = vmul.f32 %v810, 1.442695
  %v812 = vpow.pop %v811
  %v813 = vadd.f32 %v812, 1.0
  %v814 = vrcp.pop %v813
  %v815 = vmul.f32 %v813, %v814
  %v816 = vsub.f32 1.0, %v815
  %v817 = vmul.f32 %v814, %v816
  %v818 = vadd.f32 %v814, %v817
  %vm819 = vweird.f32 %v813
  %vm820 = vweird.f32 %v814
  %vm821 = vmor %vm819, %vm820
  %v822 = vsel %vm821, %v814, %v818
  %v823 = vand.u32 2147483647, %v813
  %vm824 = vcmp.eq.f32.partialorder %v823, 8.507059e+37
  %v825 = vand.u32 %v813, 2147483648
  %v826 = vor.u32 1.1754944e-38, %v825
  %v827 = vsel %vm824, %v826, %v822
  %v828 = vmul.f32 1.0, %v827
  %829 = vrot.lane.b32.xlu0 %v807, 64
  %v830 = vpop.permute.xlu0 %829
  %v832 = vmul.f32 %v828, %v830
  %834 = vrot.lane.b32.xlu0 %v832, 64
  %v835 = vpop.permute.xlu0 %834
  %v837 = vadd.f32 %v549, %v835
  %v838 = vtanh.pop %v837
  %v839 = vsub.f32 1.0, %v828
  %841 = vrot.lane.b32.xlu0 %v838, 96
  %v842 = vpop.permute.xlu0 %841
  %v844 = vmul.f32 %v839, %v842
  %v845 = vrot.slane %v772, 6
  %v847 = vmul.f32 %v828, %v845
  %v848 = vadd.f32 %v844, %v847
  %vm849 = vcmp.eq.s32.totalorder %v36, 4
  %v850 = vsel %vm849, 1, 0
  %851 = vset.pattern.permute.xlu0 0
  %852 = vperm.xlu0 %851, %v850
  %v853 = vpop.permute.xlu0 %852
  %vm854 = vcmp.eq.s32.totalorder %v853, 1
  %v856 = vrot.slane %v848, 6
  %857 = vrot.lane.b32.xlu0 %v856, 96
  %v858 = vpop.permute.xlu0 %857
  %v860 = vsel %vm854, %v858, %v784
  %v861 = vpack.c.bf16 %v848, %v848
  %v863 = vrot.slane %v861, 3
  %864 = vrot.lane.b32.xlu0 %v863, 96
  %v865 = vpop.permute.xlu0 %864
  %v867 = vsel %vm71, %v865, 0
  %869 = vmatpush.bf16.msra.mxu0 0
  %870 = vmatpush.bf16.msra.mxu0 0
  %871 = vmatpush.bf16.msra.mxu0 0
  %872 = vmatpush.bf16.msra.mxu0 0
  %873 = vmatpush.bf16.msra.mxu0 0
  %874 = vmatpush.bf16.msra.mxu0 0
  %875 = vmatpush.bf16.msra.mxu0 %v567
  %876 = vmatpush.bf16.msra.mxu0 %v566
  %877 = vmatmul.bf16.gmra.mxu0 %v867
  %v878 = vpop.f32.mrf.mxu0
  %v879 = vadd.f32 %v557, %v878
  %v880 = vpop.f32.mrf.mxu0
  %881 = vdwg.mxu0
  %v882 = vadd.f32 %v551, %v879
  %v883 = vxor.u32 %v882, 2147483648
  %v884 = vmul.f32 %v883, 1.442695
  %v885 = vpow.pop %v884
  %v886 = vadd.f32 %v885, 1.0
  %v887 = vrcp.pop %v886
  %v888 = vmul.f32 %v886, %v887
  %v889 = vsub.f32 1.0, %v888
  %v890 = vmul.f32 %v887, %v889
  %v891 = vadd.f32 %v887, %v890
  %vm892 = vweird.f32 %v886
  %vm893 = vweird.f32 %v887
  %vm894 = vmor %vm892, %vm893
  %v895 = vsel %vm894, %v887, %v891
  %v896 = vand.u32 2147483647, %v886
  %vm897 = vcmp.eq.f32.partialorder %v896, 8.507059e+37
  %v898 = vand.u32 %v886, 2147483648
  %v899 = vor.u32 1.1754944e-38, %v898
  %v900 = vsel %vm897, %v899, %v895
  %v901 = vmul.f32 1.0, %v900
  %903 = vrot.lane.b32.xlu0 %v879, 64
  %v904 = vpop.permute.xlu0 %903
  %v906 = vmul.f32 %v901, %v904
  %908 = vrot.lane.b32.xlu0 %v906, 64
  %v909 = vpop.permute.xlu0 %908
  %v911 = vadd.f32 %v551, %v909
  %v912 = vtanh.pop %v911
  %v913 = vsub.f32 1.0, %v901
  %915 = vrot.lane.b32.xlu0 %v912, 96
  %v916 = vpop.permute.xlu0 %915
  %v918 = vmul.f32 %v913, %v916
  %v920 = vmul.f32 %v901, %v856
  %v921 = vadd.f32 %v918, %v920
  %vm922 = vcmp.eq.s32.totalorder %v36, 5
  %v923 = vsel %vm922, 1, 0
  %924 = vset.pattern.permute.xlu0 0
  %925 = vperm.xlu0 %924, %v923
  %v926 = vpop.permute.xlu0 %925
  %vm927 = vcmp.eq.s32.totalorder %v926, 1
  %929 = vrot.lane.b32.xlu0 %v860, 32
  %v930 = vpop.permute.xlu0 %929
  %v932 = vsel %vm927, %v921, %v930
  %v933 = vld [vmem:[%s2 + $0x40] sm:$0xf]
  %v934 = vld [vmem:[%s2 + $0x44] sm:$0xf]
  %v935 = vld [vmem:[%s2 + $0x48] sm:$0xf]
  %v936 = vld [vmem:[%s2 + $0x4c] sm:$0xf]
  %v937 = vld [vmem:[%s2 + $0x50] sm:$0xf]
  %v938 = vld [vmem:[%s2 + $0x54] sm:$0xf]
  %v939 = vld [vmem:[%s2 + $0x58] sm:$0xf]
  %v940 = vld [vmem:[%s2 + $0x5c] sm:$0xf]
  %v941 = vld [vmem:[%s2 + $0x60] sm:$0xf]
  %v942 = vld [vmem:[%s2 + $0x64] sm:$0xf]
  %v943 = vld [vmem:[%s2 + $0x68] sm:$0xf]
  %v944 = vld [vmem:[%s2 + $0x6c] sm:$0xf]
  %v945 = vld [vmem:[%s2 + $0x70] sm:$0xf]
  %v946 = vld [vmem:[%s2 + $0x74] sm:$0xf]
  %v947 = vld [vmem:[%s2 + $0x78] sm:$0xf]
  %v948 = vld [vmem:[%s2 + $0x7c] sm:$0xf]
  %v949 = vld [vmem:[%s4] sm:$0xf]
  %v950 = vld [vmem:[%s4 + $0x4] sm:$0xf]
  %v951 = vld [vmem:[%s4 + $0x8] sm:$0xf]
  %v952 = vld [vmem:[%s4 + $0xc] sm:$0xf]
  %v953 = vld [vmem:[%s4 + $0x10] sm:$0xf]
  %v954 = vld [vmem:[%s4 + $0x14] sm:$0xf]
  %v955 = vld [vmem:[%s4 + $0x18] sm:$0xf]
  %v956 = vld [vmem:[%s4 + $0x1c] sm:$0xf]
  %v957 = vld [vmem:[%s4 + $0x20] sm:$0xf]
  %v958 = vld [vmem:[%s4 + $0x24] sm:$0xf]
  %v959 = vld [vmem:[%s4 + $0x28] sm:$0xf]
  %v960 = vld [vmem:[%s4 + $0x2c] sm:$0xf]
  %v961 = vld [vmem:[%s4 + $0x30] sm:$0xf]
  %v962 = vld [vmem:[%s4 + $0x34] sm:$0xf]
  %v963 = vld [vmem:[%s4 + $0x38] sm:$0xf]
  %v964 = vld [vmem:[%s4 + $0x3c] sm:$0xf]
  %v965 = vld [vmem:[%s5] sm:$0x7]
  %v966 = vpack.c.bf16 %v513, %v513
  %v968 = vrot.slane %v932, 6
  %v970 = vrot.slane %v932, 4
  %v972 = vrot.slane %v932, 2
  %vm974 = vcmask 1041408
  %v975 = vsel %vm974, %v932, %v968
  %vm976 = vcmask 1043456
  %v977 = vsel %vm976, %v975, %v970
  %vm978 = vcmask 1045504
  %v979 = vsel %vm978, %v977, %v972
  %v980 = vmul.f32 %v513, %v979
  %v981 = vsub.f32 %v513, %v979
  %v982 = vand.u32 2147483647, %v981
  %v983 = vpack.c.bf16 %v980, %v980
  %v984 = vpack.c.bf16 %v982, %v982
  %986 = vrot.lane.b32.xlu0 %v984, 96
  %v987 = vpop.permute.xlu0 %986
  %v992 = vunpack.c.l.b16 %v957
  %v993 = vunpack.c.l.b16 %v958
  %v994 = vunpack.c.l.b16 %v959
  %v995 = vunpack.c.l.b16 %v960
  %v996 = vpack.c.b16 %v993, %v992
  %v997 = vpack.c.b16 %v995, %v994
  %v1001 = vsel %vm71, %v987, 0
  %1003 = vmatpush.bf16.msra.mxu0 0
  %1004 = vmatpush.bf16.msra.mxu0 0
  %1005 = vmatpush.bf16.msra.mxu0 0
  %1006 = vmatpush.bf16.msra.mxu0 0
  %1007 = vmatpush.bf16.msra.mxu0 0
  %1008 = vmatpush.bf16.msra.mxu0 0
  %1009 = vmatpush.bf16.msra.mxu0 %v997
  %1010 = vmatpush.bf16.msra.mxu0 %v996
  %1011 = vmatmul.bf16.gmra.mxu0 %v1001
  %v1012 = vpop.f32.mrf.mxu0
  %v1013 = vadd.f32 0.0, %v1012
  %v1014 = vpop.f32.mrf.mxu0
  %1015 = vdwg.mxu0
  %1017 = vrot.lane.b32.xlu0 %v983, 96
  %v1018 = vpop.permute.xlu0 %1017
  %v1023 = vunpack.c.l.b16 %v949
  %v1024 = vunpack.c.l.b16 %v950
  %v1025 = vunpack.c.l.b16 %v951
  %v1026 = vunpack.c.l.b16 %v952
  %v1027 = vpack.c.b16 %v1024, %v1023
  %v1028 = vpack.c.b16 %v1026, %v1025
  %v1032 = vsel %vm71, %v1018, 0
  %1034 = vmatpush.bf16.msra.mxu0 0
  %1035 = vmatpush.bf16.msra.mxu0 0
  %1036 = vmatpush.bf16.msra.mxu0 0
  %1037 = vmatpush.bf16.msra.mxu0 0
  %1038 = vmatpush.bf16.msra.mxu0 0
  %1039 = vmatpush.bf16.msra.mxu0 0
  %1040 = vmatpush.bf16.msra.mxu0 %v1028
  %1041 = vmatpush.bf16.msra.mxu0 %v1027
  %1042 = vmatmul.bf16.gmra.mxu0 %v1032
  %v1043 = vpop.f32.mrf.mxu0
  %v1044 = vadd.f32 %v1013, %v1043
  %v1045 = vpop.f32.mrf.mxu0
  %1046 = vdwg.mxu0
  %v1047 = vperm.slane %v965, 0
  %v1048 = vadd.f32 %v1044, %v1047
  %v1049 = vperm.slane %v37, 4
  %1051 = vrot.lane.b32.xlu0 %v966, 96
  %v1052 = vpop.permute.xlu0 %1051
  %v1057 = vunpack.c.l.b16 %v933
  %v1058 = vunpack.c.l.b16 %v934
  %v1059 = vunpack.c.l.b16 %v935
  %v1060 = vunpack.c.l.b16 %v936
  %v1061 = vpack.c.b16 %v1058, %v1057
  %v1062 = vpack.c.b16 %v1060, %v1059
  %v1066 = vsel %vm71, %v1052, 0
  %1068 = vmatpush.bf16.msra.mxu0 0
  %1069 = vmatpush.bf16.msra.mxu0 0
  %1070 = vmatpush.bf16.msra.mxu0 0
  %1071 = vmatpush.bf16.msra.mxu0 0
  %1072 = vmatpush.bf16.msra.mxu0 0
  %1073 = vmatpush.bf16.msra.mxu0 0
  %1074 = vmatpush.bf16.msra.mxu0 %v1062
  %1075 = vmatpush.bf16.msra.mxu0 %v1061
  %1076 = vmatmul.bf16.gmra.mxu0 %v1066
  %v1077 = vpop.f32.mrf.mxu0
  %v1078 = vadd.f32 %v1049, %v1077
  %v1079 = vpop.f32.mrf.mxu0
  %1080 = vdwg.mxu0
  %v1085 = vunpack.c.l.b16 %v953
  %v1086 = vunpack.c.l.b16 %v954
  %v1087 = vunpack.c.l.b16 %v955
  %v1088 = vunpack.c.l.b16 %v956
  %v1089 = vpack.c.b16 %v1086, %v1085
  %v1090 = vpack.c.b16 %v1088, %v1087
  %1093 = vmatpush.bf16.msra.mxu0 0
  %1094 = vmatpush.bf16.msra.mxu0 0
  %1095 = vmatpush.bf16.msra.mxu0 0
  %1096 = vmatpush.bf16.msra.mxu0 0
  %1097 = vmatpush.bf16.msra.mxu0 0
  %1098 = vmatpush.bf16.msra.mxu0 0
  %1099 = vmatpush.bf16.msra.mxu0 %v1090
  %1100 = vmatpush.bf16.msra.mxu0 %v1089
  %1101 = vmatmul.bf16.gmra.mxu0 %v1032
  %v1102 = vpop.f32.mrf.mxu0
  %v1103 = vadd.f32 0.0, %v1102
  %v1104 = vpop.f32.mrf.mxu0
  %1105 = vdwg.mxu0
  %v1106 = vadd.f32 %v1048, %v1103
  %v1111 = vunpack.c.l.b16 %v961
  %v1112 = vunpack.c.l.b16 %v962
  %v1113 = vunpack.c.l.b16 %v963
  %v1114 = vunpack.c.l.b16 %v964
  %v1115 = vpack.c.b16 %v1112, %v1111
  %v1116 = vpack.c.b16 %v1114, %v1113
  %1119 = vmatpush.bf16.msra.mxu0 0
  %1120 = vmatpush.bf16.msra.mxu0 0
  %1121 = vmatpush.bf16.msra.mxu0 0
  %1122 = vmatpush.bf16.msra.mxu0 0
  %1123 = vmatpush.bf16.msra.mxu0 0
  %1124 = vmatpush.bf16.msra.mxu0 0
  %1125 = vmatpush.bf16.msra.mxu0 %v1116
  %1126 = vmatpush.bf16.msra.mxu0 %v1115
  %1127 = vmatmul.bf16.gmra.mxu0 %v1001
  %v1128 = vpop.f32.mrf.mxu0
  %v1129 = vadd.f32 0.0, %v1128
  %v1130 = vpop.f32.mrf.mxu0
  %1131 = vdwg.mxu0
  %v1132 = vadd.f32 %v1106, %v1129
  %v1133 = vtanh.pop %v1132
  %v1134 = vperm.slane %v965, 1
  %v1135 = vmul.f32 %v1133, %v1134
  %v1136 = vsel %vm71, %v1135, 0.0
  %1137 = vadd.xlane.f32.xlu0 %v1136
  %v1138 = vpop.xlane.xlu0 %1137
  %v1139 = vperm.slane %v965, 2
  %v1140 = vadd.f32 %v1138, %v1139
  %v1141 = vxor.u32 %v1140, 2147483648
  %v1142 = vmul.f32 %v1141, 1.442695
  %v1143 = vpow.pop %v1142
  %v1144 = vadd.f32 %v1143, 1.0
  %v1145 = vrcp.pop %v1144
  %v1146 = vmul.f32 %v1144, %v1145
  %v1147 = vsub.f32 1.0, %v1146
  %v1148 = vmul.f32 %v1145, %v1147
  %v1149 = vadd.f32 %v1145, %v1148
  %vm1150 = vweird.f32 %v1144
  %vm1151 = vweird.f32 %v1145
  %vm1152 = vmor %vm1150, %vm1151
  %v1153 = vsel %vm1152, %v1145, %v1149
  %v1154 = vand.u32 2147483647, %v1144
  %vm1155 = vcmp.eq.f32.partialorder %v1154, 8.507059e+37
  %v1156 = vand.u32 %v1144, 2147483648
  %v1157 = vor.u32 1.1754944e-38, %v1156
  %v1158 = vsel %vm1155, %v1157, %v1153
  %v1159 = vmul.f32 1.0, %v1158
  %v1160 = vperm.slane %v37, 5
  %v1165 = vunpack.c.l.b16 %v937
  %v1166 = vunpack.c.l.b16 %v938
  %v1167 = vunpack.c.l.b16 %v939
  %v1168 = vunpack.c.l.b16 %v940
  %v1169 = vpack.c.b16 %v1166, %v1165
  %v1170 = vpack.c.b16 %v1168, %v1167
  %1173 = vmatpush.bf16.msra.mxu0 0
  %1174 = vmatpush.bf16.msra.mxu0 0
  %1175 = vmatpush.bf16.msra.mxu0 0
  %1176 = vmatpush.bf16.msra.mxu0 0
  %1177 = vmatpush.bf16.msra.mxu0 0
  %1178 = vmatpush.bf16.msra.mxu0 0
  %1179 = vmatpush.bf16.msra.mxu0 %v1170
  %1180 = vmatpush.bf16.msra.mxu0 %v1169
  %1181 = vmatmul.bf16.gmra.mxu0 %v123
  %v1182 = vpop.f32.mrf.mxu0
  %v1183 = vadd.f32 %v1160, %v1182
  %v1184 = vpop.f32.mrf.mxu0
  %1185 = vdwg.mxu0
  %v1186 = vadd.f32 %v1078, %v1183
  %v1187 = vxor.u32 %v1186, 2147483648
  %v1188 = vmul.f32 %v1187, 1.442695
  %v1189 = vpow.pop %v1188
  %v1190 = vadd.f32 %v1189, 1.0
  %v1191 = vrcp.pop %v1190
  %v1192 = vmul.f32 %v1190, %v1191
  %v1193 = vsub.f32 1.0, %v1192
  %v1194 = vmul.f32 %v1191, %v1193
  %v1195 = vadd.f32 %v1191, %v1194
  %vm1196 = vweird.f32 %v1190
  %vm1197 = vweird.f32 %v1191
  %vm1198 = vmor %vm1196, %vm1197
  %v1199 = vsel %vm1198, %v1191, %v1195
  %v1200 = vand.u32 2147483647, %v1190
  %vm1201 = vcmp.eq.f32.partialorder %v1200, 8.507059e+37
  %v1202 = vand.u32 %v1190, 2147483648
  %v1203 = vor.u32 1.1754944e-38, %v1202
  %v1204 = vsel %vm1201, %v1203, %v1199
  %v1205 = vmul.f32 1.0, %v1204
  %1207 = vrot.lane.b32.xlu0 %v1183, 64
  %v1208 = vpop.permute.xlu0 %1207
  %v1210 = vmul.f32 %v1205, %v1208
  %1212 = vrot.lane.b32.xlu0 %v1210, 64
  %v1213 = vpop.permute.xlu0 %1212
  %v1215 = vadd.f32 %v1078, %v1213
  %v1216 = vtanh.pop %v1215
  %v1217 = vsub.f32 1.0, %v1205
  %1219 = vrot.lane.b32.xlu0 %v1216, 96
  %v1220 = vpop.permute.xlu0 %1219
  %v1222 = vmul.f32 %v1217, %v1220
  %v1223 = vmul.f32 %v1205, 0.0
  %v1224 = vadd.f32 %v1222, %v1223
  %1226 = vset.pattern.permute.xlu0 0
  %1227 = vperm.xlu0 %1226, %v1159
  %v1228 = vpop.permute.xlu0 %1227
  %v1230 = vmul.f32 %v1228, %v1224
  %v1231 = vsub.f32 1.0, %v1159
  %1233 = vset.pattern.permute.xlu0 0
  %1234 = vperm.xlu0 %1233, %v1231
  %v1235 = vpop.permute.xlu0 %1234
  %v1237 = vmul.f32 %v1235, 0.0
  %v1238 = vadd.f32 %v1230, %v1237
  %v1239 = vpack.c.bf16 %v1238, %v1238
  %1241 = vrot.lane.b32.xlu0 %v1239, 96
  %v1242 = vpop.permute.xlu0 %1241
  %v1244 = vsel %vm71, %v1242, 0
  %1246 = vmatpush.bf16.msra.mxu0 0
  %1247 = vmatpush.bf16.msra.mxu0 0
  %1248 = vmatpush.bf16.msra.mxu0 0
  %1249 = vmatpush.bf16.msra.mxu0 0
  %1250 = vmatpush.bf16.msra.mxu0 0
  %1251 = vmatpush.bf16.msra.mxu0 0
  %1252 = vmatpush.bf16.msra.mxu0 %v1170
  %1253 = vmatpush.bf16.msra.mxu0 %v1169
  %1254 = vmatmul.bf16.gmra.mxu0 %v1244
  %v1255 = vpop.f32.mrf.mxu0
  %v1256 = vadd.f32 %v1160, %v1255
  %v1257 = vpop.f32.mrf.mxu0
  %1258 = vdwg.mxu0
  %v1260 = vrot.slane %v1256, 6
  %v1262 = vadd.f32 %v1078, %v1260
  %v1263 = vxor.u32 %v1262, 2147483648
  %v1264 = vmul.f32 %v1263, 1.442695
  %v1265 = vpow.pop %v1264
  %v1266 = vadd.f32 %v1265, 1.0
  %v1267 = vrcp.pop %v1266
  %v1268 = vmul.f32 %v1266, %v1267
  %v1269 = vsub.f32 1.0, %v1268
  %v1270 = vmul.f32 %v1267, %v1269
  %v1271 = vadd.f32 %v1267, %v1270
  %vm1272 = vweird.f32 %v1266
  %vm1273 = vweird.f32 %v1267
  %vm1274 = vmor %vm1272, %vm1273
  %v1275 = vsel %vm1274, %v1267, %v1271
  %v1276 = vand.u32 2147483647, %v1266
  %vm1277 = vcmp.eq.f32.partialorder %v1276, 8.507059e+37
  %v1278 = vand.u32 %v1266, 2147483648
  %v1279 = vor.u32 1.1754944e-38, %v1278
  %v1280 = vsel %vm1277, %v1279, %v1275
  %v1281 = vmul.f32 1.0, %v1280
  %1282 = vrot.lane.b32.xlu0 %v1260, 64
  %v1283 = vpop.permute.xlu0 %1282
  %v1285 = vmul.f32 %v1281, %v1283
  %1287 = vrot.lane.b32.xlu0 %v1285, 64
  %v1288 = vpop.permute.xlu0 %1287
  %v1290 = vadd.f32 %v1078, %v1288
  %v1291 = vtanh.pop %v1290
  %v1292 = vsub.f32 1.0, %v1281
  %1294 = vrot.lane.b32.xlu0 %v1291, 96
  %v1295 = vpop.permute.xlu0 %1294
  %v1297 = vmul.f32 %v1292, %v1295
  %v1299 = vrot.slane %v1238, 6
  %v1301 = vmul.f32 %v1281, %v1299
  %v1302 = vadd.f32 %v1297, %v1301
  %v1303 = vmul.f32 %v1228, %v1302
  %1304 = vrot.lane.b32.xlu0 %v1299, 96
  %v1305 = vpop.permute.xlu0 %1304
  %v1307 = vmul.f32 %v1235, %v1305
  %1309 = vrot.lane.b32.xlu0 %v1307, 32
  %v1310 = vpop.permute.xlu0 %1309
  %v1312 = vadd.f32 %v1303, %v1310
  %v1313 = vpack.c.bf16 %v1312, %v1312
  %v1315 = vrot.slane %v1313, 1
  %1316 = vrot.lane.b32.xlu0 %v1315, 96
  %v1317 = vpop.permute.xlu0 %1316
  %v1319 = vsel %vm71, %v1317, 0
  %1321 = vmatpush.bf16.msra.mxu0 0
  %1322 = vmatpush.bf16.msra.mxu0 0
  %1323 = vmatpush.bf16.msra.mxu0 0
  %1324 = vmatpush.bf16.msra.mxu0 0
  %1325 = vmatpush.bf16.msra.mxu0 0
  %1326 = vmatpush.bf16.msra.mxu0 0
  %1327 = vmatpush.bf16.msra.mxu0 %v1170
  %1328 = vmatpush.bf16.msra.mxu0 %v1169
  %1329 = vmatmul.bf16.gmra.mxu0 %v1319
  %v1330 = vpop.f32.mrf.mxu0
  %v1331 = vadd.f32 %v1160, %v1330
  %v1332 = vpop.f32.mrf.mxu0
  %1333 = vdwg.mxu0
  %v1335 = vrot.slane %v1331, 4
  %v1337 = vadd.f32 %v1078, %v1335
  %v1338 = vxor.u32 %v1337, 2147483648
  %v1339 = vmul.f32 %v1338, 1.442695
  %v1340 = vpow.pop %v1339
  %v1341 = vadd.f32 %v1340, 1.0
  %v1342 = vrcp.pop %v1341
  %v1343 = vmul.f32 %v1341, %v1342
  %v1344 = vsub.f32 1.0, %v1343
  %v1345 = vmul.f32 %v1342, %v1344
  %v1346 = vadd.f32 %v1342, %v1345
  %vm1347 = vweird.f32 %v1341
  %vm1348 = vweird.f32 %v1342
  %vm1349 = vmor %vm1347, %vm1348
  %v1350 = vsel %vm1349, %v1342, %v1346
  %v1351 = vand.u32 2147483647, %v1341
  %vm1352 = vcmp.eq.f32.partialorder %v1351, 8.507059e+37
  %v1353 = vand.u32 %v1341, 2147483648
  %v1354 = vor.u32 1.1754944e-38, %v1353
  %v1355 = vsel %vm1352, %v1354, %v1350
  %v1356 = vmul.f32 1.0, %v1355
  %1357 = vrot.lane.b32.xlu0 %v1335, 64
  %v1358 = vpop.permute.xlu0 %1357
  %v1360 = vmul.f32 %v1356, %v1358
  %1362 = vrot.lane.b32.xlu0 %v1360, 64
  %v1363 = vpop.permute.xlu0 %1362
  %v1365 = vadd.f32 %v1078, %v1363
  %v1366 = vtanh.pop %v1365
  %v1367 = vsub.f32 1.0, %v1356
  %1369 = vrot.lane.b32.xlu0 %v1366, 96
  %v1370 = vpop.permute.xlu0 %1369
  %v1372 = vmul.f32 %v1367, %v1370
  %v1374 = vrot.slane %v1312, 6
  %v1376 = vmul.f32 %v1356, %v1374
  %v1377 = vadd.f32 %v1372, %v1376
  %v1378 = vmul.f32 %v1228, %v1377
  %1379 = vrot.lane.b32.xlu0 %v1374, 96
  %v1380 = vpop.permute.xlu0 %1379
  %v1382 = vmul.f32 %v1235, %v1380
  %1384 = vrot.lane.b32.xlu0 %v1382, 32
  %v1385 = vpop.permute.xlu0 %1384
  %v1387 = vadd.f32 %v1378, %v1385
  %v1388 = vpack.c.bf16 %v1387, %v1387
  %v1390 = vrot.slane %v1388, 2
  %1391 = vrot.lane.b32.xlu0 %v1390, 96
  %v1392 = vpop.permute.xlu0 %1391
  %v1394 = vsel %vm71, %v1392, 0
  %1396 = vmatpush.bf16.msra.mxu0 0
  %1397 = vmatpush.bf16.msra.mxu0 0
  %1398 = vmatpush.bf16.msra.mxu0 0
  %1399 = vmatpush.bf16.msra.mxu0 0
  %1400 = vmatpush.bf16.msra.mxu0 0
  %1401 = vmatpush.bf16.msra.mxu0 0
  %1402 = vmatpush.bf16.msra.mxu0 %v1170
  %1403 = vmatpush.bf16.msra.mxu0 %v1169
  %1404 = vmatmul.bf16.gmra.mxu0 %v1394
  %v1405 = vpop.f32.mrf.mxu0
  %v1406 = vadd.f32 %v1160, %v1405
  %v1407 = vpop.f32.mrf.mxu0
  %1408 = vdwg.mxu0
  %v1410 = vrot.slane %v1406, 2
  %v1412 = vadd.f32 %v1078, %v1410
  %v1413 = vxor.u32 %v1412, 2147483648
  %v1414 = vmul.f32 %v1413, 1.442695
  %v1415 = vpow.pop %v1414
  %v1416 = vadd.f32 %v1415, 1.0
  %v1417 = vrcp.pop %v1416
  %v1418 = vmul.f32 %v1416, %v1417
  %v1419 = vsub.f32 1.0, %v1418
  %v1420 = vmul.f32 %v1417, %v1419
  %v1421 = vadd.f32 %v1417, %v1420
  %vm1422 = vweird.f32 %v1416
  %vm1423 = vweird.f32 %v1417
  %vm1424 = vmor %vm1422, %vm1423
  %v1425 = vsel %vm1424, %v1417, %v1421
  %v1426 = vand.u32 2147483647, %v1416
  %vm1427 = vcmp.eq.f32.partialorder %v1426, 8.507059e+37
  %v1428 = vand.u32 %v1416, 2147483648
  %v1429 = vor.u32 1.1754944e-38, %v1428
  %v1430 = vsel %vm1427, %v1429, %v1425
  %v1431 = vmul.f32 1.0, %v1430
  %1432 = vrot.lane.b32.xlu0 %v1410, 64
  %v1433 = vpop.permute.xlu0 %1432
  %v1435 = vmul.f32 %v1431, %v1433
  %1437 = vrot.lane.b32.xlu0 %v1435, 64
  %v1438 = vpop.permute.xlu0 %1437
  %v1440 = vadd.f32 %v1078, %v1438
  %v1441 = vtanh.pop %v1440
  %v1442 = vsub.f32 1.0, %v1431
  %1444 = vrot.lane.b32.xlu0 %v1441, 96
  %v1445 = vpop.permute.xlu0 %1444
  %v1447 = vmul.f32 %v1442, %v1445
  %v1449 = vrot.slane %v1387, 6
  %v1451 = vmul.f32 %v1431, %v1449
  %v1452 = vadd.f32 %v1447, %v1451
  %v1453 = vmul.f32 %v1228, %v1452
  %1454 = vrot.lane.b32.xlu0 %v1449, 96
  %v1455 = vpop.permute.xlu0 %1454
  %v1457 = vmul.f32 %v1235, %v1455
  %1459 = vrot.lane.b32.xlu0 %v1457, 32
  %v1460 = vpop.permute.xlu0 %1459
  %v1462 = vadd.f32 %v1453, %v1460
  %v1463 = vpack.c.bf16 %v1462, %v1462
  %v1464 = vperm.slane %v37, 6
  %v1466 = vrot.slane %v1463, 3
  %1467 = vrot.lane.b32.xlu0 %v1466, 96
  %v1468 = vpop.permute.xlu0 %1467
  %v1473 = vunpack.c.l.b16 %v941
  %v1474 = vunpack.c.l.b16 %v942
  %v1475 = vunpack.c.l.b16 %v943
  %v1476 = vunpack.c.l.b16 %v944
  %v1477 = vpack.c.b16 %v1474, %v1473
  %v1478 = vpack.c.b16 %v1476, %v1475
  %v1482 = vsel %vm71, %v1468, 0
  %1484 = vmatpush.bf16.msra.mxu0 0
  %1485 = vmatpush.bf16.msra.mxu0 0
  %1486 = vmatpush.bf16.msra.mxu0 0
  %1487 = vmatpush.bf16.msra.mxu0 0
  %1488 = vmatpush.bf16.msra.mxu0 0
  %1489 = vmatpush.bf16.msra.mxu0 0
  %1490 = vmatpush.bf16.msra.mxu0 %v1478
  %1491 = vmatpush.bf16.msra.mxu0 %v1477
  %1492 = vmatmul.bf16.gmra.mxu0 %v1482
  %v1493 = vpop.f32.mrf.mxu0
  %v1494 = vadd.f32 %v1464, %v1493
  %v1495 = vpop.f32.mrf.mxu0
  %1496 = vdwg.mxu0
  %v1497 = vpack.c.bf16 %v932, %v932
  %v1498 = vperm.slane %v37, 7
  %1500 = vrot.lane.b32.xlu0 %v1497, 96
  %v1501 = vpop.permute.xlu0 %1500
  %v1506 = vunpack.c.l.b16 %v945
  %v1507 = vunpack.c.l.b16 %v946
  %v1508 = vunpack.c.l.b16 %v947
  %v1509 = vunpack.c.l.b16 %v948
  %v1510 = vpack.c.b16 %v1507, %v1506
  %v1511 = vpack.c.b16 %v1509, %v1508
  %v1515 = vsel %vm71, %v1501, 0
  %1517 = vmatpush.bf16.msra.mxu0 0
  %1518 = vmatpush.bf16.msra.mxu0 0
  %1519 = vmatpush.bf16.msra.mxu0 0
  %1520 = vmatpush.bf16.msra.mxu0 0
  %1521 = vmatpush.bf16.msra.mxu0 0
  %1522 = vmatpush.bf16.msra.mxu0 0
  %1523 = vmatpush.bf16.msra.mxu0 %v1511
  %1524 = vmatpush.bf16.msra.mxu0 %v1510
  %1525 = vmatmul.bf16.gmra.mxu0 %v1515
  %v1526 = vpop.f32.mrf.mxu0
  %v1527 = vadd.f32 %v1498, %v1526
  %v1528 = vpop.f32.mrf.mxu0
  %1529 = vdwg.mxu0
  %v1530 = vadd.f32 %v1494, %v1527
  %v1531 = vxor.u32 %v1530, 2147483648
  %v1532 = vmul.f32 %v1531, 1.442695
  %v1533 = vpow.pop %v1532
  %v1534 = vadd.f32 %v1533, 1.0
  %v1535 = vrcp.pop %v1534
  %v1536 = vmul.f32 %v1534, %v1535
  %v1537 = vsub.f32 1.0, %v1536
  %v1538 = vmul.f32 %v1535, %v1537
  %v1539 = vadd.f32 %v1535, %v1538
  %vm1540 = vweird.f32 %v1534
  %vm1541 = vweird.f32 %v1535
  %vm1542 = vmor %vm1540, %vm1541
  %v1543 = vsel %vm1542, %v1535, %v1539
  %v1544 = vand.u32 2147483647, %v1534
  %vm1545 = vcmp.eq.f32.partialorder %v1544, 8.507059e+37
  %v1546 = vand.u32 %v1534, 2147483648
  %v1547 = vor.u32 1.1754944e-38, %v1546
  %v1548 = vsel %vm1545, %v1547, %v1543
  %v1549 = vmul.f32 1.0, %v1548
  %1551 = vrot.lane.b32.xlu0 %v1527, 64
  %v1552 = vpop.permute.xlu0 %1551
  %v1554 = vmul.f32 %v1549, %v1552
  %1556 = vrot.lane.b32.xlu0 %v1554, 64
  %v1557 = vpop.permute.xlu0 %1556
  %v1559 = vadd.f32 %v1494, %v1557
  %v1560 = vtanh.pop %v1559
  %v1561 = vsub.f32 1.0, %v1549
  %1563 = vrot.lane.b32.xlu0 %v1560, 96
  %v1564 = vpop.permute.xlu0 %1563
  %v1566 = vmul.f32 %v1561, %v1564
  %v1567 = vmul.f32 %v1549, %v932
  %v1568 = vadd.f32 %v1566, %v1567
  %v1570 = vrot.slane %v1568, 6
  %v1572 = vrot.slane %v1568, 4
  %v1574 = vrot.slane %v1568, 2
  %v1576 = vsel %vm974, %v1568, %v1570
  %v1577 = vsel %vm976, %v1576, %v1572
  %v1578 = vsel %vm978, %v1577, %v1574
  %v1579 = vmul.f32 %v513, %v1578
  %v1580 = vsub.f32 %v513, %v1578
  %v1581 = vand.u32 2147483647, %v1580
  %v1582 = vpack.c.bf16 %v1579, %v1579
  %1584 = vrot.lane.b32.xlu0 %v1582, 96
  %v1585 = vpop.permute.xlu0 %1584
  %v1587 = vsel %vm71, %v1585, 0
  %1589 = vmatpush.bf16.msra.mxu0 0
  %1590 = vmatpush.bf16.msra.mxu0 0
  %1591 = vmatpush.bf16.msra.mxu0 0
  %1592 = vmatpush.bf16.msra.mxu0 0
  %1593 = vmatpush.bf16.msra.mxu0 0
  %1594 = vmatpush.bf16.msra.mxu0 0
  %1595 = vmatpush.bf16.msra.mxu0 %v1090
  %1596 = vmatpush.bf16.msra.mxu0 %v1089
  %1597 = vmatmul.bf16.gmra.mxu0 %v1587
  %v1598 = vpop.f32.mrf.mxu0
  %v1599 = vadd.f32 0.0, %v1598
  %v1600 = vpop.f32.mrf.mxu0
  %1601 = vdwg.mxu0
  %v1602 = vadd.f32 %v1048, %v1599
  %v1603 = vpack.c.bf16 %v1581, %v1581
  %1605 = vrot.lane.b32.xlu0 %v1603, 96
  %v1606 = vpop.permute.xlu0 %1605
  %v1608 = vsel %vm71, %v1606, 0
  %1610 = vmatpush.bf16.msra.mxu0 0
  %1611 = vmatpush.bf16.msra.mxu0 0
  %1612 = vmatpush.bf16.msra.mxu0 0
  %1613 = vmatpush.bf16.msra.mxu0 0
  %1614 = vmatpush.bf16.msra.mxu0 0
  %1615 = vmatpush.bf16.msra.mxu0 0
  %1616 = vmatpush.bf16.msra.mxu0 %v1116
  %1617 = vmatpush.bf16.msra.mxu0 %v1115
  %1618 = vmatmul.bf16.gmra.mxu0 %v1608
  %v1619 = vpop.f32.mrf.mxu0
  %v1620 = vadd.f32 0.0, %v1619
  %v1621 = vpop.f32.mrf.mxu0
  %1622 = vdwg.mxu0
  %v1623 = vadd.f32 %v1602, %v1620
  %v1624 = vtanh.pop %v1623
  %v1625 = vmul.f32 %v1624, %v1134
  %v1626 = vsel %vm71, %v1625, 0.0
  %1627 = vadd.xlane.f32.xlu0 %v1626
  %v1628 = vpop.xlane.xlu0 %1627
  %v1629 = vadd.f32 %v1628, %v1139
  %v1630 = vxor.u32 %v1629, 2147483648
  %v1631 = vmul.f32 %v1630, 1.442695
  %v1632 = vpow.pop %v1631
  %v1633 = vadd.f32 %v1632, 1.0
  %v1634 = vrcp.pop %v1633
  %v1635 = vmul.f32 %v1633, %v1634
  %v1636 = vsub.f32 1.0, %v1635
  %v1637 = vmul.f32 %v1634, %v1636
  %v1638 = vadd.f32 %v1634, %v1637
  %vm1639 = vweird.f32 %v1633
  %vm1640 = vweird.f32 %v1634
  %vm1641 = vmor %vm1639, %vm1640
  %v1642 = vsel %vm1641, %v1634, %v1638
  %v1643 = vand.u32 2147483647, %v1633
  %vm1644 = vcmp.eq.f32.partialorder %v1643, 8.507059e+37
  %v1645 = vand.u32 %v1633, 2147483648
  %v1646 = vor.u32 1.1754944e-38, %v1645
  %v1647 = vsel %vm1644, %v1646, %v1642
  %v1648 = vmul.f32 1.0, %v1647
  %1650 = vset.pattern.permute.xlu0 0
  %1651 = vperm.xlu0 %1650, %v1648
  %v1652 = vpop.permute.xlu0 %1651
  %v1654 = vmul.f32 %v1652, %v1224
  %v1655 = vsub.f32 1.0, %v1648
  %1657 = vset.pattern.permute.xlu0 0
  %1658 = vperm.xlu0 %1657, %v1655
  %v1659 = vpop.permute.xlu0 %1658
  %v1661 = vmul.f32 %v1659, 0.0
  %v1662 = vadd.f32 %v1654, %v1661
  %v1663 = vpack.c.bf16 %v1662, %v1662
  %1665 = vrot.lane.b32.xlu0 %v1663, 96
  %v1666 = vpop.permute.xlu0 %1665
  %v1668 = vsel %vm71, %v1666, 0
  %1670 = vmatpush.bf16.msra.mxu0 0
  %1671 = vmatpush.bf16.msra.mxu0 0
  %1672 = vmatpush.bf16.msra.mxu0 0
  %1673 = vmatpush.bf16.msra.mxu0 0
  %1674 = vmatpush.bf16.msra.mxu0 0
  %1675 = vmatpush.bf16.msra.mxu0 0
  %1676 = vmatpush.bf16.msra.mxu0 %v1170
  %1677 = vmatpush.bf16.msra.mxu0 %v1169
  %1678 = vmatmul.bf16.gmra.mxu0 %v1668
  %v1679 = vpop.f32.mrf.mxu0
  %v1680 = vadd.f32 %v1160, %v1679
  %v1681 = vpop.f32.mrf.mxu0
  %1682 = vdwg.mxu0
  %v1684 = vrot.slane %v1680, 6
  %v1686 = vadd.f32 %v1078, %v1684
  %v1687 = vxor.u32 %v1686, 2147483648
  %v1688 = vmul.f32 %v1687, 1.442695
  %v1689 = vpow.pop %v1688
  %v1690 = vadd.f32 %v1689, 1.0
  %v1691 = vrcp.pop %v1690
  %v1692 = vmul.f32 %v1690, %v1691
  %v1693 = vsub.f32 1.0, %v1692
  %v1694 = vmul.f32 %v1691, %v1693
  %v1695 = vadd.f32 %v1691, %v1694
  %vm1696 = vweird.f32 %v1690
  %vm1697 = vweird.f32 %v1691
  %vm1698 = vmor %vm1696, %vm1697
  %v1699 = vsel %vm1698, %v1691, %v1695
  %v1700 = vand.u32 2147483647, %v1690
  %vm1701 = vcmp.eq.f32.partialorder %v1700, 8.507059e+37
  %v1702 = vand.u32 %v1690, 2147483648
  %v1703 = vor.u32 1.1754944e-38, %v1702
  %v1704 = vsel %vm1701, %v1703, %v1699
  %v1705 = vmul.f32 1.0, %v1704
  %1706 = vrot.lane.b32.xlu0 %v1684, 64
  %v1707 = vpop.permute.xlu0 %1706
  %v1709 = vmul.f32 %v1705, %v1707
  %1711 = vrot.lane.b32.xlu0 %v1709, 64
  %v1712 = vpop.permute.xlu0 %1711
  %v1714 = vadd.f32 %v1078, %v1712
  %v1715 = vtanh.pop %v1714
  %v1716 = vsub.f32 1.0, %v1705
  %1718 = vrot.lane.b32.xlu0 %v1715, 96
  %v1719 = vpop.permute.xlu0 %1718
  %v1721 = vmul.f32 %v1716, %v1719
  %v1723 = vrot.slane %v1662, 6
  %v1725 = vmul.f32 %v1705, %v1723
  %v1726 = vadd.f32 %v1721, %v1725
  %v1727 = vmul.f32 %v1652, %v1726
  %1728 = vrot.lane.b32.xlu0 %v1723, 96
  %v1729 = vpop.permute.xlu0 %1728
  %v1731 = vmul.f32 %v1659, %v1729
  %1733 = vrot.lane.b32.xlu0 %v1731, 32
  %v1734 = vpop.permute.xlu0 %1733
  %v1736 = vadd.f32 %v1727, %v1734
  %v1737 = vpack.c.bf16 %v1736, %v1736
  %v1739 = vrot.slane %v1737, 1
  %1740 = vrot.lane.b32.xlu0 %v1739, 96
  %v1741 = vpop.permute.xlu0 %1740
  %v1743 = vsel %vm71, %v1741, 0
  %1745 = vmatpush.bf16.msra.mxu0 0
  %1746 = vmatpush.bf16.msra.mxu0 0
  %1747 = vmatpush.bf16.msra.mxu0 0
  %1748 = vmatpush.bf16.msra.mxu0 0
  %1749 = vmatpush.bf16.msra.mxu0 0
  %1750 = vmatpush.bf16.msra.mxu0 0
  %1751 = vmatpush.bf16.msra.mxu0 %v1170
  %1752 = vmatpush.bf16.msra.mxu0 %v1169
  %1753 = vmatmul.bf16.gmra.mxu0 %v1743
  %v1754 = vpop.f32.mrf.mxu0
  %v1755 = vadd.f32 %v1160, %v1754
  %v1756 = vpop.f32.mrf.mxu0
  %1757 = vdwg.mxu0
  %v1759 = vrot.slane %v1755, 4
  %v1761 = vadd.f32 %v1078, %v1759
  %v1762 = vxor.u32 %v1761, 2147483648
  %v1763 = vmul.f32 %v1762, 1.442695
  %v1764 = vpow.pop %v1763
  %v1765 = vadd.f32 %v1764, 1.0
  %v1766 = vrcp.pop %v1765
  %v1767 = vmul.f32 %v1765, %v1766
  %v1768 = vsub.f32 1.0, %v1767
  %v1769 = vmul.f32 %v1766, %v1768
  %v1770 = vadd.f32 %v1766, %v1769
  %vm1771 = vweird.f32 %v1765
  %vm1772 = vweird.f32 %v1766
  %vm1773 = vmor %vm1771, %vm1772
  %v1774 = vsel %vm1773, %v1766, %v1770
  %v1775 = vand.u32 2147483647, %v1765
  %vm1776 = vcmp.eq.f32.partialorder %v1775, 8.507059e+37
  %v1777 = vand.u32 %v1765, 2147483648
  %v1778 = vor.u32 1.1754944e-38, %v1777
  %v1779 = vsel %vm1776, %v1778, %v1774
  %v1780 = vmul.f32 1.0, %v1779
  %1781 = vrot.lane.b32.xlu0 %v1759, 64
  %v1782 = vpop.permute.xlu0 %1781
  %v1784 = vmul.f32 %v1780, %v1782
  %1786 = vrot.lane.b32.xlu0 %v1784, 64
  %v1787 = vpop.permute.xlu0 %1786
  %v1789 = vadd.f32 %v1078, %v1787
  %v1790 = vtanh.pop %v1789
  %v1791 = vsub.f32 1.0, %v1780
  %1793 = vrot.lane.b32.xlu0 %v1790, 96
  %v1794 = vpop.permute.xlu0 %1793
  %v1796 = vmul.f32 %v1791, %v1794
  %v1798 = vrot.slane %v1736, 6
  %v1800 = vmul.f32 %v1780, %v1798
  %v1801 = vadd.f32 %v1796, %v1800
  %v1802 = vmul.f32 %v1652, %v1801
  %1803 = vrot.lane.b32.xlu0 %v1798, 96
  %v1804 = vpop.permute.xlu0 %1803
  %v1806 = vmul.f32 %v1659, %v1804
  %1808 = vrot.lane.b32.xlu0 %v1806, 32
  %v1809 = vpop.permute.xlu0 %1808
  %v1811 = vadd.f32 %v1802, %v1809
  %v1812 = vpack.c.bf16 %v1811, %v1811
  %v1814 = vrot.slane %v1812, 2
  %1815 = vrot.lane.b32.xlu0 %v1814, 96
  %v1816 = vpop.permute.xlu0 %1815
  %v1818 = vsel %vm71, %v1816, 0
  %1820 = vmatpush.bf16.msra.mxu0 0
  %1821 = vmatpush.bf16.msra.mxu0 0
  %1822 = vmatpush.bf16.msra.mxu0 0
  %1823 = vmatpush.bf16.msra.mxu0 0
  %1824 = vmatpush.bf16.msra.mxu0 0
  %1825 = vmatpush.bf16.msra.mxu0 0
  %1826 = vmatpush.bf16.msra.mxu0 %v1170
  %1827 = vmatpush.bf16.msra.mxu0 %v1169
  %1828 = vmatmul.bf16.gmra.mxu0 %v1818
  %v1829 = vpop.f32.mrf.mxu0
  %v1830 = vadd.f32 %v1160, %v1829
  %v1831 = vpop.f32.mrf.mxu0
  %1832 = vdwg.mxu0
  %v1834 = vrot.slane %v1830, 2
  %v1836 = vadd.f32 %v1078, %v1834
  %v1837 = vxor.u32 %v1836, 2147483648
  %v1838 = vmul.f32 %v1837, 1.442695
  %v1839 = vpow.pop %v1838
  %v1840 = vadd.f32 %v1839, 1.0
  %v1841 = vrcp.pop %v1840
  %v1842 = vmul.f32 %v1840, %v1841
  %v1843 = vsub.f32 1.0, %v1842
  %v1844 = vmul.f32 %v1841, %v1843
  %v1845 = vadd.f32 %v1841, %v1844
  %vm1846 = vweird.f32 %v1840
  %vm1847 = vweird.f32 %v1841
  %vm1848 = vmor %vm1846, %vm1847
  %v1849 = vsel %vm1848, %v1841, %v1845
  %v1850 = vand.u32 2147483647, %v1840
  %vm1851 = vcmp.eq.f32.partialorder %v1850, 8.507059e+37
  %v1852 = vand.u32 %v1840, 2147483648
  %v1853 = vor.u32 1.1754944e-38, %v1852
  %v1854 = vsel %vm1851, %v1853, %v1849
  %v1855 = vmul.f32 1.0, %v1854
  %1856 = vrot.lane.b32.xlu0 %v1834, 64
  %v1857 = vpop.permute.xlu0 %1856
  %v1859 = vmul.f32 %v1855, %v1857
  %1861 = vrot.lane.b32.xlu0 %v1859, 64
  %v1862 = vpop.permute.xlu0 %1861
  %v1864 = vadd.f32 %v1078, %v1862
  %v1865 = vtanh.pop %v1864
  %v1866 = vsub.f32 1.0, %v1855
  %1868 = vrot.lane.b32.xlu0 %v1865, 96
  %v1869 = vpop.permute.xlu0 %1868
  %v1871 = vmul.f32 %v1866, %v1869
  %v1873 = vrot.slane %v1811, 6
  %v1875 = vmul.f32 %v1855, %v1873
  %v1876 = vadd.f32 %v1871, %v1875
  %v1877 = vmul.f32 %v1652, %v1876
  %1878 = vrot.lane.b32.xlu0 %v1873, 96
  %v1879 = vpop.permute.xlu0 %1878
  %v1881 = vmul.f32 %v1659, %v1879
  %1883 = vrot.lane.b32.xlu0 %v1881, 32
  %v1884 = vpop.permute.xlu0 %1883
  %v1886 = vadd.f32 %v1877, %v1884
  %v1887 = vpack.c.bf16 %v1886, %v1886
  %v1889 = vrot.slane %v1887, 3
  %1890 = vrot.lane.b32.xlu0 %v1889, 96
  %v1891 = vpop.permute.xlu0 %1890
  %v1893 = vsel %vm71, %v1891, 0
  %1895 = vmatpush.bf16.msra.mxu0 0
  %1896 = vmatpush.bf16.msra.mxu0 0
  %1897 = vmatpush.bf16.msra.mxu0 0
  %1898 = vmatpush.bf16.msra.mxu0 0
  %1899 = vmatpush.bf16.msra.mxu0 0
  %1900 = vmatpush.bf16.msra.mxu0 0
  %1901 = vmatpush.bf16.msra.mxu0 %v1478
  %1902 = vmatpush.bf16.msra.mxu0 %v1477
  %1903 = vmatmul.bf16.gmra.mxu0 %v1893
  %v1904 = vpop.f32.mrf.mxu0
  %v1905 = vadd.f32 %v1464, %v1904
  %v1906 = vpop.f32.mrf.mxu0
  %1907 = vdwg.mxu0
  %v1908 = vpack.c.bf16 %v1568, %v1568
  %1910 = vrot.lane.b32.xlu0 %v1908, 96
  %v1911 = vpop.permute.xlu0 %1910
  %v1913 = vsel %vm71, %v1911, 0
  %1915 = vmatpush.bf16.msra.mxu0 0
  %1916 = vmatpush.bf16.msra.mxu0 0
  %1917 = vmatpush.bf16.msra.mxu0 0
  %1918 = vmatpush.bf16.msra.mxu0 0
  %1919 = vmatpush.bf16.msra.mxu0 0
  %1920 = vmatpush.bf16.msra.mxu0 0
  %1921 = vmatpush.bf16.msra.mxu0 %v1511
  %1922 = vmatpush.bf16.msra.mxu0 %v1510
  %1923 = vmatmul.bf16.gmra.mxu0 %v1913
  %v1924 = vpop.f32.mrf.mxu0
  %v1925 = vadd.f32 %v1498, %v1924
  %v1926 = vpop.f32.mrf.mxu0
  %1927 = vdwg.mxu0
  %v1928 = vadd.f32 %v1905, %v1925
  %v1929 = vxor.u32 %v1928, 2147483648
  %v1930 = vmul.f32 %v1929, 1.442695
  %v1931 = vpow.pop %v1930
  %v1932 = vadd.f32 %v1931, 1.0
  %v1933 = vrcp.pop %v1932
  %v1934 = vmul.f32 %v1932, %v1933
  %v1935 = vsub.f32 1.0, %v1934
  %v1936 = vmul.f32 %v1933, %v1935
  %v1937 = vadd.f32 %v1933, %v1936
  %vm1938 = vweird.f32 %v1932
  %vm1939 = vweird.f32 %v1933
  %vm1940 = vmor %vm1938, %vm1939
  %v1941 = vsel %vm1940, %v1933, %v1937
  %v1942 = vand.u32 2147483647, %v1932
  %vm1943 = vcmp.eq.f32.partialorder %v1942, 8.507059e+37
  %v1944 = vand.u32 %v1932, 2147483648
  %v1945 = vor.u32 1.1754944e-38, %v1944
  %v1946 = vsel %vm1943, %v1945, %v1941
  %v1947 = vmul.f32 1.0, %v1946
  %1949 = vrot.lane.b32.xlu0 %v1925, 64
  %v1950 = vpop.permute.xlu0 %1949
  %v1952 = vmul.f32 %v1947, %v1950
  %1954 = vrot.lane.b32.xlu0 %v1952, 64
  %v1955 = vpop.permute.xlu0 %1954
  %v1957 = vadd.f32 %v1905, %v1955
  %v1958 = vtanh.pop %v1957
  %v1959 = vsub.f32 1.0, %v1947
  %1961 = vrot.lane.b32.xlu0 %v1958, 96
  %v1962 = vpop.permute.xlu0 %1961
  %v1964 = vmul.f32 %v1959, %v1962
  %v1965 = vmul.f32 %v1947, %v1568
  %v1966 = vadd.f32 %v1964, %v1965
  %v1968 = vrot.slane %v1966, 6
  %v1970 = vrot.slane %v1966, 4
  %v1972 = vrot.slane %v1966, 2
  %v1974 = vsel %vm974, %v1966, %v1968
  %v1975 = vsel %vm976, %v1974, %v1970
  %v1976 = vsel %vm978, %v1975, %v1972
  %v1977 = vmul.f32 %v513, %v1976
  %v1978 = vsub.f32 %v513, %v1976
  %v1979 = vand.u32 2147483647, %v1978
  %v1980 = vpack.c.bf16 %v1977, %v1977
  %1982 = vrot.lane.b32.xlu0 %v1980, 96
  %v1983 = vpop.permute.xlu0 %1982
  %v1985 = vsel %vm71, %v1983, 0
  %1987 = vmatpush.bf16.msra.mxu0 0
  %1988 = vmatpush.bf16.msra.mxu0 0
  %1989 = vmatpush.bf16.msra.mxu0 0
  %1990 = vmatpush.bf16.msra.mxu0 0
  %1991 = vmatpush.bf16.msra.mxu0 0
  %1992 = vmatpush.bf16.msra.mxu0 0
  %1993 = vmatpush.bf16.msra.mxu0 %v1090
  %1994 = vmatpush.bf16.msra.mxu0 %v1089
  %1995 = vmatmul.bf16.gmra.mxu0 %v1985
  %v1996 = vpop.f32.mrf.mxu0
  %v1997 = vadd.f32 0.0, %v1996
  %v1998 = vpop.f32.mrf.mxu0
  %1999 = vdwg.mxu0
  %v2000 = vadd.f32 %v1048, %v1997
  %v2001 = vpack.c.bf16 %v1979, %v1979
  %2003 = vrot.lane.b32.xlu0 %v2001, 96
  %v2004 = vpop.permute.xlu0 %2003
  %v2006 = vsel %vm71, %v2004, 0
  %2008 = vmatpush.bf16.msra.mxu0 0
  %2009 = vmatpush.bf16.msra.mxu0 0
  %2010 = vmatpush.bf16.msra.mxu0 0
  %2011 = vmatpush.bf16.msra.mxu0 0
  %2012 = vmatpush.bf16.msra.mxu0 0
  %2013 = vmatpush.bf16.msra.mxu0 0
  %2014 = vmatpush.bf16.msra.mxu0 %v1116
  %2015 = vmatpush.bf16.msra.mxu0 %v1115
  %2016 = vmatmul.bf16.gmra.mxu0 %v2006
  %v2017 = vpop.f32.mrf.mxu0
  %v2018 = vadd.f32 0.0, %v2017
  %v2019 = vpop.f32.mrf.mxu0
  %2020 = vdwg.mxu0
  %v2021 = vadd.f32 %v2000, %v2018
  %v2022 = vtanh.pop %v2021
  %v2023 = vmul.f32 %v2022, %v1134
  %v2024 = vsel %vm71, %v2023, 0.0
  %2025 = vadd.xlane.f32.xlu0 %v2024
  %v2026 = vpop.xlane.xlu0 %2025
  %v2027 = vadd.f32 %v2026, %v1139
  %v2028 = vxor.u32 %v2027, 2147483648
  %v2029 = vmul.f32 %v2028, 1.442695
  %v2030 = vpow.pop %v2029
  %v2031 = vadd.f32 %v2030, 1.0
  %v2032 = vrcp.pop %v2031
  %v2033 = vmul.f32 %v2031, %v2032
  %v2034 = vsub.f32 1.0, %v2033
  %v2035 = vmul.f32 %v2032, %v2034
  %v2036 = vadd.f32 %v2032, %v2035
  %vm2037 = vweird.f32 %v2031
  %vm2038 = vweird.f32 %v2032
  %vm2039 = vmor %vm2037, %vm2038
  %v2040 = vsel %vm2039, %v2032, %v2036
  %v2041 = vand.u32 2147483647, %v2031
  %vm2042 = vcmp.eq.f32.partialorder %v2041, 8.507059e+37
  %v2043 = vand.u32 %v2031, 2147483648
  %v2044 = vor.u32 1.1754944e-38, %v2043
  %v2045 = vsel %vm2042, %v2044, %v2040
  %v2046 = vmul.f32 1.0, %v2045
  %2048 = vset.pattern.permute.xlu0 0
  %2049 = vperm.xlu0 %2048, %v2046
  %v2050 = vpop.permute.xlu0 %2049
  %v2052 = vmul.f32 %v2050, %v1224
  %v2053 = vsub.f32 1.0, %v2046
  %2055 = vset.pattern.permute.xlu0 0
  %2056 = vperm.xlu0 %2055, %v2053
  %v2057 = vpop.permute.xlu0 %2056
  %v2059 = vmul.f32 %v2057, 0.0
  %v2060 = vadd.f32 %v2052, %v2059
  %v2061 = vpack.c.bf16 %v2060, %v2060
  %2063 = vrot.lane.b32.xlu0 %v2061, 96
  %v2064 = vpop.permute.xlu0 %2063
  %v2066 = vsel %vm71, %v2064, 0
  %2068 = vmatpush.bf16.msra.mxu0 0
  %2069 = vmatpush.bf16.msra.mxu0 0
  %2070 = vmatpush.bf16.msra.mxu0 0
  %2071 = vmatpush.bf16.msra.mxu0 0
  %2072 = vmatpush.bf16.msra.mxu0 0
  %2073 = vmatpush.bf16.msra.mxu0 0
  %2074 = vmatpush.bf16.msra.mxu0 %v1170
  %2075 = vmatpush.bf16.msra.mxu0 %v1169
  %2076 = vmatmul.bf16.gmra.mxu0 %v2066
  %v2077 = vpop.f32.mrf.mxu0
  %v2078 = vadd.f32 %v1160, %v2077
  %v2079 = vpop.f32.mrf.mxu0
  %2080 = vdwg.mxu0
  %v2082 = vrot.slane %v2078, 6
  %v2084 = vadd.f32 %v1078, %v2082
  %v2085 = vxor.u32 %v2084, 2147483648
  %v2086 = vmul.f32 %v2085, 1.442695
  %v2087 = vpow.pop %v2086
  %v2088 = vadd.f32 %v2087, 1.0
  %v2089 = vrcp.pop %v2088
  %v2090 = vmul.f32 %v2088, %v2089
  %v2091 = vsub.f32 1.0, %v2090
  %v2092 = vmul.f32 %v2089, %v2091
  %v2093 = vadd.f32 %v2089, %v2092
  %vm2094 = vweird.f32 %v2088
  %vm2095 = vweird.f32 %v2089
  %vm2096 = vmor %vm2094, %vm2095
  %v2097 = vsel %vm2096, %v2089, %v2093
  %v2098 = vand.u32 2147483647, %v2088
  %vm2099 = vcmp.eq.f32.partialorder %v2098, 8.507059e+37
  %v2100 = vand.u32 %v2088, 2147483648
  %v2101 = vor.u32 1.1754944e-38, %v2100
  %v2102 = vsel %vm2099, %v2101, %v2097
  %v2103 = vmul.f32 1.0, %v2102
  %2104 = vrot.lane.b32.xlu0 %v2082, 64
  %v2105 = vpop.permute.xlu0 %2104
  %v2107 = vmul.f32 %v2103, %v2105
  %2109 = vrot.lane.b32.xlu0 %v2107, 64
  %v2110 = vpop.permute.xlu0 %2109
  %v2112 = vadd.f32 %v1078, %v2110
  %v2113 = vtanh.pop %v2112
  %v2114 = vsub.f32 1.0, %v2103
  %2116 = vrot.lane.b32.xlu0 %v2113, 96
  %v2117 = vpop.permute.xlu0 %2116
  %v2119 = vmul.f32 %v2114, %v2117
  %v2121 = vrot.slane %v2060, 6
  %v2123 = vmul.f32 %v2103, %v2121
  %v2124 = vadd.f32 %v2119, %v2123
  %v2125 = vmul.f32 %v2050, %v2124
  %2126 = vrot.lane.b32.xlu0 %v2121, 96
  %v2127 = vpop.permute.xlu0 %2126
  %v2129 = vmul.f32 %v2057, %v2127
  %2131 = vrot.lane.b32.xlu0 %v2129, 32
  %v2132 = vpop.permute.xlu0 %2131
  %v2134 = vadd.f32 %v2125, %v2132
  %v2135 = vpack.c.bf16 %v2134, %v2134
  %v2137 = vrot.slane %v2135, 1
  %2138 = vrot.lane.b32.xlu0 %v2137, 96
  %v2139 = vpop.permute.xlu0 %2138
  %v2141 = vsel %vm71, %v2139, 0
  %2143 = vmatpush.bf16.msra.mxu0 0
  %2144 = vmatpush.bf16.msra.mxu0 0
  %2145 = vmatpush.bf16.msra.mxu0 0
  %2146 = vmatpush.bf16.msra.mxu0 0
  %2147 = vmatpush.bf16.msra.mxu0 0
  %2148 = vmatpush.bf16.msra.mxu0 0
  %2149 = vmatpush.bf16.msra.mxu0 %v1170
  %2150 = vmatpush.bf16.msra.mxu0 %v1169
  %2151 = vmatmul.bf16.gmra.mxu0 %v2141
  %v2152 = vpop.f32.mrf.mxu0
  %v2153 = vadd.f32 %v1160, %v2152
  %v2154 = vpop.f32.mrf.mxu0
  %2155 = vdwg.mxu0
  %v2157 = vrot.slane %v2153, 4
  %v2159 = vadd.f32 %v1078, %v2157
  %v2160 = vxor.u32 %v2159, 2147483648
  %v2161 = vmul.f32 %v2160, 1.442695
  %v2162 = vpow.pop %v2161
  %v2163 = vadd.f32 %v2162, 1.0
  %v2164 = vrcp.pop %v2163
  %v2165 = vmul.f32 %v2163, %v2164
  %v2166 = vsub.f32 1.0, %v2165
  %v2167 = vmul.f32 %v2164, %v2166
  %v2168 = vadd.f32 %v2164, %v2167
  %vm2169 = vweird.f32 %v2163
  %vm2170 = vweird.f32 %v2164
  %vm2171 = vmor %vm2169, %vm2170
  %v2172 = vsel %vm2171, %v2164, %v2168
  %v2173 = vand.u32 2147483647, %v2163
  %vm2174 = vcmp.eq.f32.partialorder %v2173, 8.507059e+37
  %v2175 = vand.u32 %v2163, 2147483648
  %v2176 = vor.u32 1.1754944e-38, %v2175
  %v2177 = vsel %vm2174, %v2176, %v2172
  %v2178 = vmul.f32 1.0, %v2177
  %2179 = vrot.lane.b32.xlu0 %v2157, 64
  %v2180 = vpop.permute.xlu0 %2179
  %v2182 = vmul.f32 %v2178, %v2180
  %2184 = vrot.lane.b32.xlu0 %v2182, 64
  %v2185 = vpop.permute.xlu0 %2184
  %v2187 = vadd.f32 %v1078, %v2185
  %v2188 = vtanh.pop %v2187
  %v2189 = vsub.f32 1.0, %v2178
  %2191 = vrot.lane.b32.xlu0 %v2188, 96
  %v2192 = vpop.permute.xlu0 %2191
  %v2194 = vmul.f32 %v2189, %v2192
  %v2196 = vrot.slane %v2134, 6
  %v2198 = vmul.f32 %v2178, %v2196
  %v2199 = vadd.f32 %v2194, %v2198
  %v2200 = vmul.f32 %v2050, %v2199
  %2201 = vrot.lane.b32.xlu0 %v2196, 96
  %v2202 = vpop.permute.xlu0 %2201
  %v2204 = vmul.f32 %v2057, %v2202
  %2206 = vrot.lane.b32.xlu0 %v2204, 32
  %v2207 = vpop.permute.xlu0 %2206
  %v2209 = vadd.f32 %v2200, %v2207
  %v2210 = vpack.c.bf16 %v2209, %v2209
  %v2212 = vrot.slane %v2210, 2
  %2213 = vrot.lane.b32.xlu0 %v2212, 96
  %v2214 = vpop.permute.xlu0 %2213
  %v2216 = vsel %vm71, %v2214, 0
  %2218 = vmatpush.bf16.msra.mxu0 0
  %2219 = vmatpush.bf16.msra.mxu0 0
  %2220 = vmatpush.bf16.msra.mxu0 0
  %2221 = vmatpush.bf16.msra.mxu0 0
  %2222 = vmatpush.bf16.msra.mxu0 0
  %2223 = vmatpush.bf16.msra.mxu0 0
  %2224 = vmatpush.bf16.msra.mxu0 %v1170
  %2225 = vmatpush.bf16.msra.mxu0 %v1169
  %2226 = vmatmul.bf16.gmra.mxu0 %v2216
  %v2227 = vpop.f32.mrf.mxu0
  %v2228 = vadd.f32 %v1160, %v2227
  %v2229 = vpop.f32.mrf.mxu0
  %2230 = vdwg.mxu0
  %v2232 = vrot.slane %v2228, 2
  %v2234 = vadd.f32 %v1078, %v2232
  %v2235 = vxor.u32 %v2234, 2147483648
  %v2236 = vmul.f32 %v2235, 1.442695
  %v2237 = vpow.pop %v2236
  %v2238 = vadd.f32 %v2237, 1.0
  %v2239 = vrcp.pop %v2238
  %v2240 = vmul.f32 %v2238, %v2239
  %v2241 = vsub.f32 1.0, %v2240
  %v2242 = vmul.f32 %v2239, %v2241
  %v2243 = vadd.f32 %v2239, %v2242
  %vm2244 = vweird.f32 %v2238
  %vm2245 = vweird.f32 %v2239
  %vm2246 = vmor %vm2244, %vm2245
  %v2247 = vsel %vm2246, %v2239, %v2243
  %v2248 = vand.u32 2147483647, %v2238
  %vm2249 = vcmp.eq.f32.partialorder %v2248, 8.507059e+37
  %v2250 = vand.u32 %v2238, 2147483648
  %v2251 = vor.u32 1.1754944e-38, %v2250
  %v2252 = vsel %vm2249, %v2251, %v2247
  %v2253 = vmul.f32 1.0, %v2252
  %2254 = vrot.lane.b32.xlu0 %v2232, 64
  %v2255 = vpop.permute.xlu0 %2254
  %v2257 = vmul.f32 %v2253, %v2255
  %2259 = vrot.lane.b32.xlu0 %v2257, 64
  %v2260 = vpop.permute.xlu0 %2259
  %v2262 = vadd.f32 %v1078, %v2260
  %v2263 = vtanh.pop %v2262
  %v2264 = vsub.f32 1.0, %v2253
  %2266 = vrot.lane.b32.xlu0 %v2263, 96
  %v2267 = vpop.permute.xlu0 %2266
  %v2269 = vmul.f32 %v2264, %v2267
  %v2271 = vrot.slane %v2209, 6
  %v2273 = vmul.f32 %v2253, %v2271
  %v2274 = vadd.f32 %v2269, %v2273
  %v2275 = vmul.f32 %v2050, %v2274
  %2276 = vrot.lane.b32.xlu0 %v2271, 96
  %v2277 = vpop.permute.xlu0 %2276
  %v2279 = vmul.f32 %v2057, %v2277
  %2281 = vrot.lane.b32.xlu0 %v2279, 32
  %v2282 = vpop.permute.xlu0 %2281
  %v2284 = vadd.f32 %v2275, %v2282
  %v2285 = vpack.c.bf16 %v2284, %v2284
  %v2287 = vrot.slane %v2285, 3
  %2288 = vrot.lane.b32.xlu0 %v2287, 96
  %v2289 = vpop.permute.xlu0 %2288
  %v2291 = vsel %vm71, %v2289, 0
  %2293 = vmatpush.bf16.msra.mxu0 0
  %2294 = vmatpush.bf16.msra.mxu0 0
  %2295 = vmatpush.bf16.msra.mxu0 0
  %2296 = vmatpush.bf16.msra.mxu0 0
  %2297 = vmatpush.bf16.msra.mxu0 0
  %2298 = vmatpush.bf16.msra.mxu0 0
  %2299 = vmatpush.bf16.msra.mxu0 %v1478
  %2300 = vmatpush.bf16.msra.mxu0 %v1477
  %2301 = vmatmul.bf16.gmra.mxu0 %v2291
  %v2302 = vpop.f32.mrf.mxu0
  %v2303 = vadd.f32 %v1464, %v2302
  %v2304 = vpop.f32.mrf.mxu0
  %2305 = vdwg.mxu0
  %v2306 = vpack.c.bf16 %v1966, %v1966
  %2308 = vrot.lane.b32.xlu0 %v2306, 96
  %v2309 = vpop.permute.xlu0 %2308
  %v2311 = vsel %vm71, %v2309, 0
  %2313 = vmatpush.bf16.msra.mxu0 0
  %2314 = vmatpush.bf16.msra.mxu0 0
  %2315 = vmatpush.bf16.msra.mxu0 0
  %2316 = vmatpush.bf16.msra.mxu0 0
  %2317 = vmatpush.bf16.msra.mxu0 0
  %2318 = vmatpush.bf16.msra.mxu0 0
  %2319 = vmatpush.bf16.msra.mxu0 %v1511
  %2320 = vmatpush.bf16.msra.mxu0 %v1510
  %2321 = vmatmul.bf16.gmra.mxu0 %v2311
  %v2322 = vpop.f32.mrf.mxu0
  %v2323 = vadd.f32 %v1498, %v2322
  %v2324 = vpop.f32.mrf.mxu0
  %2325 = vdwg.mxu0
  %v2326 = vadd.f32 %v2303, %v2323
  %v2327 = vxor.u32 %v2326, 2147483648
  %v2328 = vmul.f32 %v2327, 1.442695
  %v2329 = vpow.pop %v2328
  %v2330 = vadd.f32 %v2329, 1.0
  %v2331 = vrcp.pop %v2330
  %v2332 = vmul.f32 %v2330, %v2331
  %v2333 = vsub.f32 1.0, %v2332
  %v2334 = vmul.f32 %v2331, %v2333
  %v2335 = vadd.f32 %v2331, %v2334
  %vm2336 = vweird.f32 %v2330
  %vm2337 = vweird.f32 %v2331
  %vm2338 = vmor %vm2336, %vm2337
  %v2339 = vsel %vm2338, %v2331, %v2335
  %v2340 = vand.u32 2147483647, %v2330
  %vm2341 = vcmp.eq.f32.partialorder %v2340, 8.507059e+37
  %v2342 = vand.u32 %v2330, 2147483648
  %v2343 = vor.u32 1.1754944e-38, %v2342
  %v2344 = vsel %vm2341, %v2343, %v2339
  %v2345 = vmul.f32 1.0, %v2344
  %2347 = vrot.lane.b32.xlu0 %v2323, 64
  %v2348 = vpop.permute.xlu0 %2347
  %v2350 = vmul.f32 %v2345, %v2348
  %2352 = vrot.lane.b32.xlu0 %v2350, 64
  %v2353 = vpop.permute.xlu0 %2352
  %v2355 = vadd.f32 %v2303, %v2353
  %v2356 = vtanh.pop %v2355
  %v2357 = vsub.f32 1.0, %v2345
  %2359 = vrot.lane.b32.xlu0 %v2356, 96
  %v2360 = vpop.permute.xlu0 %2359
  %v2362 = vmul.f32 %v2357, %v2360
  %v2363 = vmul.f32 %v2345, %v1966
  %v2364 = vadd.f32 %v2362, %v2363
  %v2365 = vld [vmem:[%s2 + $0x80] sm:$0xf]
  %v2366 = vld [vmem:[%s2 + $0x84] sm:$0xf]
  %v2367 = vld [vmem:[%s2 + $0x88] sm:$0xf]
  %v2368 = vld [vmem:[%s2 + $0x8c] sm:$0xf]
  %v2369 = vld [vmem:[%s2 + $0x90] sm:$0xf]
  %v2370 = vld [vmem:[%s2 + $0x94] sm:$0xf]
  %v2371 = vld [vmem:[%s2 + $0x98] sm:$0xf]
  %v2372 = vld [vmem:[%s2 + $0x9c] sm:$0xf]
  %v2373 = vld [vmem:[%s2 + $0xa0] sm:$0xf]
  %v2374 = vld [vmem:[%s2 + $0xa4] sm:$0xf]
  %v2375 = vld [vmem:[%s2 + $0xa8] sm:$0xf]
  %v2376 = vld [vmem:[%s2 + $0xac] sm:$0xf]
  %v2381 = vunpack.c.l.b16 %v2373
  %v2382 = vunpack.c.l.b16 %v2374
  %v2383 = vunpack.c.l.b16 %v2375
  %v2384 = vunpack.c.l.b16 %v2376
  %v2385 = vpack.c.b16 %v2382, %v2381
  %v2386 = vpack.c.b16 %v2384, %v2383
  %2389 = vmatpush.bf16.msra.mxu0 0
  %2390 = vmatpush.bf16.msra.mxu0 0
  %2391 = vmatpush.bf16.msra.mxu0 0
  %2392 = vmatpush.bf16.msra.mxu0 0
  %2393 = vmatpush.bf16.msra.mxu0 0
  %2394 = vmatpush.bf16.msra.mxu0 0
  %2395 = vmatpush.bf16.msra.mxu0 %v2386
  %2396 = vmatpush.bf16.msra.mxu0 %v2385
  %2397 = vmatmul.bf16.gmra.mxu0 %v1515
  %v2398 = vpop.f32.mrf.mxu0
  %v2399 = vadd.f32 0.0, %v2398
  %v2400 = vpop.f32.mrf.mxu0
  %2401 = vdwg.mxu0
  %v2402 = vpack.c.b16 %v522, %v522
  %v2403 = vrot.slane %v2402, 1
  %v2408 = vunpack.c.l.b16 %v2369
  %v2409 = vunpack.c.l.b16 %v2370
  %v2410 = vunpack.c.l.b16 %v2371
  %v2411 = vunpack.c.l.b16 %v2372
  %v2412 = vpack.c.b16 %v2409, %v2408
  %v2413 = vpack.c.b16 %v2411, %v2410
  %v2417 = vsel %vm71, %v2403, 0
  %2419 = vmatpush.bf16.msra.mxu0 0
  %2420 = vmatpush.bf16.msra.mxu0 0
  %2421 = vmatpush.bf16.msra.mxu0 0
  %2422 = vmatpush.bf16.msra.mxu0 0
  %2423 = vmatpush.bf16.msra.mxu0 0
  %2424 = vmatpush.bf16.msra.mxu0 0
  %2425 = vmatpush.bf16.msra.mxu0 %v2413
  %2426 = vmatpush.bf16.msra.mxu0 %v2412
  %2427 = vmatmul.bf16.gmra.mxu0 %v2417
  %v2428 = vpop.f32.mrf.mxu0
  %v2429 = vadd.f32 %v2399, %v2428
  %v2430 = vpop.f32.mrf.mxu0
  %2431 = vdwg.mxu0
  %v2432 = vperm.slane %v38, 0
  %v2433 = vadd.f32 %v2429, %v2432
  %v2434 = vld [vmem:[%s6] sm:$0xff]
  %v2435 = vld [vmem:[%s6 + $0x8] sm:$0xff]
  %v2436 = vld [vmem:[%s6 + $0x10] sm:$0xff]
  %v2437 = vld [vmem:[%s6 + $0x18] sm:$0xff]
  %v2438 = vld [vmem:[%s6 + $0x20] sm:$0x1]
  %v2439 = vpack.c.bf16 %v2364, %v2364
  %v2440 = vperm.slane %v38, 1
  %2442 = vrot.lane.b32.xlu0 %v2439, 96
  %v2443 = vpop.permute.xlu0 %2442
  %v2448 = vunpack.c.l.b16 %v2365
  %v2449 = vunpack.c.l.b16 %v2366
  %v2450 = vunpack.c.l.b16 %v2367
  %v2451 = vunpack.c.l.b16 %v2368
  %v2452 = vpack.c.b16 %v2449, %v2448
  %v2453 = vpack.c.b16 %v2451, %v2450
  %v2457 = vsel %vm71, %v2443, 0
  %2459 = vmatpush.bf16.msra.mxu0 0
  %2460 = vmatpush.bf16.msra.mxu0 0
  %2461 = vmatpush.bf16.msra.mxu0 0
  %2462 = vmatpush.bf16.msra.mxu0 0
  %2463 = vmatpush.bf16.msra.mxu0 0
  %2464 = vmatpush.bf16.msra.mxu0 0
  %2465 = vmatpush.bf16.msra.mxu0 %v2453
  %2466 = vmatpush.bf16.msra.mxu0 %v2452
  %2467 = vmatmul.bf16.gmra.mxu0 %v2457
  %v2468 = vpop.f32.mrf.mxu0
  %v2469 = vadd.f32 %v2440, %v2468
  %v2470 = vpop.f32.mrf.mxu0
  %2471 = vdwg.mxu0
  %v2472 = vadd.f32 %v2433, %v2469
  %v2473 = vxor.u32 %v2472, 2147483648
  %v2474 = vmul.f32 %v2473, 1.442695
  %v2475 = vpow.pop %v2474
  %v2476 = vadd.f32 %v2475, 1.0
  %v2477 = vrcp.pop %v2476
  %v2478 = vmul.f32 %v2476, %v2477
  %v2479 = vsub.f32 1.0, %v2478
  %v2480 = vmul.f32 %v2477, %v2479
  %v2481 = vadd.f32 %v2477, %v2480
  %vm2482 = vweird.f32 %v2476
  %vm2483 = vweird.f32 %v2477
  %vm2484 = vmor %vm2482, %vm2483
  %v2485 = vsel %vm2484, %v2477, %v2481
  %v2486 = vand.u32 2147483647, %v2476
  %vm2487 = vcmp.eq.f32.partialorder %v2486, 8.507059e+37
  %v2488 = vand.u32 %v2476, 2147483648
  %v2489 = vor.u32 1.1754944e-38, %v2488
  %v2490 = vsel %vm2487, %v2489, %v2485
  %v2491 = vmul.f32 1.0, %v2490
  %2493 = vrot.lane.b32.xlu0 %v2469, 64
  %v2494 = vpop.permute.xlu0 %2493
  %v2496 = vmul.f32 %v2491, %v2494
  %2498 = vrot.lane.b32.xlu0 %v2496, 64
  %v2499 = vpop.permute.xlu0 %2498
  %v2501 = vadd.f32 %v2433, %v2499
  %v2502 = vtanh.pop %v2501
  %v2503 = vsub.f32 1.0, %v2491
  %2505 = vrot.lane.b32.xlu0 %v2502, 96
  %v2506 = vpop.permute.xlu0 %2505
  %v2508 = vmul.f32 %v2503, %v2506
  %v2509 = vmul.f32 %v2491, %v2364
  %v2510 = vadd.f32 %v2508, %v2509
  %v2511 = vperm.slane %v2438, 0
  %2513 = vrot.lane.b32.xlu0 %v2510, 96
  %v2514 = vpop.permute.xlu0 %2513
  %v2515 = vsel %vm71, %v2514, 0
  %2517 = vmatpush.msra.mxu0 0.0
  %2518 = vmatpush.msra.mxu0 0.0
  %2519 = vmatpush.msra.mxu0 0.0
  %2520 = vmatpush.msra.mxu0 0.0
  %2521 = vmatpush.msra.mxu0 0.0
  %2522 = vmatpush.msra.mxu0 0.0
  %2523 = vmatpush.msra.mxu0 0.0
  %2524 = vmatpush.msra.mxu0 0.0
  %2525 = vmatpush.msra.mxu0 0.0
  %2526 = vmatpush.msra.mxu0 0.0
  %2527 = vmatpush.msra.mxu0 0.0
  %2528 = vmatpush.msra.mxu0 0.0
  %2529 = vmatpush.msra.mxu0 %v2437
  %2530 = vmatpush.msra.mxu0 %v2436
  %2531 = vmatpush.msra.mxu0 %v2435
  %2532 = vmatpush.msra.mxu0 %v2434
  %2533 = vmatmul.f32.gmra.mxu0 %v2515
  %v2534 = vpop.f32.mrf.mxu0
  %v2535 = vadd.f32 %v2511, %v2534
  %2536 = vdwg.mxu0
  %v2537 = vsel %vm974, %v2535, -inf
  %2538 = vmax.xlane.f32.xlu0 %v2537
  %v2539 = vpop.xlane.xlu0 %2538
  %v2540 = vsub.f32 %v2535, %v2539
  %v2541 = vmul.f32 %v2540, 1.442695
  %v2542 = vpow.pop %v2541
  %v2543 = vsel %vm974, %v2542, 0.0
  %2544 = vadd.xlane.f32.xlu0 %v2543
  %v2545 = vpop.xlane.xlu0 %2544
  %v2546 = vlog2.pop %v2545
  %v2547 = vmul.f32 %v2546, 0.6931472
  %v2548 = vsub.f32 %v2540, %v2547
  %v2549 = vpack.c.bf16 %v2510, %v2510
  %2551 = vrot.lane.b32.xlu0 %v2549, 96
  %v2552 = vpop.permute.xlu0 %2551
  %v2554 = vsel %vm71, %v2552, 0
  %2556 = vmatpush.bf16.msra.mxu0 0
  %2557 = vmatpush.bf16.msra.mxu0 0
  %2558 = vmatpush.bf16.msra.mxu0 0
  %2559 = vmatpush.bf16.msra.mxu0 0
  %2560 = vmatpush.bf16.msra.mxu0 0
  %2561 = vmatpush.bf16.msra.mxu0 0
  %2562 = vmatpush.bf16.msra.mxu0 %v2453
  %2563 = vmatpush.bf16.msra.mxu0 %v2452
  %2564 = vmatmul.bf16.gmra.mxu0 %v2554
  %v2565 = vpop.f32.mrf.mxu0
  %v2566 = vadd.f32 %v2440, %v2565
  %v2567 = vpop.f32.mrf.mxu0
  %2568 = vdwg.mxu0
  %v2569 = vadd.f32 %v2433, %v2566
  %v2570 = vxor.u32 %v2569, 2147483648
  %v2571 = vmul.f32 %v2570, 1.442695
  %v2572 = vpow.pop %v2571
  %v2573 = vadd.f32 %v2572, 1.0
  %v2574 = vrcp.pop %v2573
  %v2575 = vmul.f32 %v2573, %v2574
  %v2576 = vsub.f32 1.0, %v2575
  %v2577 = vmul.f32 %v2574, %v2576
  %v2578 = vadd.f32 %v2574, %v2577
  %vm2579 = vweird.f32 %v2573
  %vm2580 = vweird.f32 %v2574
  %vm2581 = vmor %vm2579, %vm2580
  %v2582 = vsel %vm2581, %v2574, %v2578
  %v2583 = vand.u32 2147483647, %v2573
  %vm2584 = vcmp.eq.f32.partialorder %v2583, 8.507059e+37
  %v2585 = vand.u32 %v2573, 2147483648
  %v2586 = vor.u32 1.1754944e-38, %v2585
  %v2587 = vsel %vm2584, %v2586, %v2582
  %v2588 = vmul.f32 1.0, %v2587
  %2590 = vrot.lane.b32.xlu0 %v2566, 64
  %v2591 = vpop.permute.xlu0 %2590
  %v2593 = vmul.f32 %v2588, %v2591
  %2595 = vrot.lane.b32.xlu0 %v2593, 64
  %v2596 = vpop.permute.xlu0 %2595
  %v2598 = vadd.f32 %v2433, %v2596
  %v2599 = vtanh.pop %v2598
  %v2600 = vsub.f32 1.0, %v2588
  %2602 = vrot.lane.b32.xlu0 %v2599, 96
  %v2603 = vpop.permute.xlu0 %2602
  %v2605 = vmul.f32 %v2600, %v2603
  %v2606 = vmul.f32 %v2588, %v2510
  %v2607 = vadd.f32 %v2605, %v2606
  %2609 = vrot.lane.b32.xlu0 %v2607, 96
  %v2610 = vpop.permute.xlu0 %2609
  %v2611 = vsel %vm71, %v2610, 0
  %2613 = vmatpush.msra.mxu0 0.0
  %2614 = vmatpush.msra.mxu0 0.0
  %2615 = vmatpush.msra.mxu0 0.0
  %2616 = vmatpush.msra.mxu0 0.0
  %2617 = vmatpush.msra.mxu0 0.0
  %2618 = vmatpush.msra.mxu0 0.0
  %2619 = vmatpush.msra.mxu0 0.0
  %2620 = vmatpush.msra.mxu0 0.0
  %2621 = vmatpush.msra.mxu0 0.0
  %2622 = vmatpush.msra.mxu0 0.0
  %2623 = vmatpush.msra.mxu0 0.0
  %2624 = vmatpush.msra.mxu0 0.0
  %2625 = vmatpush.msra.mxu0 %v2437
  %2626 = vmatpush.msra.mxu0 %v2436
  %2627 = vmatpush.msra.mxu0 %v2435
  %2628 = vmatpush.msra.mxu0 %v2434
  %2629 = vmatmul.f32.gmra.mxu0 %v2611
  %v2630 = vpop.f32.mrf.mxu0
  %v2631 = vadd.f32 %v2511, %v2630
  %2632 = vdwg.mxu0
  %v2633 = vsel %vm974, %v2631, -inf
  %2634 = vmax.xlane.f32.xlu0 %v2633
  %v2635 = vpop.xlane.xlu0 %2634
  %v2636 = vsub.f32 %v2631, %v2635
  %v2637 = vmul.f32 %v2636, 1.442695
  %v2638 = vpow.pop %v2637
  %v2639 = vsel %vm974, %v2638, 0.0
  %2640 = vadd.xlane.f32.xlu0 %v2639
  %v2641 = vpop.xlane.xlu0 %2640
  %v2642 = vlog2.pop %v2641
  %v2643 = vmul.f32 %v2642, 0.6931472
  %v2644 = vsub.f32 %v2636, %v2643
  %v2645 = vpack.c.bf16 %v2607, %v2607
  %2647 = vrot.lane.b32.xlu0 %v2645, 96
  %v2648 = vpop.permute.xlu0 %2647
  %v2650 = vsel %vm71, %v2648, 0
  %2652 = vmatpush.bf16.msra.mxu0 0
  %2653 = vmatpush.bf16.msra.mxu0 0
  %2654 = vmatpush.bf16.msra.mxu0 0
  %2655 = vmatpush.bf16.msra.mxu0 0
  %2656 = vmatpush.bf16.msra.mxu0 0
  %2657 = vmatpush.bf16.msra.mxu0 0
  %2658 = vmatpush.bf16.msra.mxu0 %v2453
  %2659 = vmatpush.bf16.msra.mxu0 %v2452
  %2660 = vmatmul.bf16.gmra.mxu0 %v2650
  %v2661 = vpop.f32.mrf.mxu0
  %v2662 = vadd.f32 %v2440, %v2661
  %v2663 = vpop.f32.mrf.mxu0
  %2664 = vdwg.mxu0
  %v2665 = vadd.f32 %v2433, %v2662
  %v2666 = vxor.u32 %v2665, 2147483648
  %v2667 = vmul.f32 %v2666, 1.442695
  %v2668 = vpow.pop %v2667
  %v2669 = vadd.f32 %v2668, 1.0
  %v2670 = vrcp.pop %v2669
  %v2671 = vmul.f32 %v2669, %v2670
  %v2672 = vsub.f32 1.0, %v2671
  %v2673 = vmul.f32 %v2670, %v2672
  %v2674 = vadd.f32 %v2670, %v2673
  %vm2675 = vweird.f32 %v2669
  %vm2676 = vweird.f32 %v2670
  %vm2677 = vmor %vm2675, %vm2676
  %v2678 = vsel %vm2677, %v2670, %v2674
  %v2679 = vand.u32 2147483647, %v2669
  %vm2680 = vcmp.eq.f32.partialorder %v2679, 8.507059e+37
  %v2681 = vand.u32 %v2669, 2147483648
  %v2682 = vor.u32 1.1754944e-38, %v2681
  %v2683 = vsel %vm2680, %v2682, %v2678
  %v2684 = vmul.f32 1.0, %v2683
  %2686 = vrot.lane.b32.xlu0 %v2662, 64
  %v2687 = vpop.permute.xlu0 %2686
  %v2689 = vmul.f32 %v2684, %v2687
  %2691 = vrot.lane.b32.xlu0 %v2689, 64
  %v2692 = vpop.permute.xlu0 %2691
  %v2694 = vadd.f32 %v2433, %v2692
  %v2695 = vtanh.pop %v2694
  %v2696 = vsub.f32 1.0, %v2684
  %2698 = vrot.lane.b32.xlu0 %v2695, 96
  %v2699 = vpop.permute.xlu0 %2698
  %v2701 = vmul.f32 %v2696, %v2699
  %v2702 = vmul.f32 %v2684, %v2607
  %v2703 = vadd.f32 %v2701, %v2702
  %2705 = vrot.lane.b32.xlu0 %v2703, 96
  %v2706 = vpop.permute.xlu0 %2705
  %v2707 = vsel %vm71, %v2706, 0
  %2709 = vmatpush.msra.mxu0 0.0
  %2710 = vmatpush.msra.mxu0 0.0
  %2711 = vmatpush.msra.mxu0 0.0
  %2712 = vmatpush.msra.mxu0 0.0
  %2713 = vmatpush.msra.mxu0 0.0
  %2714 = vmatpush.msra.mxu0 0.0
  %2715 = vmatpush.msra.mxu0 0.0
  %2716 = vmatpush.msra.mxu0 0.0
  %2717 = vmatpush.msra.mxu0 0.0
  %2718 = vmatpush.msra.mxu0 0.0
  %2719 = vmatpush.msra.mxu0 0.0
  %2720 = vmatpush.msra.mxu0 0.0
  %2721 = vmatpush.msra.mxu0 %v2437
  %2722 = vmatpush.msra.mxu0 %v2436
  %2723 = vmatpush.msra.mxu0 %v2435
  %2724 = vmatpush.msra.mxu0 %v2434
  %2725 = vmatmul.f32.gmra.mxu0 %v2707
  %v2726 = vpop.f32.mrf.mxu0
  %v2727 = vadd.f32 %v2511, %v2726
  %2728 = vdwg.mxu0
  %v2729 = vsel %vm974, %v2727, -inf
  %2730 = vmax.xlane.f32.xlu0 %v2729
  %v2731 = vpop.xlane.xlu0 %2730
  %v2732 = vsub.f32 %v2727, %v2731
  %v2733 = vmul.f32 %v2732, 1.442695
  %v2734 = vpow.pop %v2733
  %v2735 = vsel %vm974, %v2734, 0.0
  %2736 = vadd.xlane.f32.xlu0 %v2735
  %v2737 = vpop.xlane.xlu0 %2736
  %v2738 = vlog2.pop %v2737
  %v2739 = vmul.f32 %v2738, 0.6931472
  %v2740 = vsub.f32 %v2732, %v2739
  %v2742 = vrot.slane %v2644, 6
  %v2745 = vrot.slane %v2740, 4
  %v2747 = vsel %vm974, %v2548, %v2742
  %v2748 = vsel %vm976, %v2747, %v2745
  %2749 = vst [vmem:[%s7] sm:$0x3f] %v2748
  // Predicated region
  $region30: #{dmn_forward.1} parent=0 // pred_check
    _
  $region31: #{dmn_forward.1} parent=0 // pred_check_branch
    %2751 = sbr.rel (0) target = $region33
  $region32: #{dmn_forward.1} parent=0 // pred_region
    _
  $region33: #{dmn_forward.1} parent=0 // pred_fallthru
    _
  // Predicated region
  $region34: #{dmn_forward.1} parent=0 // pred_check
    _
  $region35: #{dmn_forward.1} parent=0 // pred_check_branch
    %2753 = sbr.rel (0) target = $region37
  $region36: #{dmn_forward.1} parent=0 // pred_region
    _
  $region37: #{dmn_forward.1} parent=0 // pred_fallthru
    _

</llo_original>
